<compile_context>
chip_gen: v5e
topology: v5e:2x2
jax: 0.10.0
libtpu: 0.0.40
codegen_flags: <defaults>
</compile_context>

<pallas_src>
import numpy as np

import jax
import jax.numpy as jnp
from jax.experimental import pallas as pl
from jax.experimental.pallas import tpu as pltpu


K_IN = 3 * 7 * 7          # 147 flattened input pixels
K_PAD = 256               # lane-aligned K for the first (folded conv1) matmul
N_DEC = 3 * 7 * 7         # 147 flattened decoder-output pixels
N_DEC_PAD = 256           # lane-aligned decoder output width
SMALL_W = 128             # lane-dense slab width for the small outputs


# ----------------------------------------------------------------------------
# The fused Pallas kernel: full E2C forward, everything VMEM-resident.
# ----------------------------------------------------------------------------
def _e2c_kernel(
    xcat_ref, u_ref, eps1_ref, eps2_ref,
    wc1_ref, bc1_ref, wc2_ref, bc2_ref, weh_ref, beh_ref,
    wt1_ref, bt1_ref, wt2_ref, bt2_ref, wth_ref, bth_ref,
    wd1_ref, bd1_ref, wd2_ref, bd2_ref, wd3_ref, bd3_ref,
    dec_ref, small_ref,
):
    f32 = jnp.float32
    B2 = u_ref.shape[0]            # 2B  (rows = [x-batch ; nx-batch])
    B = B2 // 2

    def lin(x, w_ref, b_ref, relu):
        w = w_ref[...]             # big weights are bf16; tiny ones stay f32
        y = jnp.dot(x.astype(w.dtype), w, preferred_element_type=f32) + b_ref[...]
        return jnp.maximum(y, 0.0) if relu else y

    # ---- encoder, batched over [x ; nx] --------------------------------------
    h = lin(xcat_ref[...], wc1_ref, bc1_ref, True)     # (2B, 576)  conv1 (dense, bf16)
    h = lin(h, wc2_ref, bc2_ref, True)                 # (2B, 128)  conv2 (dense, bf16)
    enc = lin(h, weh_ref, beh_ref, False)              # (2B, 6)    [mean | log_var]

    mean = enc[:, 0:3]
    log_var = enc[:, 3:6]
    std = jnp.exp(0.5 * log_var)
    z = mean + eps1_ref[...] * std                     # (2B, 3); rows :B are z(x)

    # ---- transition (purely row-wise; rows B: are computed then discarded) ---
    ht = lin(z, wt1_ref, bt1_ref, True)                # (2B, 32)
    ht = lin(ht, wt2_ref, bt2_ref, True)               # (2B, 64)
    th = lin(ht, wth_ref, bth_ref, False)              # (2B, 33) = [A(9)|Bm(21)|o(3)]

    r0, r1, r2 = th[:, 0:3], th[:, 3:6], th[:, 6:9]
    g0, g1, g2 = th[:, 9:16], th[:, 16:23], th[:, 23:30]
    o0, o1, o2 = th[:, 30:31], th[:, 31:32], th[:, 32:33]

    def rdot(a, b):                                    # per-row dot -> (2B, 1)
        return jnp.sum(a * b, axis=1, keepdims=True)

    # C = A diag(exp(0.5 * log_var)) A^T  (exactly as in the PyTorch reference)
    c00 = rdot(r0 * std, r0); c01 = rdot(r0 * std, r1); c02 = rdot(r0 * std, r2)
    c11 = rdot(r1 * std, r1); c12 = rdot(r1 * std, r2); c22 = rdot(r2 * std, r2)

    uu = u_ref[...]
    nm0 = rdot(r0, mean) + rdot(g0, uu) + o0
    nm1 = rdot(r1, mean) + rdot(g1, uu) + o1
    nm2 = rdot(r2, mean) + rdot(g2, uu) + o2

    # Closed-form lower 3x3 Cholesky of C (MultivariateNormal.rsample); tiny
    # clamp guards PSD edge cases (torch would NaN/error instead).
    tiny = 1e-12
    l00 = jnp.sqrt(jnp.maximum(c00, tiny))
    l10 = c01 / l00
    l20 = c02 / l00
    l11 = jnp.sqrt(jnp.maximum(c11 - l10 * l10, tiny))
    l21 = (c12 - l20 * l10) / l11
    l22 = jnp.sqrt(jnp.maximum(c22 - l20 * l20 - l21 * l21, tiny))

    e = eps2_ref[...]
    ea, eb, ec = e[:, 0:1], e[:, 1:2], e[:, 2:3]
    nz0 = nm0 + l00 * ea
    nz1 = nm1 + l10 * ea + l11 * eb
    nz2 = nm2 + l20 * ea + l21 * eb + l22 * ec

    col3 = jax.lax.broadcasted_iota(jnp.int32, (B2, 3), 1)
    nz = (jnp.where(col3 == 0, nz0, 0.0)
          + jnp.where(col3 == 1, nz1, 0.0)
          + jnp.where(col3 == 2, nz2, 0.0))            # (2B, 3); rows :B are nz(x)

    # ---- small outputs: one lane-dense (2B, 128) slab, single full store -----
    #   cols 0:6  -> encoder heads for [x ; nx]
    #   cols 6:9  -> nz_mean        (rows :B valid)
    #   cols 9:18 -> C flat (3x3)   (rows :B valid)
    colw = jax.lax.broadcasted_iota(jnp.int32, (B2, SMALL_W), 1)
    pieces = ([enc[:, j:j + 1] for j in range(6)]
              + [nm0, nm1, nm2]
              + [c00, c01, c02, c01, c11, c12, c02, c12, c22])
    slab = jnp.zeros((B2, SMALL_W), f32)
    for j, v in enumerate(pieces):
        slab = slab + jnp.where(colw == j, v, 0.0)
    small_ref[...] = slab

    # ---- fused decoder over [z(x) ; nz(x)] ------------------------------------
    # Build the (2B, 3) row-stack with two tiny selection matmuls (iota-built
    # permutation matrices) — avoids relying on sublane concat lowering.
    rsel = jax.lax.broadcasted_iota(jnp.int32, (B2, B2), 0)
    csel = jax.lax.broadcasted_iota(jnp.int32, (B2, B2), 1)
    sel_z = jnp.where((rsel == csel) & (rsel < B), 1.0, 0.0).astype(f32)
    sel_n = jnp.where(rsel == csel + B, 1.0, 0.0).astype(f32)
    latent = (jnp.dot(sel_z, z, preferred_element_type=f32)
              + jnp.dot(sel_n, nz, preferred_element_type=f32))   # (2B, 3)

    hd = lin(latent, wd1_ref, bd1_ref, True)           # (2B, 128)  dfc1
    hd = lin(hd, wd2_ref, bd2_ref, True)               # (2B, 784)  convtrans1 (dense, bf16)
    dec_ref[...] = lin(hd, wd3_ref, bd3_ref, False)    # (2B, 256)  convtrans2 (padded, bf16)


# ----------------------------------------------------------------------------
# One-time (init) parameter folding: convs -> dense matrices, heads fused,
# weights pre-transposed, lane-padded, big matrices cast to bf16.
# ----------------------------------------------------------------------------
def _dense_from_linear(fn, in_shape):
    """Dense matrix (n_in, n_out) of a linear map on flattened (C,H,W) inputs."""
    n = int(np.prod(in_shape))
    basis = jnp.eye(n, dtype=jnp.float32).reshape((n,) + tuple(in_shape))
    return fn(basis).reshape(n, -1)


def fold_params(p):
    dn = ("NCHW", "OIHW", "NCHW")
    bf16 = jnp.bfloat16

    def conv(x, w, pad=((0, 0), (0, 0)), dil=(1, 1)):
        return jax.lax.conv_general_dilated(
            x, w, window_strides=(1, 1), padding=pad,
            lhs_dilation=dil, dimension_numbers=dn)

    # ConvTranspose2d(w) == Conv2d over the dilated+padded input with a
    # flipped, channel-swapped kernel.
    ct1_w = jnp.flip(p["ct1_w"], axis=(2, 3)).transpose(1, 0, 2, 3)   # (16, 8, 3, 3)
    ct2_w = jnp.flip(p["ct2_w"], axis=(2, 3)).transpose(1, 0, 2, 3)   # (3, 16, 3, 3)

    w_c1 = _dense_from_linear(lambda x: conv(x, p["conv1_w"]), (3, 7, 7))   # (147, 576)
    w_c1 = jnp.pad(w_c1, ((0, K_PAD - K_IN), (0, 0)))                        # K 147 -> 256
    w_d3 = _dense_from_linear(
        lambda x: conv(x, ct2_w, pad=((1, 1), (1, 1))), (16, 7, 7))          # (784, 147)
    w_d3 = jnp.pad(w_d3, ((0, 0), (0, N_DEC_PAD - N_DEC)))                   # N 147 -> 256
    b_d3 = jnp.pad(jnp.repeat(p["ct2_b"], 7 * 7)[None, :],
                   ((0, 0), (0, N_DEC_PAD - N_DEC)))

    return {
        # encoder: conv1 (3,7,7)->(16,6,6), conv2 (16,6,6)->(8,4,4)
        "w_c1": w_c1.astype(bf16),
        "b_c1": jnp.repeat(p["conv1_b"], 6 * 6)[None, :],
        "w_c2": _dense_from_linear(lambda x: conv(x, p["conv2_w"]), (16, 6, 6)).astype(bf16),
        "b_c2": jnp.repeat(p["conv2_b"], 4 * 4)[None, :],
        # fused encoder heads [efc1 | efc2]
        "w_eh": jnp.concatenate([p["efc1_w"].T, p["efc2_w"].T], axis=1),
        "b_eh": jnp.concatenate([p["efc1_b"], p["efc2_b"]])[None, :],
        # transition trunk + fused heads [to1 | to2 | to3]
        "w_t1": p["tfc1_w"].T, "b_t1": p["tfc1_b"][None, :],
        "w_t2": p["tfc2_w"].T, "b_t2": p["tfc2_b"][None, :],
        "w_th": jnp.concatenate([p["to1_w"].T, p["to2_w"].T, p["to3_w"].T], axis=1),
        "b_th": jnp.concatenate([p["to1_b"], p["to2_b"], p["to3_b"]])[None, :],
        # decoder: dfc1, convtrans1 (8,4,4)->(16,7,7), convtrans2 (16,7,7)->(3,7,7)
        "w_d1": p["dfc1_w"].T, "b_d1": p["dfc1_b"][None, :],
        "w_d2": _dense_from_linear(
            lambda x: conv(x, ct1_w, pad=((1, 1), (1, 1)), dil=(2, 2)),
            (8, 4, 4)).astype(bf16),
        "b_d2": jnp.repeat(p["ct1_b"], 7 * 7)[None, :],
        "w_d3": w_d3.astype(bf16),
        "b_d3": b_d3,
    }


# ----------------------------------------------------------------------------
# Forward pass: one pallas_call + a handful of trivial host reshapes/slices.
# ----------------------------------------------------------------------------
def e2c_forward(dense, x, u, nx, key):
    B = x.shape[0]
    k1, k2 = jax.random.split(key)
    eps1 = jax.random.normal(k1, (2 * B, 3), dtype=jnp.float32)
    eps2 = jax.random.normal(k2, (2 * B, 3), dtype=jnp.float32)

    # [x ; nx] flattened, lane-padded to the folded conv1 K dimension (256).
    xcat = jnp.concatenate([x.reshape(B, -1), nx.reshape(B, -1)], axis=0)
    xcat = jnp.pad(xcat, ((0, 0), (0, K_PAD - xcat.shape[1])))
    # TODO(synk): this concat/pad is a ~5 KB host-side copy; folding it into the
    # kernel would need sublane-offset stores, which we avoid for robustness.
    u2 = jnp.concatenate([u, u], axis=0).astype(jnp.float32)   # rows B: unused

    inputs = (
        xcat, u2, eps1, eps2,
        dense["w_c1"], dense["b_c1"], dense["w_c2"], dense["b_c2"],
        dense["w_eh"], dense["b_eh"],
        dense["w_t1"], dense["b_t1"], dense["w_t2"], dense["b_t2"],
        dense["w_th"], dense["b_th"],
        dense["w_d1"], dense["b_d1"], dense["w_d2"], dense["b_d2"],
        dense["w_d3"], dense["b_d3"],
    )
    out_shape = (
        jax.ShapeDtypeStruct((2 * B, N_DEC_PAD), jnp.float32),  # [decode(z); decode(nz)]
        jax.ShapeDtypeStruct((2 * B, SMALL_W), jnp.float32),    # [enc | nz_mean | C]
    )
    vmem = pl.BlockSpec(memory_space=pltpu.MemorySpace.VMEM)
    flops = 2 * 2 * B * (K_PAD * 576 + 576 * 128 + 128 * 6
                         + 3 * 32 + 32 * 64 + 64 * 33
                         + 3 * 128 + 128 * 784 + 784 * N_DEC_PAD)
    bytes_accessed = int(sum(a.size * a.dtype.itemsize for a in inputs)
                         + sum(int(np.prod(s.shape)) * 4 for s in out_shape))

    dec, small = pl.pallas_call(
        _e2c_kernel,
        out_shape=out_shape,
        in_specs=[vmem] * len(inputs),
        out_specs=tuple([vmem] * len(out_shape)),
        cost_estimate=pl.CostEstimate(flops=flops, transcendentals=24 * B,
                                      bytes_accessed=bytes_accessed),
    )(*inputs)

    mean, log_var = small[:B, 0:3], small[:B, 3:6]
    rnz_mean, rnz_log_var = small[B:, 0:3], small[B:, 3:6]
    nz_mean = small[:B, 6:9]
    C = small[:B, 9:18].reshape(B, 3, 3)
    rx = dec[:B, :N_DEC].reshape(B, 3, 7, 7)
    recon_nx = dec[B:, :N_DEC].reshape(B, 3, 7, 7)
    # TODO(synk): torch.distributions.MultivariateNormal has no Pallas equivalent;
    # the two distributions are returned as their (mean, covariance) parameters.
    rnz_cov = jax.vmap(jnp.diag)(jnp.exp(0.5 * rnz_log_var))
    return mean, log_var, rx, recon_nx, (nz_mean, C), (rnz_mean, rnz_cov)


# ----------------------------------------------------------------------------
# Deterministic parameter init (shapes from E2C.__init__, PyTorch layouts).
# ----------------------------------------------------------------------------
def init_params(key):
    names_shapes = [
        ("conv1_w", (16, 3, 2, 2)), ("conv1_b", (16,)),
        ("conv2_w", (8, 16, 3, 3)), ("conv2_b", (8,)),
        ("efc1_w", (3, 128)), ("efc1_b", (3,)),
        ("efc2_w", (3, 128)), ("efc2_b", (3,)),
        ("dfc1_w", (128, 3)), ("dfc1_b", (128,)),
        ("ct1_w", (8, 16, 3, 3)), ("ct1_b", (16,)),
        ("ct2_w", (16, 3, 3, 3)), ("ct2_b", (3,)),
        ("tfc1_w", (32, 3)), ("tfc1_b", (32,)),
        ("tfc2_w", (64, 32)), ("tfc2_b", (64,)),
        ("to1_w", (9, 64)), ("to1_b", (9,)),
        ("to2_w", (21, 64)), ("to2_b", (21,)),
        ("to3_w", (3, 64)), ("to3_b", (3,)),
    ]
    keys = jax.random.split(key, len(names_shapes))
    params = {}
    for (name, shape), k in zip(names_shapes, keys):
        params[name] = jax.random.normal(k, shape, dtype=jnp.float32) * 0.1
    return params


if __name__ == "__main__":
    root = jax.random.PRNGKey(0)
    pkey, xkey, ukey, nxkey, skey = jax.random.split(root, 5)
    params = init_params(pkey)
    dense = fold_params(params)          # one-time folding, outside the hot path

    B = 2
    # input spatial size 7x7 is implied by the encoder (k=2 then k=3 -> 4x4x8 = 128)
    x = jax.random.normal(xkey, (B, 3, 7, 7), dtype=jnp.float32)
    u = jax.random.normal(ukey, (B, 7), dtype=jnp.float32)      # B matrix is (3, 7)
    nx = jax.random.normal(nxkey, (B, 3, 7, 7), dtype=jnp.float32)

    fwd = jax.jit(e2c_forward)
    outs = fwd(dense, x, u, nx, skey)
    jax.block_until_ready(outs)

    mean, log_var, rx, recon_nx, (nz_mean, C), (rnz_mean, rnz_cov) = outs
    assert mean.shape == (B, 3) and log_var.shape == (B, 3)
    assert rx.shape == (B, 3, 7, 7) and recon_nx.shape == (B, 3, 7, 7)
    assert nz_mean.shape == (B, 3) and C.shape == (B, 3, 3)
    assert rnz_mean.shape == (B, 3) and rnz_cov.shape == (B, 3, 3)
    assert bool(jnp.all(jnp.isfinite(rx))) and bool(jnp.all(jnp.isfinite(C)))
    print("KERNEL_OK")
</pallas_src>

<mosaic_0001>
module attributes {stable_mosaic.version = 11 : i64} {
  func.func @_e2c_kernel(%arg0: memref<4x256xf32, #tpu.memory_space<vmem>>, %arg1: memref<4x7xf32, #tpu.memory_space<vmem>>, %arg2: memref<4x3xf32, #tpu.memory_space<vmem>>, %arg3: memref<4x3xf32, #tpu.memory_space<vmem>>, %arg4: memref<256x576xbf16, #tpu.memory_space<vmem>>, %arg5: memref<1x576xf32, #tpu.memory_space<vmem>>, %arg6: memref<576x128xbf16, #tpu.memory_space<vmem>>, %arg7: memref<1x128xf32, #tpu.memory_space<vmem>>, %arg8: memref<128x6xf32, #tpu.memory_space<vmem>>, %arg9: memref<1x6xf32, #tpu.memory_space<vmem>>, %arg10: memref<3x32xf32, #tpu.memory_space<vmem>>, %arg11: memref<1x32xf32, #tpu.memory_space<vmem>>, %arg12: memref<32x64xf32, #tpu.memory_space<vmem>>, %arg13: memref<1x64xf32, #tpu.memory_space<vmem>>, %arg14: memref<64x33xf32, #tpu.memory_space<vmem>>, %arg15: memref<1x33xf32, #tpu.memory_space<vmem>>, %arg16: memref<3x128xf32, #tpu.memory_space<vmem>>, %arg17: memref<1x128xf32, #tpu.memory_space<vmem>>, %arg18: memref<128x784xbf16, #tpu.memory_space<vmem>>, %arg19: memref<1x784xf32, #tpu.memory_space<vmem>>, %arg20: memref<784x256xbf16, #tpu.memory_space<vmem>>, %arg21: memref<1x256xf32, #tpu.memory_space<vmem>>, %arg22: memref<4x256xf32, #tpu.memory_space<vmem>>, %arg23: memref<4x128xf32, #tpu.memory_space<vmem>>) attributes {dimension_semantics = [], scalar_prefetch = 0 : i64, scratch_operands = 0 : i64, tpu.core_type = #tpu.core_type<tc>} {
    %c0 = arith.constant 0 : index
    %c0_0 = arith.constant 0 : index
    %0 = vector.load %arg0[%c0, %c0_0] : memref<4x256xf32, #tpu.memory_space<vmem>>, vector<4x256xf32>
    %c0_1 = arith.constant 0 : index
    %c0_2 = arith.constant 0 : index
    %1 = vector.load %arg4[%c0_1, %c0_2] : memref<256x576xbf16, #tpu.memory_space<vmem>>, vector<256x576xbf16>
    %2 = arith.truncf %0 : vector<4x256xf32> to vector<4x256xbf16>
    %cst = arith.constant dense<0.000000e+00> : vector<4x576xf32>
    %3 = tpu.matmul %2, %1, %cst {dimension_numbers = #tpu.dot_dimension_numbers<[1], [0], [0], [1], [0, 0, 1, 1], [], []>} : vector<4x256xbf16>, vector<256x576xbf16>, vector<4x576xf32> -> vector<4x576xf32>
    %c0_3 = arith.constant 0 : index
    %c0_4 = arith.constant 0 : index
    %4 = vector.load %arg5[%c0_3, %c0_4] : memref<1x576xf32, #tpu.memory_space<vmem>>, vector<1x576xf32>
    %5 = vector.broadcast %4 : vector<1x576xf32> to vector<4x576xf32>
    %6 = arith.addf %3, %5 : vector<4x576xf32>
    %cst_5 = arith.constant 0.000000e+00 : f32
    %7 = vector.broadcast %cst_5 : f32 to vector<4x576xf32>
    %8 = arith.maximumf %6, %7 : vector<4x576xf32>
    %c0_6 = arith.constant 0 : index
    %c0_7 = arith.constant 0 : index
    %9 = vector.load %arg6[%c0_6, %c0_7] : memref<576x128xbf16, #tpu.memory_space<vmem>>, vector<576x128xbf16>
    %10 = arith.truncf %8 : vector<4x576xf32> to vector<4x576xbf16>
    %cst_8 = arith.constant dense<0.000000e+00> : vector<4x128xf32>
    %11 = tpu.matmul %10, %9, %cst_8 {dimension_numbers = #tpu.dot_dimension_numbers<[1], [0], [0], [1], [0, 0, 1, 1], [], []>} : vector<4x576xbf16>, vector<576x128xbf16>, vector<4x128xf32> -> vector<4x128xf32>
    %c0_9 = arith.constant 0 : index
    %c0_10 = arith.constant 0 : index
    %12 = vector.load %arg7[%c0_9, %c0_10] : memref<1x128xf32, #tpu.memory_space<vmem>>, vector<1x128xf32>
    %13 = vector.broadcast %12 : vector<1x128xf32> to vector<4x128xf32>
    %14 = arith.addf %11, %13 : vector<4x128xf32>
    %cst_11 = arith.constant 0.000000e+00 : f32
    %15 = vector.broadcast %cst_11 : f32 to vector<4x128xf32>
    %16 = arith.maximumf %14, %15 : vector<4x128xf32>
    %c0_12 = arith.constant 0 : index
    %c0_13 = arith.constant 0 : index
    %17 = vector.load %arg8[%c0_12, %c0_13] : memref<128x6xf32, #tpu.memory_space<vmem>>, vector<128x6xf32>
    %cst_14 = arith.constant dense<0.000000e+00> : vector<4x6xf32>
    %18 = tpu.matmul %16, %17, %cst_14 {dimension_numbers = #tpu.dot_dimension_numbers<[1], [0], [0], [1], [0, 0, 1, 1], [], []>} : vector<4x128xf32>, vector<128x6xf32>, vector<4x6xf32> -> vector<4x6xf32>
    %c0_15 = arith.constant 0 : index
    %c0_16 = arith.constant 0 : index
    %19 = vector.load %arg9[%c0_15, %c0_16] : memref<1x6xf32, #tpu.memory_space<vmem>>, vector<1x6xf32>
    %20 = vector.broadcast %19 : vector<1x6xf32> to vector<4x6xf32>
    %21 = arith.addf %18, %20 : vector<4x6xf32>
    %22 = vector.extract_strided_slice %21 {offsets = [0, 0], sizes = [4, 3], strides = [1, 1]} : vector<4x6xf32> to vector<4x3xf32>
    %23 = vector.extract_strided_slice %21 {offsets = [0, 3], sizes = [4, 3], strides = [1, 1]} : vector<4x6xf32> to vector<4x3xf32>
    %cst_17 = arith.constant 5.000000e-01 : f32
    %24 = vector.broadcast %cst_17 : f32 to vector<4x3xf32>
    %25 = arith.mulf %24, %23 : vector<4x3xf32>
    %26 = math.exp %25 : vector<4x3xf32>
    %c0_18 = arith.constant 0 : index
    %c0_19 = arith.constant 0 : index
    %27 = vector.load %arg2[%c0_18, %c0_19] : memref<4x3xf32, #tpu.memory_space<vmem>>, vector<4x3xf32>
    %28 = arith.mulf %27, %26 : vector<4x3xf32>
    %29 = arith.addf %22, %28 : vector<4x3xf32>
    %c0_20 = arith.constant 0 : index
    %c0_21 = arith.constant 0 : index
    %30 = vector.load %arg10[%c0_20, %c0_21] : memref<3x32xf32, #tpu.memory_space<vmem>>, vector<3x32xf32>
    %cst_22 = arith.constant dense<0.000000e+00> : vector<4x32xf32>
    %31 = tpu.matmul %29, %30, %cst_22 {dimension_numbers = #tpu.dot_dimension_numbers<[1], [0], [0], [1], [0, 0, 1, 1], [], []>} : vector<4x3xf32>, vector<3x32xf32>, vector<4x32xf32> -> vector<4x32xf32>
    %c0_23 = arith.constant 0 : index
    %c0_24 = arith.constant 0 : index
    %32 = vector.load %arg11[%c0_23, %c0_24] : memref<1x32xf32, #tpu.memory_space<vmem>>, vector<1x32xf32>
    %33 = vector.broadcast %32 : vector<1x32xf32> to vector<4x32xf32>
    %34 = arith.addf %31, %33 : vector<4x32xf32>
    %cst_25 = arith.constant 0.000000e+00 : f32
    %35 = vector.broadcast %cst_25 : f32 to vector<4x32xf32>
    %36 = arith.maximumf %34, %35 : vector<4x32xf32>
    %c0_26 = arith.constant 0 : index
    %c0_27 = arith.constant 0 : index
    %37 = vector.load %arg12[%c0_26, %c0_27] : memref<32x64xf32, #tpu.memory_space<vmem>>, vector<32x64xf32>
    %cst_28 = arith.constant dense<0.000000e+00> : vector<4x64xf32>
    %38 = tpu.matmul %36, %37, %cst_28 {dimension_numbers = #tpu.dot_dimension_numbers<[1], [0], [0], [1], [0, 0, 1, 1], [], []>} : vector<4x32xf32>, vector<32x64xf32>, vector<4x64xf32> -> vector<4x64xf32>
    %c0_29 = arith.constant 0 : index
    %c0_30 = arith.constant 0 : index
    %39 = vector.load %arg13[%c0_29, %c0_30] : memref<1x64xf32, #tpu.memory_space<vmem>>, vector<1x64xf32>
    %40 = vector.broadcast %39 : vector<1x64xf32> to vector<4x64xf32>
    %41 = arith.addf %38, %40 : vector<4x64xf32>
    %cst_31 = arith.constant 0.000000e+00 : f32
    %42 = vector.broadcast %cst_31 : f32 to vector<4x64xf32>
    %43 = arith.maximumf %41, %42 : vector<4x64xf32>
    %c0_32 = arith.constant 0 : index
    %c0_33 = arith.constant 0 : index
    %44 = vector.load %arg14[%c0_32, %c0_33] : memref<64x33xf32, #tpu.memory_space<vmem>>, vector<64x33xf32>
    %cst_34 = arith.constant dense<0.000000e+00> : vector<4x33xf32>
    %45 = tpu.matmul %43, %44, %cst_34 {dimension_numbers = #tpu.dot_dimension_numbers<[1], [0], [0], [1], [0, 0, 1, 1], [], []>} : vector<4x64xf32>, vector<64x33xf32>, vector<4x33xf32> -> vector<4x33xf32>
    %c0_35 = arith.constant 0 : index
    %c0_36 = arith.constant 0 : index
    %46 = vector.load %arg15[%c0_35, %c0_36] : memref<1x33xf32, #tpu.memory_space<vmem>>, vector<1x33xf32>
    %47 = vector.broadcast %46 : vector<1x33xf32> to vector<4x33xf32>
    %48 = arith.addf %45, %47 : vector<4x33xf32>
    %49 = vector.extract_strided_slice %48 {offsets = [0, 0], sizes = [4, 3], strides = [1, 1]} : vector<4x33xf32> to vector<4x3xf32>
    %50 = vector.extract_strided_slice %48 {offsets = [0, 3], sizes = [4, 3], strides = [1, 1]} : vector<4x33xf32> to vector<4x3xf32>
    %51 = vector.extract_strided_slice %48 {offsets = [0, 6], sizes = [4, 3], strides = [1, 1]} : vector<4x33xf32> to vector<4x3xf32>
    %52 = vector.extract_strided_slice %48 {offsets = [0, 9], sizes = [4, 7], strides = [1, 1]} : vector<4x33xf32> to vector<4x7xf32>
    %53 = vector.extract_strided_slice %48 {offsets = [0, 16], sizes = [4, 7], strides = [1, 1]} : vector<4x33xf32> to vector<4x7xf32>
    %54 = vector.extract_strided_slice %48 {offsets = [0, 23], sizes = [4, 7], strides = [1, 1]} : vector<4x33xf32> to vector<4x7xf32>
    %55 = vector.extract_strided_slice %48 {offsets = [0, 30], sizes = [4, 1], strides = [1, 1]} : vector<4x33xf32> to vector<4x1xf32>
    %56 = vector.extract_strided_slice %48 {offsets = [0, 31], sizes = [4, 1], strides = [1, 1]} : vector<4x33xf32> to vector<4x1xf32>
    %57 = vector.extract_strided_slice %48 {offsets = [0, 32], sizes = [4, 1], strides = [1, 1]} : vector<4x33xf32> to vector<4x1xf32>
    %58 = arith.mulf %49, %26 : vector<4x3xf32>
    %59 = arith.mulf %58, %49 : vector<4x3xf32>
    %cst_37 = arith.constant dense<0.000000e+00> : vector<4xf32>
    %60 = vector.multi_reduction <add>, %59, %cst_37 [1] : vector<4x3xf32> to vector<4xf32>
    %61 = vector.shape_cast %60 : vector<4xf32> to vector<4x1xf32>
    %62 = arith.mulf %49, %26 : vector<4x3xf32>
    %63 = arith.mulf %62, %50 : vector<4x3xf32>
    %cst_38 = arith.constant dense<0.000000e+00> : vector<4xf32>
    %64 = vector.multi_reduction <add>, %63, %cst_38 [1] : vector<4x3xf32> to vector<4xf32>
    %65 = vector.shape_cast %64 : vector<4xf32> to vector<4x1xf32>
    %66 = arith.mulf %49, %26 : vector<4x3xf32>
    %67 = arith.mulf %66, %51 : vector<4x3xf32>
    %cst_39 = arith.constant dense<0.000000e+00> : vector<4xf32>
    %68 = vector.multi_reduction <add>, %67, %cst_39 [1] : vector<4x3xf32> to vector<4xf32>
    %69 = vector.shape_cast %68 : vector<4xf32> to vector<4x1xf32>
    %70 = arith.mulf %50, %26 : vector<4x3xf32>
    %71 = arith.mulf %70, %50 : vector<4x3xf32>
    %cst_40 = arith.constant dense<0.000000e+00> : vector<4xf32>
    %72 = vector.multi_reduction <add>, %71, %cst_40 [1] : vector<4x3xf32> to vector<4xf32>
    %73 = vector.shape_cast %72 : vector<4xf32> to vector<4x1xf32>
    %74 = arith.mulf %50, %26 : vector<4x3xf32>
    %75 = arith.mulf %74, %51 : vector<4x3xf32>
    %cst_41 = arith.constant dense<0.000000e+00> : vector<4xf32>
    %76 = vector.multi_reduction <add>, %75, %cst_41 [1] : vector<4x3xf32> to vector<4xf32>
    %77 = vector.shape_cast %76 : vector<4xf32> to vector<4x1xf32>
    %78 = arith.mulf %51, %26 : vector<4x3xf32>
    %79 = arith.mulf %78, %51 : vector<4x3xf32>
    %cst_42 = arith.constant dense<0.000000e+00> : vector<4xf32>
    %80 = vector.multi_reduction <add>, %79, %cst_42 [1] : vector<4x3xf32> to vector<4xf32>
    %81 = vector.shape_cast %80 : vector<4xf32> to vector<4x1xf32>
    %c0_43 = arith.constant 0 : index
    %c0_44 = arith.constant 0 : index
    %82 = vector.load %arg1[%c0_43, %c0_44] : memref<4x7xf32, #tpu.memory_space<vmem>>, vector<4x7xf32>
    %83 = arith.mulf %49, %22 : vector<4x3xf32>
    %cst_45 = arith.constant dense<0.000000e+00> : vector<4xf32>
    %84 = vector.multi_reduction <add>, %83, %cst_45 [1] : vector<4x3xf32> to vector<4xf32>
    %85 = vector.shape_cast %84 : vector<4xf32> to vector<4x1xf32>
    %86 = arith.mulf %52, %82 : vector<4x7xf32>
    %cst_46 = arith.constant dense<0.000000e+00> : vector<4xf32>
    %87 = vector.multi_reduction <add>, %86, %cst_46 [1] : vector<4x7xf32> to vector<4xf32>
    %88 = vector.shape_cast %87 : vector<4xf32> to vector<4x1xf32>
    %89 = arith.addf %85, %88 : vector<4x1xf32>
    %90 = arith.addf %89, %55 : vector<4x1xf32>
    %91 = arith.mulf %50, %22 : vector<4x3xf32>
    %cst_47 = arith.constant dense<0.000000e+00> : vector<4xf32>
    %92 = vector.multi_reduction <add>, %91, %cst_47 [1] : vector<4x3xf32> to vector<4xf32>
    %93 = vector.shape_cast %92 : vector<4xf32> to vector<4x1xf32>
    %94 = arith.mulf %53, %82 : vector<4x7xf32>
    %cst_48 = arith.constant dense<0.000000e+00> : vector<4xf32>
    %95 = vector.multi_reduction <add>, %94, %cst_48 [1] : vector<4x7xf32> to vector<4xf32>
    %96 = vector.shape_cast %95 : vector<4xf32> to vector<4x1xf32>
    %97 = arith.addf %93, %96 : vector<4x1xf32>
    %98 = arith.addf %97, %56 : vector<4x1xf32>
    %99 = arith.mulf %51, %22 : vector<4x3xf32>
    %cst_49 = arith.constant dense<0.000000e+00> : vector<4xf32>
    %100 = vector.multi_reduction <add>, %99, %cst_49 [1] : vector<4x3xf32> to vector<4xf32>
    %101 = vector.shape_cast %100 : vector<4xf32> to vector<4x1xf32>
    %102 = arith.mulf %54, %82 : vector<4x7xf32>
    %cst_50 = arith.constant dense<0.000000e+00> : vector<4xf32>
    %103 = vector.multi_reduction <add>, %102, %cst_50 [1] : vector<4x7xf32> to vector<4xf32>
    %104 = vector.shape_cast %103 : vector<4xf32> to vector<4x1xf32>
    %105 = arith.addf %101, %104 : vector<4x1xf32>
    %106 = arith.addf %105, %57 : vector<4x1xf32>
    %cst_51 = arith.constant 9.99999996E-13 : f32
    %107 = vector.broadcast %cst_51 : f32 to vector<4x1xf32>
    %108 = arith.maximumf %61, %107 : vector<4x1xf32>
    %109 = math.sqrt %108 : vector<4x1xf32>
    %110 = arith.divf %65, %109 : vector<4x1xf32>
    %111 = arith.divf %69, %109 : vector<4x1xf32>
    %112 = arith.mulf %110, %110 : vector<4x1xf32>
    %113 = arith.subf %73, %112 : vector<4x1xf32>
    %cst_52 = arith.constant 9.99999996E-13 : f32
    %114 = vector.broadcast %cst_52 : f32 to vector<4x1xf32>
    %115 = arith.maximumf %113, %114 : vector<4x1xf32>
    %116 = math.sqrt %115 : vector<4x1xf32>
    %117 = arith.mulf %111, %110 : vector<4x1xf32>
    %118 = arith.subf %77, %117 : vector<4x1xf32>
    %119 = arith.divf %118, %116 : vector<4x1xf32>
    %120 = arith.mulf %111, %111 : vector<4x1xf32>
    %121 = arith.subf %81, %120 : vector<4x1xf32>
    %122 = arith.mulf %119, %119 : vector<4x1xf32>
    %123 = arith.subf %121, %122 : vector<4x1xf32>
    %cst_53 = arith.constant 9.99999996E-13 : f32
    %124 = vector.broadcast %cst_53 : f32 to vector<4x1xf32>
    %125 = arith.maximumf %123, %124 : vector<4x1xf32>
    %126 = math.sqrt %125 : vector<4x1xf32>
    %c0_54 = arith.constant 0 : index
    %c0_55 = arith.constant 0 : index
    %127 = vector.load %arg3[%c0_54, %c0_55] : memref<4x3xf32, #tpu.memory_space<vmem>>, vector<4x3xf32>
    %128 = vector.extract_strided_slice %127 {offsets = [0, 0], sizes = [4, 1], strides = [1, 1]} : vector<4x3xf32> to vector<4x1xf32>
    %129 = vector.extract_strided_slice %127 {offsets = [0, 1], sizes = [4, 1], strides = [1, 1]} : vector<4x3xf32> to vector<4x1xf32>
    %130 = vector.extract_strided_slice %127 {offsets = [0, 2], sizes = [4, 1], strides = [1, 1]} : vector<4x3xf32> to vector<4x1xf32>
    %131 = arith.mulf %109, %128 : vector<4x1xf32>
    %132 = arith.addf %90, %131 : vector<4x1xf32>
    %133 = arith.mulf %110, %128 : vector<4x1xf32>
    %134 = arith.addf %98, %133 : vector<4x1xf32>
    %135 = arith.mulf %116, %129 : vector<4x1xf32>
    %136 = arith.addf %134, %135 : vector<4x1xf32>
    %137 = arith.mulf %111, %128 : vector<4x1xf32>
    %138 = arith.addf %106, %137 : vector<4x1xf32>
    %139 = arith.mulf %119, %129 : vector<4x1xf32>
    %140 = arith.addf %138, %139 : vector<4x1xf32>
    %141 = arith.mulf %126, %130 : vector<4x1xf32>
    %142 = arith.addf %140, %141 : vector<4x1xf32>
    %143 = tpu.iota {dimensions = array<i32: 1>} : vector<4x3xi32>
    %c0_i32 = arith.constant 0 : i32
    %144 = vector.broadcast %c0_i32 : i32 to vector<4x3xi32>
    %145 = arith.cmpi eq, %143, %144 : vector<4x3xi32>
    %cst_56 = arith.constant 0.000000e+00 : f32
    %146 = vector.shape_cast %132 : vector<4x1xf32> to vector<4x1xf32>
    %147 = vector.broadcast %146 : vector<4x1xf32> to vector<4x3xf32>
    %148 = vector.broadcast %cst_56 : f32 to vector<4x3xf32>
    %149 = arith.select %145, %147, %148 : vector<4x3xi1>, vector<4x3xf32>
    %c1_i32 = arith.constant 1 : i32
    %150 = vector.broadcast %c1_i32 : i32 to vector<4x3xi32>
    %151 = arith.cmpi eq, %143, %150 : vector<4x3xi32>
    %cst_57 = arith.constant 0.000000e+00 : f32
    %152 = vector.shape_cast %136 : vector<4x1xf32> to vector<4x1xf32>
    %153 = vector.broadcast %152 : vector<4x1xf32> to vector<4x3xf32>
    %154 = vector.broadcast %cst_57 : f32 to vector<4x3xf32>
    %155 = arith.select %151, %153, %154 : vector<4x3xi1>, vector<4x3xf32>
    %156 = arith.addf %149, %155 : vector<4x3xf32>
    %c2_i32 = arith.constant 2 : i32
    %157 = vector.broadcast %c2_i32 : i32 to vector<4x3xi32>
    %158 = arith.cmpi eq, %143, %157 : vector<4x3xi32>
    %cst_58 = arith.constant 0.000000e+00 : f32
    %159 = vector.shape_cast %142 : vector<4x1xf32> to vector<4x1xf32>
    %160 = vector.broadcast %159 : vector<4x1xf32> to vector<4x3xf32>
    %161 = vector.broadcast %cst_58 : f32 to vector<4x3xf32>
    %162 = arith.select %158, %160, %161 : vector<4x3xi1>, vector<4x3xf32>
    %163 = arith.addf %156, %162 : vector<4x3xf32>
    %164 = tpu.iota {dimensions = array<i32: 1>} : vector<4x128xi32>
    %165 = vector.extract_strided_slice %21 {offsets = [0, 0], sizes = [4, 1], strides = [1, 1]} : vector<4x6xf32> to vector<4x1xf32>
    %166 = vector.extract_strided_slice %21 {offsets = [0, 1], sizes = [4, 1], strides = [1, 1]} : vector<4x6xf32> to vector<4x1xf32>
    %167 = vector.extract_strided_slice %21 {offsets = [0, 2], sizes = [4, 1], strides = [1, 1]} : vector<4x6xf32> to vector<4x1xf32>
    %168 = vector.extract_strided_slice %21 {offsets = [0, 3], sizes = [4, 1], strides = [1, 1]} : vector<4x6xf32> to vector<4x1xf32>
    %169 = vector.extract_strided_slice %21 {offsets = [0, 4], sizes = [4, 1], strides = [1, 1]} : vector<4x6xf32> to vector<4x1xf32>
    %170 = vector.extract_strided_slice %21 {offsets = [0, 5], sizes = [4, 1], strides = [1, 1]} : vector<4x6xf32> to vector<4x1xf32>
    %cst_59 = arith.constant 0.000000e+00 : f32
    %171 = vector.broadcast %cst_59 : f32 to vector<4x128xf32>
    %c0_i32_60 = arith.constant 0 : i32
    %172 = vector.broadcast %c0_i32_60 : i32 to vector<4x128xi32>
    %173 = arith.cmpi eq, %164, %172 : vector<4x128xi32>
    %cst_61 = arith.constant 0.000000e+00 : f32
    %174 = vector.shape_cast %165 : vector<4x1xf32> to vector<4x1xf32>
    %175 = vector.broadcast %174 : vector<4x1xf32> to vector<4x128xf32>
    %176 = vector.broadcast %cst_61 : f32 to vector<4x128xf32>
    %177 = arith.select %173, %175, %176 : vector<4x128xi1>, vector<4x128xf32>
    %178 = arith.addf %171, %177 : vector<4x128xf32>
    %c1_i32_62 = arith.constant 1 : i32
    %179 = vector.broadcast %c1_i32_62 : i32 to vector<4x128xi32>
    %180 = arith.cmpi eq, %164, %179 : vector<4x128xi32>
    %cst_63 = arith.constant 0.000000e+00 : f32
    %181 = vector.shape_cast %166 : vector<4x1xf32> to vector<4x1xf32>
    %182 = vector.broadcast %181 : vector<4x1xf32> to vector<4x128xf32>
    %183 = vector.broadcast %cst_63 : f32 to vector<4x128xf32>
    %184 = arith.select %180, %182, %183 : vector<4x128xi1>, vector<4x128xf32>
    %185 = arith.addf %178, %184 : vector<4x128xf32>
    %c2_i32_64 = arith.constant 2 : i32
    %186 = vector.broadcast %c2_i32_64 : i32 to vector<4x128xi32>
    %187 = arith.cmpi eq, %164, %186 : vector<4x128xi32>
    %cst_65 = arith.constant 0.000000e+00 : f32
    %188 = vector.shape_cast %167 : vector<4x1xf32> to vector<4x1xf32>
    %189 = vector.broadcast %188 : vector<4x1xf32> to vector<4x128xf32>
    %190 = vector.broadcast %cst_65 : f32 to vector<4x128xf32>
    %191 = arith.select %187, %189, %190 : vector<4x128xi1>, vector<4x128xf32>
    %192 = arith.addf %185, %191 : vector<4x128xf32>
    %c3_i32 = arith.constant 3 : i32
    %193 = vector.broadcast %c3_i32 : i32 to vector<4x128xi32>
    %194 = arith.cmpi eq, %164, %193 : vector<4x128xi32>
    %cst_66 = arith.constant 0.000000e+00 : f32
    %195 = vector.shape_cast %168 : vector<4x1xf32> to vector<4x1xf32>
    %196 = vector.broadcast %195 : vector<4x1xf32> to vector<4x128xf32>
    %197 = vector.broadcast %cst_66 : f32 to vector<4x128xf32>
    %198 = arith.select %194, %196, %197 : vector<4x128xi1>, vector<4x128xf32>
    %199 = arith.addf %192, %198 : vector<4x128xf32>
    %c4_i32 = arith.constant 4 : i32
    %200 = vector.broadcast %c4_i32 : i32 to vector<4x128xi32>
    %201 = arith.cmpi eq, %164, %200 : vector<4x128xi32>
    %cst_67 = arith.constant 0.000000e+00 : f32
    %202 = vector.shape_cast %169 : vector<4x1xf32> to vector<4x1xf32>
    %203 = vector.broadcast %202 : vector<4x1xf32> to vector<4x128xf32>
    %204 = vector.broadcast %cst_67 : f32 to vector<4x128xf32>
    %205 = arith.select %201, %203, %204 : vector<4x128xi1>, vector<4x128xf32>
    %206 = arith.addf %199, %205 : vector<4x128xf32>
    %c5_i32 = arith.constant 5 : i32
    %207 = vector.broadcast %c5_i32 : i32 to vector<4x128xi32>
    %208 = arith.cmpi eq, %164, %207 : vector<4x128xi32>
    %cst_68 = arith.constant 0.000000e+00 : f32
    %209 = vector.shape_cast %170 : vector<4x1xf32> to vector<4x1xf32>
    %210 = vector.broadcast %209 : vector<4x1xf32> to vector<4x128xf32>
    %211 = vector.broadcast %cst_68 : f32 to vector<4x128xf32>
    %212 = arith.select %208, %210, %211 : vector<4x128xi1>, vector<4x128xf32>
    %213 = arith.addf %206, %212 : vector<4x128xf32>
    %c6_i32 = arith.constant 6 : i32
    %214 = vector.broadcast %c6_i32 : i32 to vector<4x128xi32>
    %215 = arith.cmpi eq, %164, %214 : vector<4x128xi32>
    %cst_69 = arith.constant 0.000000e+00 : f32
    %216 = vector.shape_cast %90 : vector<4x1xf32> to vector<4x1xf32>
    %217 = vector.broadcast %216 : vector<4x1xf32> to vector<4x128xf32>
    %218 = vector.broadcast %cst_69 : f32 to vector<4x128xf32>
    %219 = arith.select %215, %217, %218 : vector<4x128xi1>, vector<4x128xf32>
    %220 = arith.addf %213, %219 : vector<4x128xf32>
    %c7_i32 = arith.constant 7 : i32
    %221 = vector.broadcast %c7_i32 : i32 to vector<4x128xi32>
    %222 = arith.cmpi eq, %164, %221 : vector<4x128xi32>
    %cst_70 = arith.constant 0.000000e+00 : f32
    %223 = vector.shape_cast %98 : vector<4x1xf32> to vector<4x1xf32>
    %224 = vector.broadcast %223 : vector<4x1xf32> to vector<4x128xf32>
    %225 = vector.broadcast %cst_70 : f32 to vector<4x128xf32>
    %226 = arith.select %222, %224, %225 : vector<4x128xi1>, vector<4x128xf32>
    %227 = arith.addf %220, %226 : vector<4x128xf32>
    %c8_i32 = arith.constant 8 : i32
    %228 = vector.broadcast %c8_i32 : i32 to vector<4x128xi32>
    %229 = arith.cmpi eq, %164, %228 : vector<4x128xi32>
    %cst_71 = arith.constant 0.000000e+00 : f32
    %230 = vector.shape_cast %106 : vector<4x1xf32> to vector<4x1xf32>
    %231 = vector.broadcast %230 : vector<4x1xf32> to vector<4x128xf32>
    %232 = vector.broadcast %cst_71 : f32 to vector<4x128xf32>
    %233 = arith.select %229, %231, %232 : vector<4x128xi1>, vector<4x128xf32>
    %234 = arith.addf %227, %233 : vector<4x128xf32>
    %c9_i32 = arith.constant 9 : i32
    %235 = vector.broadcast %c9_i32 : i32 to vector<4x128xi32>
    %236 = arith.cmpi eq, %164, %235 : vector<4x128xi32>
    %cst_72 = arith.constant 0.000000e+00 : f32
    %237 = vector.shape_cast %61 : vector<4x1xf32> to vector<4x1xf32>
    %238 = vector.broadcast %237 : vector<4x1xf32> to vector<4x128xf32>
    %239 = vector.broadcast %cst_72 : f32 to vector<4x128xf32>
    %240 = arith.select %236, %238, %239 : vector<4x128xi1>, vector<4x128xf32>
    %241 = arith.addf %234, %240 : vector<4x128xf32>
    %c10_i32 = arith.constant 10 : i32
    %242 = vector.broadcast %c10_i32 : i32 to vector<4x128xi32>
    %243 = arith.cmpi eq, %164, %242 : vector<4x128xi32>
    %cst_73 = arith.constant 0.000000e+00 : f32
    %244 = vector.shape_cast %65 : vector<4x1xf32> to vector<4x1xf32>
    %245 = vector.broadcast %244 : vector<4x1xf32> to vector<4x128xf32>
    %246 = vector.broadcast %cst_73 : f32 to vector<4x128xf32>
    %247 = arith.select %243, %245, %246 : vector<4x128xi1>, vector<4x128xf32>
    %248 = arith.addf %241, %247 : vector<4x128xf32>
    %c11_i32 = arith.constant 11 : i32
    %249 = vector.broadcast %c11_i32 : i32 to vector<4x128xi32>
    %250 = arith.cmpi eq, %164, %249 : vector<4x128xi32>
    %cst_74 = arith.constant 0.000000e+00 : f32
    %251 = vector.shape_cast %69 : vector<4x1xf32> to vector<4x1xf32>
    %252 = vector.broadcast %251 : vector<4x1xf32> to vector<4x128xf32>
    %253 = vector.broadcast %cst_74 : f32 to vector<4x128xf32>
    %254 = arith.select %250, %252, %253 : vector<4x128xi1>, vector<4x128xf32>
    %255 = arith.addf %248, %254 : vector<4x128xf32>
    %c12_i32 = arith.constant 12 : i32
    %256 = vector.broadcast %c12_i32 : i32 to vector<4x128xi32>
    %257 = arith.cmpi eq, %164, %256 : vector<4x128xi32>
    %cst_75 = arith.constant 0.000000e+00 : f32
    %258 = vector.shape_cast %65 : vector<4x1xf32> to vector<4x1xf32>
    %259 = vector.broadcast %258 : vector<4x1xf32> to vector<4x128xf32>
    %260 = vector.broadcast %cst_75 : f32 to vector<4x128xf32>
    %261 = arith.select %257, %259, %260 : vector<4x128xi1>, vector<4x128xf32>
    %262 = arith.addf %255, %261 : vector<4x128xf32>
    %c13_i32 = arith.constant 13 : i32
    %263 = vector.broadcast %c13_i32 : i32 to vector<4x128xi32>
    %264 = arith.cmpi eq, %164, %263 : vector<4x128xi32>
    %cst_76 = arith.constant 0.000000e+00 : f32
    %265 = vector.shape_cast %73 : vector<4x1xf32> to vector<4x1xf32>
    %266 = vector.broadcast %265 : vector<4x1xf32> to vector<4x128xf32>
    %267 = vector.broadcast %cst_76 : f32 to vector<4x128xf32>
    %268 = arith.select %264, %266, %267 : vector<4x128xi1>, vector<4x128xf32>
    %269 = arith.addf %262, %268 : vector<4x128xf32>
    %c14_i32 = arith.constant 14 : i32
    %270 = vector.broadcast %c14_i32 : i32 to vector<4x128xi32>
    %271 = arith.cmpi eq, %164, %270 : vector<4x128xi32>
    %cst_77 = arith.constant 0.000000e+00 : f32
    %272 = vector.shape_cast %77 : vector<4x1xf32> to vector<4x1xf32>
    %273 = vector.broadcast %272 : vector<4x1xf32> to vector<4x128xf32>
    %274 = vector.broadcast %cst_77 : f32 to vector<4x128xf32>
    %275 = arith.select %271, %273, %274 : vector<4x128xi1>, vector<4x128xf32>
    %276 = arith.addf %269, %275 : vector<4x128xf32>
    %c15_i32 = arith.constant 15 : i32
    %277 = vector.broadcast %c15_i32 : i32 to vector<4x128xi32>
    %278 = arith.cmpi eq, %164, %277 : vector<4x128xi32>
    %cst_78 = arith.constant 0.000000e+00 : f32
    %279 = vector.shape_cast %69 : vector<4x1xf32> to vector<4x1xf32>
    %280 = vector.broadcast %279 : vector<4x1xf32> to vector<4x128xf32>
    %281 = vector.broadcast %cst_78 : f32 to vector<4x128xf32>
    %282 = arith.select %278, %280, %281 : vector<4x128xi1>, vector<4x128xf32>
    %283 = arith.addf %276, %282 : vector<4x128xf32>
    %c16_i32 = arith.constant 16 : i32
    %284 = vector.broadcast %c16_i32 : i32 to vector<4x128xi32>
    %285 = arith.cmpi eq, %164, %284 : vector<4x128xi32>
    %cst_79 = arith.constant 0.000000e+00 : f32
    %286 = vector.shape_cast %77 : vector<4x1xf32> to vector<4x1xf32>
    %287 = vector.broadcast %286 : vector<4x1xf32> to vector<4x128xf32>
    %288 = vector.broadcast %cst_79 : f32 to vector<4x128xf32>
    %289 = arith.select %285, %287, %288 : vector<4x128xi1>, vector<4x128xf32>
    %290 = arith.addf %283, %289 : vector<4x128xf32>
    %c17_i32 = arith.constant 17 : i32
    %291 = vector.broadcast %c17_i32 : i32 to vector<4x128xi32>
    %292 = arith.cmpi eq, %164, %291 : vector<4x128xi32>
    %cst_80 = arith.constant 0.000000e+00 : f32
    %293 = vector.shape_cast %81 : vector<4x1xf32> to vector<4x1xf32>
    %294 = vector.broadcast %293 : vector<4x1xf32> to vector<4x128xf32>
    %295 = vector.broadcast %cst_80 : f32 to vector<4x128xf32>
    %296 = arith.select %292, %294, %295 : vector<4x128xi1>, vector<4x128xf32>
    %297 = arith.addf %290, %296 : vector<4x128xf32>
    %c0_81 = arith.constant 0 : index
    %c0_82 = arith.constant 0 : index
    %298 = vector.load %arg23[%c0_81, %c0_82] : memref<4x128xf32, #tpu.memory_space<vmem>>, vector<4x128xf32>
    tpu.vector_store %arg23[%c0_81, %c0_82], %297 {strides = array<i32>} : memref<4x128xf32, #tpu.memory_space<vmem>>, vector<4x128xf32>,
    %299 = tpu.iota {dimensions = array<i32: 0>} : vector<4x4xi32>
    %300 = tpu.iota {dimensions = array<i32: 1>} : vector<4x4xi32>
    %301 = arith.cmpi eq, %299, %300 : vector<4x4xi32>
    %c2_i32_83 = arith.constant 2 : i32
    %302 = vector.broadcast %c2_i32_83 : i32 to vector<4x4xi32>
    %303 = arith.cmpi slt, %299, %302 : vector<4x4xi32>
    %304 = arith.andi %301, %303 : vector<4x4xi1>
    %cst_84 = arith.constant 1.000000e+00 : f32
    %cst_85 = arith.constant 0.000000e+00 : f32
    %305 = vector.broadcast %cst_84 : f32 to vector<4x4xf32>
    %306 = vector.broadcast %cst_85 : f32 to vector<4x4xf32>
    %307 = arith.select %304, %305, %306 : vector<4x4xi1>, vector<4x4xf32>
    %c2_i32_86 = arith.constant 2 : i32
    %308 = vector.broadcast %c2_i32_86 : i32 to vector<4x4xi32>
    %309 = arith.addi %300, %308 : vector<4x4xi32>
    %310 = arith.cmpi eq, %299, %309 : vector<4x4xi32>
    %cst_87 = arith.constant 1.000000e+00 : f32
    %cst_88 = arith.constant 0.000000e+00 : f32
    %311 = vector.broadcast %cst_87 : f32 to vector<4x4xf32>
    %312 = vector.broadcast %cst_88 : f32 to vector<4x4xf32>
    %313 = arith.select %310, %311, %312 : vector<4x4xi1>, vector<4x4xf32>
    %cst_89 = arith.constant dense<0.000000e+00> : vector<4x3xf32>
    %314 = tpu.matmul %307, %29, %cst_89 {dimension_numbers = #tpu.dot_dimension_numbers<[1], [0], [0], [1], [0, 0, 1, 1], [], []>} : vector<4x4xf32>, vector<4x3xf32>, vector<4x3xf32> -> vector<4x3xf32>
    %cst_90 = arith.constant dense<0.000000e+00> : vector<4x3xf32>
    %315 = tpu.matmul %313, %163, %cst_90 {dimension_numbers = #tpu.dot_dimension_numbers<[1], [0], [0], [1], [0, 0, 1, 1], [], []>} : vector<4x4xf32>, vector<4x3xf32>, vector<4x3xf32> -> vector<4x3xf32>
    %316 = arith.addf %314, %315 : vector<4x3xf32>
    %c0_91 = arith.constant 0 : index
    %c0_92 = arith.constant 0 : index
    %317 = vector.load %arg16[%c0_91, %c0_92] : memref<3x128xf32, #tpu.memory_space<vmem>>, vector<3x128xf32>
    %cst_93 = arith.constant dense<0.000000e+00> : vector<4x128xf32>
    %318 = tpu.matmul %316, %317, %cst_93 {dimension_numbers = #tpu.dot_dimension_numbers<[1], [0], [0], [1], [0, 0, 1, 1], [], []>} : vector<4x3xf32>, vector<3x128xf32>, vector<4x128xf32> -> vector<4x128xf32>
    %c0_94 = arith.constant 0 : index
    %c0_95 = arith.constant 0 : index
    %319 = vector.load %arg17[%c0_94, %c0_95] : memref<1x128xf32, #tpu.memory_space<vmem>>, vector<1x128xf32>
    %320 = vector.broadcast %319 : vector<1x128xf32> to vector<4x128xf32>
    %321 = arith.addf %318, %320 : vector<4x128xf32>
    %cst_96 = arith.constant 0.000000e+00 : f32
    %322 = vector.broadcast %cst_96 : f32 to vector<4x128xf32>
    %323 = arith.maximumf %321, %322 : vector<4x128xf32>
    %c0_97 = arith.constant 0 : index
    %c0_98 = arith.constant 0 : index
    %324 = vector.load %arg18[%c0_97, %c0_98] : memref<128x784xbf16, #tpu.memory_space<vmem>>, vector<128x784xbf16>
    %325 = arith.truncf %323 : vector<4x128xf32> to vector<4x128xbf16>
    %cst_99 = arith.constant dense<0.000000e+00> : vector<4x784xf32>
    %326 = tpu.matmul %325, %324, %cst_99 {dimension_numbers = #tpu.dot_dimension_numbers<[1], [0], [0], [1], [0, 0, 1, 1], [], []>} : vector<4x128xbf16>, vector<128x784xbf16>, vector<4x784xf32> -> vector<4x784xf32>
    %c0_100 = arith.constant 0 : index
    %c0_101 = arith.constant 0 : index
    %327 = vector.load %arg19[%c0_100, %c0_101] : memref<1x784xf32, #tpu.memory_space<vmem>>, vector<1x784xf32>
    %328 = vector.broadcast %327 : vector<1x784xf32> to vector<4x784xf32>
    %329 = arith.addf %326, %328 : vector<4x784xf32>
    %cst_102 = arith.constant 0.000000e+00 : f32
    %330 = vector.broadcast %cst_102 : f32 to vector<4x784xf32>
    %331 = arith.maximumf %329, %330 : vector<4x784xf32>
    %c0_103 = arith.constant 0 : index
    %c0_104 = arith.constant 0 : index
    %332 = vector.load %arg20[%c0_103, %c0_104] : memref<784x256xbf16, #tpu.memory_space<vmem>>, vector<784x256xbf16>
    %333 = arith.truncf %331 : vector<4x784xf32> to vector<4x784xbf16>
    %cst_105 = arith.constant dense<0.000000e+00> : vector<4x256xf32>
    %334 = tpu.matmul %333, %332, %cst_105 {dimension_numbers = #tpu.dot_dimension_numbers<[1], [0], [0], [1], [0, 0, 1, 1], [], []>} : vector<4x784xbf16>, vector<784x256xbf16>, vector<4x256xf32> -> vector<4x256xf32>
    %c0_106 = arith.constant 0 : index
    %c0_107 = arith.constant 0 : index
    %335 = vector.load %arg21[%c0_106, %c0_107] : memref<1x256xf32, #tpu.memory_space<vmem>>, vector<1x256xf32>
    %336 = vector.broadcast %335 : vector<1x256xf32> to vector<4x256xf32>
    %337 = arith.addf %334, %336 : vector<4x256xf32>
    %c0_108 = arith.constant 0 : index
    %c0_109 = arith.constant 0 : index
    %338 = vector.load %arg22[%c0_108, %c0_109] : memref<4x256xf32, #tpu.memory_space<vmem>>, vector<4x256xf32>
    tpu.vector_store %arg22[%c0_108, %c0_109], %337 {strides = array<i32>} : memref<4x256xf32, #tpu.memory_space<vmem>>, vector<4x256xf32>,
    return
  }
}

</mosaic_0001>

<llo_original>
// kernel: e2c_forward.3
$region0: #{e2c_forward.3}
  #allocation0 [shape = 'u32[]', space=smem, size = 0x4, offset = 0x4, fixed_abs, tag = 'smem constant byte address 0x4 - core index']
  #allocation1 [shape = 'u32[72,128]{1,0:T(1,128)}', space=vmem, size = 0x9000, scoped, tag = 'internal scratch']
  %s0 = inlined_call_operand.vmem [shape: f32[4,256], index: 0, kind: input, shape index: {}]
  %s1 = inlined_call_operand.vmem [shape: f32[4,7], index: 1, kind: input, shape index: {}]
  %s2 = inlined_call_operand.vmem [shape: f32[4,3], index: 2, kind: input, shape index: {}]
  %s3 = inlined_call_operand.vmem [shape: f32[4,3], index: 3, kind: input, shape index: {}]
  %s4 = inlined_call_operand.vmem [shape: bf16[256,576], index: 4, kind: input, shape index: {}]
  %s5 = inlined_call_operand.vmem [shape: f32[1,576], index: 5, kind: input, shape index: {}]
  %s6 = inlined_call_operand.vmem [shape: bf16[576,128], index: 6, kind: input, shape index: {}]
  %s7 = inlined_call_operand.vmem [shape: f32[1,128], index: 7, kind: input, shape index: {}]
  %s8 = inlined_call_operand.vmem [shape: f32[128,6], index: 8, kind: input, shape index: {}]
  %s9 = inlined_call_operand.vmem [shape: f32[1,6], index: 9, kind: input, shape index: {}]
  %s10 = inlined_call_operand.vmem [shape: f32[3,32], index: 10, kind: input, shape index: {}]
  %s11 = inlined_call_operand.vmem [shape: f32[1,32], index: 11, kind: input, shape index: {}]
  %s12 = inlined_call_operand.vmem [shape: f32[32,64], index: 12, kind: input, shape index: {}]
  %s13 = inlined_call_operand.vmem [shape: f32[1,64], index: 13, kind: input, shape index: {}]
  %s14 = inlined_call_operand.vmem [shape: f32[64,33], index: 14, kind: input, shape index: {}]
  %s15 = inlined_call_operand.vmem [shape: f32[1,33], index: 15, kind: input, shape index: {}]
  %s16 = inlined_call_operand.vmem [shape: f32[3,128], index: 16, kind: input, shape index: {}]
  %s17 = inlined_call_operand.vmem [shape: f32[1,128], index: 17, kind: input, shape index: {}]
  %s18 = inlined_call_operand.vmem [shape: bf16[128,784], index: 18, kind: input, shape index: {}]
  %s19 = inlined_call_operand.vmem [shape: f32[1,784], index: 19, kind: input, shape index: {}]
  %s20 = inlined_call_operand.vmem [shape: bf16[784,256], index: 20, kind: input, shape index: {}]
  %s21 = inlined_call_operand.vmem [shape: f32[1,256], index: 21, kind: input, shape index: {}]
  %s22 = inlined_call_operand.vmem [shape: f32[4,256], index: 22, kind: output, shape index: {0}]
  %s23 = inlined_call_operand.vmem [shape: f32[4,128], index: 23, kind: output, shape index: {1}]
  %24 = xla_tuple %s22, %s23
  %s25 = sld [smem:[#allocation0]]
  $region106: #{e2c_forward.3} parent=0
    _
  %s27 = ssub.s32 1, %s25
  %s28 = scalar_select 0, %s27, %s25
  // Predicated region
  $region2: #{e2c_forward.3} parent=0 // pred_check
    _
  $region3: #{e2c_forward.3} parent=0 // pred_check_branch
    %30 = sbr.rel (0) target = $region5
  $region4: #{e2c_forward.3} parent=0 // pred_region
    _
  $region5: #{e2c_forward.3} parent=0 // pred_fallthru
    _
  // Predicated region
  $region6: #{e2c_forward.3} parent=0 // pred_check
    _
  $region7: #{e2c_forward.3} parent=0 // pred_check_branch
    %32 = sbr.rel (0) target = $region9
  $region8: #{e2c_forward.3} parent=0 // pred_region
    _
  $region9: #{e2c_forward.3} parent=0 // pred_fallthru
    _
  // Predicated region
  $region10: #{e2c_forward.3} parent=0 // pred_check
    _
  $region11: #{e2c_forward.3} parent=0 // pred_check_branch
    %34 = sbr.rel (0) target = $region13
  $region12: #{e2c_forward.3} parent=0 // pred_region
    _
  $region13: #{e2c_forward.3} parent=0 // pred_fallthru
    _
  // Predicated region
  $region14: #{e2c_forward.3} parent=0 // pred_check
    _
  $region15: #{e2c_forward.3} parent=0 // pred_check_branch
    %36 = sbr.rel (0) target = $region17
  $region16: #{e2c_forward.3} parent=0 // pred_region
    _
  $region17: #{e2c_forward.3} parent=0 // pred_fallthru
    _
  // Predicated region
  $region18: #{e2c_forward.3} parent=0 // pred_check
    _
  $region19: #{e2c_forward.3} parent=0 // pred_check_branch
    %38 = sbr.rel (0) target = $region21
  $region20: #{e2c_forward.3} parent=0 // pred_region
    _
  $region21: #{e2c_forward.3} parent=0 // pred_fallthru
    _
  // Predicated region
  $region22: #{e2c_forward.3} parent=0 // pred_check
    _
  $region23: #{e2c_forward.3} parent=0 // pred_check_branch
    %40 = sbr.rel (0) target = $region25
  $region24: #{e2c_forward.3} parent=0 // pred_region
    _
  $region25: #{e2c_forward.3} parent=0 // pred_fallthru
    _
  // Predicated region
  $region26: #{e2c_forward.3} parent=0 // pred_check
    _
  $region27: #{e2c_forward.3} parent=0 // pred_check_branch
    %42 = sbr.rel (0) target = $region29
  $region28: #{e2c_forward.3} parent=0 // pred_region
    _
  $region29: #{e2c_forward.3} parent=0 // pred_fallthru
    _
  // Predicated region
  $region30: #{e2c_forward.3} parent=0 // pred_check
    _
  $region31: #{e2c_forward.3} parent=0 // pred_check_branch
    %44 = sbr.rel (0) target = $region33
  $region32: #{e2c_forward.3} parent=0 // pred_region
    _
  $region33: #{e2c_forward.3} parent=0 // pred_fallthru
    _
  // Predicated region
  $region34: #{e2c_forward.3} parent=0 // pred_check
    _
  $region35: #{e2c_forward.3} parent=0 // pred_check_branch
    %46 = sbr.rel (0) target = $region37
  $region36: #{e2c_forward.3} parent=0 // pred_region
    _
  $region37: #{e2c_forward.3} parent=0 // pred_fallthru
    _
  // Predicated region
  $region38: #{e2c_forward.3} parent=0 // pred_check
    _
  $region39: #{e2c_forward.3} parent=0 // pred_check_branch
    %48 = sbr.rel (0) target = $region41
  $region40: #{e2c_forward.3} parent=0 // pred_region
    _
  $region41: #{e2c_forward.3} parent=0 // pred_fallthru
    _
  // Predicated region
  $region42: #{e2c_forward.3} parent=0 // pred_check
    _
  $region43: #{e2c_forward.3} parent=0 // pred_check_branch
    %50 = sbr.rel (0) target = $region45
  $region44: #{e2c_forward.3} parent=0 // pred_region
    _
  $region45: #{e2c_forward.3} parent=0 // pred_fallthru
    _
  // Predicated region
  $region46: #{e2c_forward.3} parent=0 // pred_check
    _
  $region47: #{e2c_forward.3} parent=0 // pred_check_branch
    %52 = sbr.rel (0) target = $region49
  $region48: #{e2c_forward.3} parent=0 // pred_region
    _
  $region49: #{e2c_forward.3} parent=0 // pred_fallthru
    _
  // Predicated region
  $region50: #{e2c_forward.3} parent=0 // pred_check
    _
  $region51: #{e2c_forward.3} parent=0 // pred_check_branch
    %54 = sbr.rel (0) target = $region53
  $region52: #{e2c_forward.3} parent=0 // pred_region
    _
  $region53: #{e2c_forward.3} parent=0 // pred_fallthru
    _
  // Predicated region
  $region54: #{e2c_forward.3} parent=0 // pred_check
    _
  $region55: #{e2c_forward.3} parent=0 // pred_check_branch
    %56 = sbr.rel (0) target = $region57
  $region56: #{e2c_forward.3} parent=0 // pred_region
    _
  $region57: #{e2c_forward.3} parent=0 // pred_fallthru
    _
  // Predicated region
  $region58: #{e2c_forward.3} parent=0 // pred_check
    _
  $region59: #{e2c_forward.3} parent=0 // pred_check_branch
    %58 = sbr.rel (0) target = $region61
  $region60: #{e2c_forward.3} parent=0 // pred_region
    _
  $region61: #{e2c_forward.3} parent=0 // pred_fallthru
    _
  // Predicated region
  $region62: #{e2c_forward.3} parent=0 // pred_check
    _
  $region63: #{e2c_forward.3} parent=0 // pred_check_branch
    %60 = sbr.rel (0) target = $region65
  $region64: #{e2c_forward.3} parent=0 // pred_region
    _
  $region65: #{e2c_forward.3} parent=0 // pred_fallthru
    _
  // Predicated region
  $region66: #{e2c_forward.3} parent=0 // pred_check
    _
  $region67: #{e2c_forward.3} parent=0 // pred_check_branch
    %62 = sbr.rel (0) target = $region69
  $region68: #{e2c_forward.3} parent=0 // pred_region
    _
  $region69: #{e2c_forward.3} parent=0 // pred_fallthru
    _
  // Predicated region
  $region70: #{e2c_forward.3} parent=0 // pred_check
    _
  $region71: #{e2c_forward.3} parent=0 // pred_check_branch
    %64 = sbr.rel (0) target = $region73
  $region72: #{e2c_forward.3} parent=0 // pred_region
    _
  $region73: #{e2c_forward.3} parent=0 // pred_fallthru
    _
  // Predicated region
  $region74: #{e2c_forward.3} parent=0 // pred_check
    _
  $region75: #{e2c_forward.3} parent=0 // pred_check_branch
    %66 = sbr.rel (0) target = $region77
  $region76: #{e2c_forward.3} parent=0 // pred_region
    _
  $region77: #{e2c_forward.3} parent=0 // pred_fallthru
    _
  // Predicated region
  $region78: #{e2c_forward.3} parent=0 // pred_check
    _
  $region79: #{e2c_forward.3} parent=0 // pred_check_branch
    %68 = sbr.rel (0) target = $region81
  $region80: #{e2c_forward.3} parent=0 // pred_region
    _
  $region81: #{e2c_forward.3} parent=0 // pred_fallthru
    _
  // Predicated region
  $region82: #{e2c_forward.3} parent=0 // pred_check
    _
  $region83: #{e2c_forward.3} parent=0 // pred_check_branch
    %70 = sbr.rel (0) target = $region85
  $region84: #{e2c_forward.3} parent=0 // pred_region
    _
  $region85: #{e2c_forward.3} parent=0 // pred_fallthru
    _
  // Predicated region
  $region86: #{e2c_forward.3} parent=0 // pred_check
    _
  $region87: #{e2c_forward.3} parent=0 // pred_check_branch
    %72 = sbr.rel (0) target = $region89
  $region88: #{e2c_forward.3} parent=0 // pred_region
    _
  $region89: #{e2c_forward.3} parent=0 // pred_fallthru
    _
  %v74 = vld [vmem:[%s0] sm:$0xff]
  %v75 = vld [vmem:[%s4] sm:$0xff]
  %v76 = vld [vmem:[%s4 + $0x8] sm:$0xff]
  %v77 = vld [vmem:[%s4 + $0x10] sm:$0xf]
  %v78 = vld [vmem:[%s4 + $0x14] sm:$0xff]
  %v79 = vld [vmem:[%s4 + $0x1c] sm:$0xff]
  %v80 = vld [vmem:[%s4 + $0x24] sm:$0xf]
  %v81 = vld [vmem:[%s4 + $0x28] sm:$0xff]
  %v82 = vld [vmem:[%s4 + $0x30] sm:$0xff]
  %v83 = vld [vmem:[%s4 + $0x38] sm:$0xf]
  %v84 = vld [vmem:[%s4 + $0x3c] sm:$0xff]
  %v85 = vld [vmem:[%s4 + $0x44] sm:$0xff]
  %v86 = vld [vmem:[%s4 + $0x4c] sm:$0xf]
  %v87 = vld [vmem:[%s4 + $0x50] sm:$0xff]
  %v88 = vld [vmem:[%s4 + $0x58] sm:$0xff]
  %v89 = vld [vmem:[%s4 + $0x60] sm:$0xf]
  %v90 = vld [vmem:[%s4 + $0x64] sm:$0xff]
  %v91 = vld [vmem:[%s4 + $0x6c] sm:$0xff]
  %v92 = vld [vmem:[%s4 + $0x74] sm:$0xf]
  %v93 = vld [vmem:[%s4 + $0x78] sm:$0xff]
  %v94 = vld [vmem:[%s4 + $0x80] sm:$0xff]
  %v95 = vld [vmem:[%s4 + $0x88] sm:$0xf]
  %v96 = vld [vmem:[%s4 + $0x8c] sm:$0xff]
  %v97 = vld [vmem:[%s4 + $0x94] sm:$0xff]
  %v98 = vld [vmem:[%s4 + $0x9c] sm:$0xf]
  %v99 = vld [vmem:[%s4 + $0xa0] sm:$0xff]
  %v100 = vld [vmem:[%s4 + $0xa8] sm:$0xff]
  %v101 = vld [vmem:[%s4 + $0xb0] sm:$0xf]
  %v102 = vld [vmem:[%s4 + $0xb4] sm:$0xff]
  %v103 = vld [vmem:[%s4 + $0xbc] sm:$0xff]
  %v104 = vld [vmem:[%s4 + $0xc4] sm:$0xf]
  %v105 = vld [vmem:[%s4 + $0xc8] sm:$0xff]
  %v106 = vld [vmem:[%s4 + $0xd0] sm:$0xff]
  %v107 = vld [vmem:[%s4 + $0xd8] sm:$0xf]
  %v108 = vld [vmem:[%s4 + $0xdc] sm:$0xff]
  %v109 = vld [vmem:[%s4 + $0xe4] sm:$0xff]
  %v110 = vld [vmem:[%s4 + $0xec] sm:$0xf]
  %v111 = vld [vmem:[%s4 + $0xf0] sm:$0xff]
  %v112 = vld [vmem:[%s4 + $0xf8] sm:$0xff]
  %v113 = vld [vmem:[%s4 + $0x100] sm:$0xf]
  %v114 = vld [vmem:[%s4 + $0x104] sm:$0xff]
  %v115 = vld [vmem:[%s4 + $0x10c] sm:$0xff]
  %v116 = vld [vmem:[%s4 + $0x114] sm:$0xf]
  %v117 = vld [vmem:[%s4 + $0x118] sm:$0xff]
  %v118 = vld [vmem:[%s4 + $0x120] sm:$0xff]
  %v119 = vld [vmem:[%s4 + $0x128] sm:$0xf]
  %v120 = vld [vmem:[%s4 + $0x12c] sm:$0xff]
  %v121 = vld [vmem:[%s4 + $0x134] sm:$0xff]
  %v122 = vld [vmem:[%s4 + $0x13c] sm:$0xf]
  %v123 = vld [vmem:[%s4 + $0x140] sm:$0xff]
  %v124 = vld [vmem:[%s4 + $0x148] sm:$0xff]
  %v125 = vld [vmem:[%s4 + $0x150] sm:$0xf]
  %v126 = vld [vmem:[%s4 + $0x154] sm:$0xff]
  %v127 = vld [vmem:[%s4 + $0x15c] sm:$0xff]
  %v128 = vld [vmem:[%s4 + $0x164] sm:$0xf]
  %v129 = vld [vmem:[%s4 + $0x168] sm:$0xff]
  %v130 = vld [vmem:[%s4 + $0x170] sm:$0xff]
  %v131 = vld [vmem:[%s4 + $0x178] sm:$0xf]
  %v132 = vld [vmem:[%s4 + $0x17c] sm:$0xff]
  %v133 = vld [vmem:[%s4 + $0x184] sm:$0xff]
  %v134 = vld [vmem:[%s4 + $0x18c] sm:$0xf]
  %v135 = vld [vmem:[%s4 + $0x190] sm:$0xff]
  %v136 = vld [vmem:[%s4 + $0x198] sm:$0xff]
  %v137 = vld [vmem:[%s4 + $0x1a0] sm:$0xf]
  %v138 = vld [vmem:[%s4 + $0x1a4] sm:$0xff]
  %v139 = vld [vmem:[%s4 + $0x1ac] sm:$0xff]
  %v140 = vld [vmem:[%s4 + $0x1b4] sm:$0xf]
  %v141 = vld [vmem:[%s4 + $0x1b8] sm:$0xff]
  %v142 = vld [vmem:[%s4 + $0x1c0] sm:$0xff]
  %v143 = vld [vmem:[%s4 + $0x1c8] sm:$0xf]
  %v144 = vld [vmem:[%s4 + $0x1cc] sm:$0xff]
  %v145 = vld [vmem:[%s4 + $0x1d4] sm:$0xff]
  %v146 = vld [vmem:[%s4 + $0x1dc] sm:$0xf]
  %v147 = vld [vmem:[%s4 + $0x1e0] sm:$0xff]
  %v148 = vld [vmem:[%s4 + $0x1e8] sm:$0xff]
  %v149 = vld [vmem:[%s4 + $0x1f0] sm:$0xf]
  %v150 = vld [vmem:[%s4 + $0x1f4] sm:$0xff]
  %v151 = vld [vmem:[%s4 + $0x1fc] sm:$0xff]
  %v152 = vld [vmem:[%s4 + $0x204] sm:$0xf]
  %v153 = vld [vmem:[%s4 + $0x208] sm:$0xff]
  %v154 = vld [vmem:[%s4 + $0x210] sm:$0xff]
  %v155 = vld [vmem:[%s4 + $0x218] sm:$0xf]
  %v156 = vld [vmem:[%s4 + $0x21c] sm:$0xff]
  %v157 = vld [vmem:[%s4 + $0x224] sm:$0xff]
  %v158 = vld [vmem:[%s4 + $0x22c] sm:$0xf]
  %v159 = vld [vmem:[%s4 + $0x230] sm:$0xff]
  %v160 = vld [vmem:[%s4 + $0x238] sm:$0xff]
  %v161 = vld [vmem:[%s4 + $0x240] sm:$0xf]
  %v162 = vld [vmem:[%s4 + $0x244] sm:$0xff]
  %v163 = vld [vmem:[%s4 + $0x24c] sm:$0xff]
  %v164 = vld [vmem:[%s4 + $0x254] sm:$0xf]
  %v165 = vld [vmem:[%s4 + $0x258] sm:$0xff]
  %v166 = vld [vmem:[%s4 + $0x260] sm:$0xff]
  %v167 = vld [vmem:[%s4 + $0x268] sm:$0xf]
  %v168 = vld [vmem:[%s4 + $0x26c] sm:$0xff]
  %v169 = vld [vmem:[%s4 + $0x274] sm:$0xff]
  %v170 = vld [vmem:[%s4 + $0x27c] sm:$0xf]
  %172 = vst [vmem:[#allocation1] ss:$2 sm:$0xff] %v74
  %v173 = vld.sshfl [vmem:[#allocation1] sm:$0xff pattern:$0x75316420]
  %v174 = vld.sshfl [vmem:[#allocation1 + $0x8] sm:$0xff pattern:$0x75316420]
  %v177 = vpack.c.bf16 %v173, %v173
  %v178 = vpack.c.bf16 %v174, %v174
  %v179 = vld [vmem:[%s5] sm:$0x1f]
  %v181 = vperm.slane %v179, 0
  %v182 = vperm.slane %v179, 1
  %v183 = vperm.slane %v179, 2
  %v184 = vperm.slane %v179, 3
  %v185 = vperm.slane %v179, 4
  %v287 = vunpack.c.l.b16 %v75
  %v288 = vunpack.c.h.b16 %v75
  %v289 = vunpack.c.l.b16 %v76
  %v290 = vunpack.c.h.b16 %v76
  %v291 = vunpack.c.l.b16 %v77
  %v292 = vunpack.c.l.b16 %v78
  %v293 = vunpack.c.h.b16 %v78
  %v294 = vunpack.c.l.b16 %v79
  %v295 = vunpack.c.h.b16 %v79
  %v296 = vunpack.c.l.b16 %v80
  %v297 = vunpack.c.l.b16 %v81
  %v298 = vunpack.c.h.b16 %v81
  %v299 = vunpack.c.l.b16 %v82
  %v300 = vunpack.c.h.b16 %v82
  %v301 = vunpack.c.l.b16 %v83
  %v302 = vunpack.c.l.b16 %v84
  %v303 = vunpack.c.h.b16 %v84
  %v304 = vunpack.c.l.b16 %v85
  %v305 = vunpack.c.h.b16 %v85
  %v306 = vunpack.c.l.b16 %v86
  %v307 = vunpack.c.l.b16 %v87
  %v308 = vunpack.c.h.b16 %v87
  %v309 = vunpack.c.l.b16 %v88
  %v310 = vunpack.c.h.b16 %v88
  %v311 = vunpack.c.l.b16 %v89
  %v312 = vunpack.c.l.b16 %v90
  %v313 = vunpack.c.h.b16 %v90
  %v314 = vunpack.c.l.b16 %v91
  %v315 = vunpack.c.h.b16 %v91
  %v316 = vunpack.c.l.b16 %v92
  %v317 = vunpack.c.l.b16 %v93
  %v318 = vunpack.c.h.b16 %v93
  %v319 = vunpack.c.l.b16 %v94
  %v320 = vunpack.c.h.b16 %v94
  %v321 = vunpack.c.l.b16 %v95
  %v322 = vunpack.c.l.b16 %v96
  %v323 = vunpack.c.h.b16 %v96
  %v324 = vunpack.c.l.b16 %v97
  %v325 = vunpack.c.h.b16 %v97
  %v326 = vunpack.c.l.b16 %v98
  %v327 = vunpack.c.l.b16 %v99
  %v328 = vunpack.c.h.b16 %v99
  %v329 = vunpack.c.l.b16 %v100
  %v330 = vunpack.c.h.b16 %v100
  %v331 = vunpack.c.l.b16 %v101
  %v332 = vunpack.c.l.b16 %v102
  %v333 = vunpack.c.h.b16 %v102
  %v334 = vunpack.c.l.b16 %v103
  %v335 = vunpack.c.h.b16 %v103
  %v336 = vunpack.c.l.b16 %v104
  %v337 = vunpack.c.l.b16 %v105
  %v338 = vunpack.c.h.b16 %v105
  %v339 = vunpack.c.l.b16 %v106
  %v340 = vunpack.c.h.b16 %v106
  %v341 = vunpack.c.l.b16 %v107
  %v342 = vunpack.c.l.b16 %v108
  %v343 = vunpack.c.h.b16 %v108
  %v344 = vunpack.c.l.b16 %v109
  %v345 = vunpack.c.h.b16 %v109
  %v346 = vunpack.c.l.b16 %v110
  %v347 = vunpack.c.l.b16 %v111
  %v348 = vunpack.c.h.b16 %v111
  %v349 = vunpack.c.l.b16 %v112
  %v350 = vunpack.c.h.b16 %v112
  %v351 = vunpack.c.l.b16 %v113
  %v352 = vunpack.c.l.b16 %v114
  %v353 = vunpack.c.h.b16 %v114
  %v354 = vunpack.c.l.b16 %v115
  %v355 = vunpack.c.h.b16 %v115
  %v356 = vunpack.c.l.b16 %v116
  %v357 = vunpack.c.l.b16 %v117
  %v358 = vunpack.c.h.b16 %v117
  %v359 = vunpack.c.l.b16 %v118
  %v360 = vunpack.c.h.b16 %v118
  %v361 = vunpack.c.l.b16 %v119
  %v362 = vunpack.c.l.b16 %v120
  %v363 = vunpack.c.h.b16 %v120
  %v364 = vunpack.c.l.b16 %v121
  %v365 = vunpack.c.h.b16 %v121
  %v366 = vunpack.c.l.b16 %v122
  %v367 = vunpack.c.l.b16 %v123
  %v368 = vunpack.c.h.b16 %v123
  %v369 = vunpack.c.l.b16 %v124
  %v370 = vunpack.c.h.b16 %v124
  %v371 = vunpack.c.l.b16 %v125
  %v372 = vunpack.c.l.b16 %v126
  %v373 = vunpack.c.h.b16 %v126
  %v374 = vunpack.c.l.b16 %v127
  %v375 = vunpack.c.h.b16 %v127
  %v376 = vunpack.c.l.b16 %v128
  %v377 = vunpack.c.l.b16 %v129
  %v378 = vunpack.c.h.b16 %v129
  %v379 = vunpack.c.l.b16 %v130
  %v380 = vunpack.c.h.b16 %v130
  %v381 = vunpack.c.l.b16 %v131
  %v382 = vunpack.c.l.b16 %v132
  %v383 = vunpack.c.h.b16 %v132
  %v384 = vunpack.c.l.b16 %v133
  %v385 = vunpack.c.h.b16 %v133
  %v386 = vunpack.c.l.b16 %v134
  %v387 = vunpack.c.l.b16 %v135
  %v388 = vunpack.c.h.b16 %v135
  %v389 = vunpack.c.l.b16 %v136
  %v390 = vunpack.c.h.b16 %v136
  %v391 = vunpack.c.l.b16 %v137
  %v392 = vunpack.c.l.b16 %v138
  %v393 = vunpack.c.h.b16 %v138
  %v394 = vunpack.c.l.b16 %v139
  %v395 = vunpack.c.h.b16 %v139
  %v396 = vunpack.c.l.b16 %v140
  %v397 = vunpack.c.l.b16 %v141
  %v398 = vunpack.c.h.b16 %v141
  %v399 = vunpack.c.l.b16 %v142
  %v400 = vunpack.c.h.b16 %v142
  %v401 = vunpack.c.l.b16 %v143
  %v402 = vunpack.c.l.b16 %v144
  %v403 = vunpack.c.h.b16 %v144
  %v404 = vunpack.c.l.b16 %v145
  %v405 = vunpack.c.h.b16 %v145
  %v406 = vunpack.c.l.b16 %v146
  %v407 = vunpack.c.l.b16 %v147
  %v408 = vunpack.c.h.b16 %v147
  %v409 = vunpack.c.l.b16 %v148
  %v410 = vunpack.c.h.b16 %v148
  %v411 = vunpack.c.l.b16 %v149
  %v412 = vunpack.c.l.b16 %v150
  %v413 = vunpack.c.h.b16 %v150
  %v414 = vunpack.c.l.b16 %v151
  %v415 = vunpack.c.h.b16 %v151
  %v416 = vunpack.c.l.b16 %v152
  %v417 = vunpack.c.l.b16 %v153
  %v418 = vunpack.c.h.b16 %v153
  %v419 = vunpack.c.l.b16 %v154
  %v420 = vunpack.c.h.b16 %v154
  %v421 = vunpack.c.l.b16 %v155
  %v422 = vunpack.c.l.b16 %v156
  %v423 = vunpack.c.h.b16 %v156
  %v424 = vunpack.c.l.b16 %v157
  %v425 = vunpack.c.h.b16 %v157
  %v426 = vunpack.c.l.b16 %v158
  %v427 = vunpack.c.l.b16 %v159
  %v428 = vunpack.c.h.b16 %v159
  %v429 = vunpack.c.l.b16 %v160
  %v430 = vunpack.c.h.b16 %v160
  %v431 = vunpack.c.l.b16 %v161
  %v432 = vunpack.c.l.b16 %v162
  %v433 = vunpack.c.h.b16 %v162
  %v434 = vunpack.c.l.b16 %v163
  %v435 = vunpack.c.h.b16 %v163
  %v436 = vunpack.c.l.b16 %v164
  %v437 = vunpack.c.l.b16 %v165
  %v438 = vunpack.c.h.b16 %v165
  %v439 = vunpack.c.l.b16 %v166
  %v440 = vunpack.c.h.b16 %v166
  %v441 = vunpack.c.l.b16 %v167
  %v442 = vunpack.c.l.b16 %v168
  %v443 = vunpack.c.h.b16 %v168
  %v444 = vunpack.c.l.b16 %v169
  %v445 = vunpack.c.h.b16 %v169
  %v446 = vunpack.c.l.b16 %v170
  %v447 = vpack.c.b16 %v292, %v287
  %v448 = vpack.c.b16 %v293, %v288
  %v449 = vpack.c.b16 %v294, %v289
  %v450 = vpack.c.b16 %v295, %v290
  %v451 = vpack.c.b16 %v296, %v291
  %v452 = vpack.c.b16 %v302, %v297
  %v453 = vpack.c.b16 %v303, %v298
  %v454 = vpack.c.b16 %v304, %v299
  %v455 = vpack.c.b16 %v305, %v300
  %v456 = vpack.c.b16 %v306, %v301
  %v457 = vpack.c.b16 %v312, %v307
  %v458 = vpack.c.b16 %v313, %v308
  %v459 = vpack.c.b16 %v314, %v309
  %v460 = vpack.c.b16 %v315, %v310
  %v461 = vpack.c.b16 %v316, %v311
  %v462 = vpack.c.b16 %v322, %v317
  %v463 = vpack.c.b16 %v323, %v318
  %v464 = vpack.c.b16 %v324, %v319
  %v465 = vpack.c.b16 %v325, %v320
  %v466 = vpack.c.b16 %v326, %v321
  %v467 = vpack.c.b16 %v332, %v327
  %v468 = vpack.c.b16 %v333, %v328
  %v469 = vpack.c.b16 %v334, %v329
  %v470 = vpack.c.b16 %v335, %v330
  %v471 = vpack.c.b16 %v336, %v331
  %v472 = vpack.c.b16 %v342, %v337
  %v473 = vpack.c.b16 %v343, %v338
  %v474 = vpack.c.b16 %v344, %v339
  %v475 = vpack.c.b16 %v345, %v340
  %v476 = vpack.c.b16 %v346, %v341
  %v477 = vpack.c.b16 %v352, %v347
  %v478 = vpack.c.b16 %v353, %v348
  %v479 = vpack.c.b16 %v354, %v349
  %v480 = vpack.c.b16 %v355, %v350
  %v481 = vpack.c.b16 %v356, %v351
  %v482 = vpack.c.b16 %v362, %v357
  %v483 = vpack.c.b16 %v363, %v358
  %v484 = vpack.c.b16 %v364, %v359
  %v485 = vpack.c.b16 %v365, %v360
  %v486 = vpack.c.b16 %v366, %v361
  %v487 = vpack.c.b16 %v372, %v367
  %v488 = vpack.c.b16 %v373, %v368
  %v489 = vpack.c.b16 %v374, %v369
  %v490 = vpack.c.b16 %v375, %v370
  %v491 = vpack.c.b16 %v376, %v371
  %v492 = vpack.c.b16 %v382, %v377
  %v493 = vpack.c.b16 %v383, %v378
  %v494 = vpack.c.b16 %v384, %v379
  %v495 = vpack.c.b16 %v385, %v380
  %v496 = vpack.c.b16 %v386, %v381
  %v497 = vpack.c.b16 %v392, %v387
  %v498 = vpack.c.b16 %v393, %v388
  %v499 = vpack.c.b16 %v394, %v389
  %v500 = vpack.c.b16 %v395, %v390
  %v501 = vpack.c.b16 %v396, %v391
  %v502 = vpack.c.b16 %v402, %v397
  %v503 = vpack.c.b16 %v403, %v398
  %v504 = vpack.c.b16 %v404, %v399
  %v505 = vpack.c.b16 %v405, %v400
  %v506 = vpack.c.b16 %v406, %v401
  %v507 = vpack.c.b16 %v412, %v407
  %v508 = vpack.c.b16 %v413, %v408
  %v509 = vpack.c.b16 %v414, %v409
  %v510 = vpack.c.b16 %v415, %v410
  %v511 = vpack.c.b16 %v416, %v411
  %v512 = vpack.c.b16 %v422, %v417
  %v513 = vpack.c.b16 %v423, %v418
  %v514 = vpack.c.b16 %v424, %v419
  %v515 = vpack.c.b16 %v425, %v420
  %v516 = vpack.c.b16 %v426, %v421
  %v517 = vpack.c.b16 %v432, %v427
  %v518 = vpack.c.b16 %v433, %v428
  %v519 = vpack.c.b16 %v434, %v429
  %v520 = vpack.c.b16 %v435, %v430
  %v521 = vpack.c.b16 %v436, %v431
  %v522 = vpack.c.b16 %v442, %v437
  %v523 = vpack.c.b16 %v443, %v438
  %v524 = vpack.c.b16 %v444, %v439
  %v525 = vpack.c.b16 %v445, %v440
  %v526 = vpack.c.b16 %v446, %v441
  %607 = vmatpush.bf16.msra.mxu0 %v482
  %608 = vmatpush.bf16.msra.mxu0 %v477
  %609 = vmatpush.bf16.msra.mxu0 %v472
  %610 = vmatpush.bf16.msra.mxu0 %v467
  %611 = vmatpush.bf16.msra.mxu0 %v462
  %612 = vmatpush.bf16.msra.mxu0 %v457
  %613 = vmatpush.bf16.msra.mxu0 %v452
  %614 = vmatpush.bf16.msra.mxu0 %v447
  %615 = vmatmul.bf16.gmra.mxu0 %v177
  %v616 = vpop.f32.mrf.mxu0
  %v617 = vadd.f32 %v181, %v616
  %v618 = vpop.f32.mrf.mxu0
  %619 = vdwg.mxu0
  %620 = vmatpush.bf16.msra.mxu0 %v522
  %621 = vmatpush.bf16.msra.mxu0 %v517
  %622 = vmatpush.bf16.msra.mxu0 %v512
  %623 = vmatpush.bf16.msra.mxu0 %v507
  %624 = vmatpush.bf16.msra.mxu0 %v502
  %625 = vmatpush.bf16.msra.mxu0 %v497
  %626 = vmatpush.bf16.msra.mxu0 %v492
  %627 = vmatpush.bf16.msra.mxu0 %v487
  %628 = vmatmul.bf16.gmra.mxu0 %v178
  %v629 = vpop.f32.mrf.mxu0
  %v630 = vadd.f32 %v617, %v629
  %v631 = vpop.f32.mrf.mxu0
  %632 = vdwg.mxu0
  %633 = vmatpush.bf16.msra.mxu0 %v483
  %634 = vmatpush.bf16.msra.mxu0 %v478
  %635 = vmatpush.bf16.msra.mxu0 %v473
  %636 = vmatpush.bf16.msra.mxu0 %v468
  %637 = vmatpush.bf16.msra.mxu0 %v463
  %638 = vmatpush.bf16.msra.mxu0 %v458
  %639 = vmatpush.bf16.msra.mxu0 %v453
  %640 = vmatpush.bf16.msra.mxu0 %v448
  %641 = vmatmul.bf16.gmra.mxu0 %v177
  %v642 = vpop.f32.mrf.mxu0
  %v643 = vadd.f32 %v182, %v642
  %v644 = vpop.f32.mrf.mxu0
  %645 = vdwg.mxu0
  %646 = vmatpush.bf16.msra.mxu0 %v523
  %647 = vmatpush.bf16.msra.mxu0 %v518
  %648 = vmatpush.bf16.msra.mxu0 %v513
  %649 = vmatpush.bf16.msra.mxu0 %v508
  %650 = vmatpush.bf16.msra.mxu0 %v503
  %651 = vmatpush.bf16.msra.mxu0 %v498
  %652 = vmatpush.bf16.msra.mxu0 %v493
  %653 = vmatpush.bf16.msra.mxu0 %v488
  %654 = vmatmul.bf16.gmra.mxu0 %v178
  %v655 = vpop.f32.mrf.mxu0
  %v656 = vadd.f32 %v643, %v655
  %v657 = vpop.f32.mrf.mxu0
  %658 = vdwg.mxu0
  %659 = vmatpush.bf16.msra.mxu0 %v484
  %660 = vmatpush.bf16.msra.mxu0 %v479
  %661 = vmatpush.bf16.msra.mxu0 %v474
  %662 = vmatpush.bf16.msra.mxu0 %v469
  %663 = vmatpush.bf16.msra.mxu0 %v464
  %664 = vmatpush.bf16.msra.mxu0 %v459
  %665 = vmatpush.bf16.msra.mxu0 %v454
  %666 = vmatpush.bf16.msra.mxu0 %v449
  %667 = vmatmul.bf16.gmra.mxu0 %v177
  %v668 = vpop.f32.mrf.mxu0
  %v669 = vadd.f32 %v183, %v668
  %v670 = vpop.f32.mrf.mxu0
  %671 = vdwg.mxu0
  %672 = vmatpush.bf16.msra.mxu0 %v524
  %673 = vmatpush.bf16.msra.mxu0 %v519
  %674 = vmatpush.bf16.msra.mxu0 %v514
  %675 = vmatpush.bf16.msra.mxu0 %v509
  %676 = vmatpush.bf16.msra.mxu0 %v504
  %677 = vmatpush.bf16.msra.mxu0 %v499
  %678 = vmatpush.bf16.msra.mxu0 %v494
  %679 = vmatpush.bf16.msra.mxu0 %v489
  %680 = vmatmul.bf16.gmra.mxu0 %v178
  %v681 = vpop.f32.mrf.mxu0
  %v682 = vadd.f32 %v669, %v681
  %v683 = vpop.f32.mrf.mxu0
  %684 = vdwg.mxu0
  %685 = vmatpush.bf16.msra.mxu0 %v485
  %686 = vmatpush.bf16.msra.mxu0 %v480
  %687 = vmatpush.bf16.msra.mxu0 %v475
  %688 = vmatpush.bf16.msra.mxu0 %v470
  %689 = vmatpush.bf16.msra.mxu0 %v465
  %690 = vmatpush.bf16.msra.mxu0 %v460
  %691 = vmatpush.bf16.msra.mxu0 %v455
  %692 = vmatpush.bf16.msra.mxu0 %v450
  %693 = vmatmul.bf16.gmra.mxu0 %v177
  %v694 = vpop.f32.mrf.mxu0
  %v695 = vadd.f32 %v184, %v694
  %v696 = vpop.f32.mrf.mxu0
  %697 = vdwg.mxu0
  %698 = vmatpush.bf16.msra.mxu0 %v525
  %699 = vmatpush.bf16.msra.mxu0 %v520
  %700 = vmatpush.bf16.msra.mxu0 %v515
  %701 = vmatpush.bf16.msra.mxu0 %v510
  %702 = vmatpush.bf16.msra.mxu0 %v505
  %703 = vmatpush.bf16.msra.mxu0 %v500
  %704 = vmatpush.bf16.msra.mxu0 %v495
  %705 = vmatpush.bf16.msra.mxu0 %v490
  %706 = vmatmul.bf16.gmra.mxu0 %v178
  %v707 = vpop.f32.mrf.mxu0
  %v708 = vadd.f32 %v695, %v707
  %v709 = vpop.f32.mrf.mxu0
  %710 = vdwg.mxu0
  %711 = vmatpush.bf16.msra.mxu0 %v486
  %712 = vmatpush.bf16.msra.mxu0 %v481
  %713 = vmatpush.bf16.msra.mxu0 %v476
  %714 = vmatpush.bf16.msra.mxu0 %v471
  %715 = vmatpush.bf16.msra.mxu0 %v466
  %716 = vmatpush.bf16.msra.mxu0 %v461
  %717 = vmatpush.bf16.msra.mxu0 %v456
  %718 = vmatpush.bf16.msra.mxu0 %v451
  %719 = vmatmul.bf16.gmra.mxu0 %v177
  %v720 = vpop.f32.mrf.mxu0
  %v721 = vadd.f32 %v185, %v720
  %v722 = vpop.f32.mrf.mxu0
  %723 = vdwg.mxu0
  %724 = vmatpush.bf16.msra.mxu0 %v526
  %725 = vmatpush.bf16.msra.mxu0 %v521
  %726 = vmatpush.bf16.msra.mxu0 %v516
  %727 = vmatpush.bf16.msra.mxu0 %v511
  %728 = vmatpush.bf16.msra.mxu0 %v506
  %729 = vmatpush.bf16.msra.mxu0 %v501
  %730 = vmatpush.bf16.msra.mxu0 %v496
  %731 = vmatpush.bf16.msra.mxu0 %v491
  %732 = vmatmul.bf16.gmra.mxu0 %v178
  %v733 = vpop.f32.mrf.mxu0
  %v734 = vadd.f32 %v721, %v733
  %v735 = vpop.f32.mrf.mxu0
  %736 = vdwg.mxu0
  %v737 = vmax.f32 %v630, 0.0
  %v738 = vmax.f32 %v656, 0.0
  %v739 = vmax.f32 %v682, 0.0
  %v740 = vmax.f32 %v708, 0.0
  %v741 = vmax.f32 %v734, 0.0
  %v742 = vld [vmem:[%s6] sm:$0xf]
  %v743 = vld [vmem:[%s6 + $0x4] sm:$0xf]
  %v744 = vld [vmem:[%s6 + $0x8] sm:$0xf]
  %v745 = vld [vmem:[%s6 + $0xc] sm:$0xf]
  %v746 = vld [vmem:[%s6 + $0x10] sm:$0xf]
  %v747 = vld [vmem:[%s6 + $0x14] sm:$0xf]
  %v748 = vld [vmem:[%s6 + $0x18] sm:$0xf]
  %v749 = vld [vmem:[%s6 + $0x1c] sm:$0xf]
  %v750 = vld [vmem:[%s6 + $0x20] sm:$0xf]
  %v751 = vld [vmem:[%s6 + $0x24] sm:$0xf]
  %v752 = vld [vmem:[%s6 + $0x28] sm:$0xf]
  %v753 = vld [vmem:[%s6 + $0x2c] sm:$0xf]
  %v754 = vld [vmem:[%s6 + $0x30] sm:$0xf]
  %v755 = vld [vmem:[%s6 + $0x34] sm:$0xf]
  %v756 = vld [vmem:[%s6 + $0x38] sm:$0xf]
  %v757 = vld [vmem:[%s6 + $0x3c] sm:$0xf]
  %v758 = vld [vmem:[%s6 + $0x40] sm:$0xf]
  %v759 = vld [vmem:[%s6 + $0x44] sm:$0xf]
  %v760 = vld [vmem:[%s6 + $0x48] sm:$0xf]
  %v761 = vld [vmem:[%s6 + $0x4c] sm:$0xf]
  %v762 = vld [vmem:[%s6 + $0x50] sm:$0xf]
  %v763 = vld [vmem:[%s6 + $0x54] sm:$0xf]
  %v764 = vld [vmem:[%s6 + $0x58] sm:$0xf]
  %v765 = vld [vmem:[%s6 + $0x5c] sm:$0xf]
  %v766 = vld [vmem:[%s6 + $0x60] sm:$0xf]
  %v767 = vld [vmem:[%s6 + $0x64] sm:$0xf]
  %v768 = vld [vmem:[%s6 + $0x68] sm:$0xf]
  %v769 = vld [vmem:[%s6 + $0x6c] sm:$0xf]
  %v770 = vld [vmem:[%s6 + $0x70] sm:$0xf]
  %v771 = vld [vmem:[%s6 + $0x74] sm:$0xf]
  %v772 = vld [vmem:[%s6 + $0x78] sm:$0xf]
  %v773 = vld [vmem:[%s6 + $0x7c] sm:$0xf]
  %v774 = vld [vmem:[%s6 + $0x80] sm:$0xf]
  %v775 = vld [vmem:[%s6 + $0x84] sm:$0xf]
  %v776 = vld [vmem:[%s6 + $0x88] sm:$0xf]
  %v777 = vld [vmem:[%s6 + $0x8c] sm:$0xf]
  %v778 = vld [vmem:[%s6 + $0x90] sm:$0xf]
  %v779 = vld [vmem:[%s6 + $0x94] sm:$0xf]
  %v780 = vld [vmem:[%s6 + $0x98] sm:$0xf]
  %v781 = vld [vmem:[%s6 + $0x9c] sm:$0xf]
  %v782 = vld [vmem:[%s6 + $0xa0] sm:$0xf]
  %v783 = vld [vmem:[%s6 + $0xa4] sm:$0xf]
  %v784 = vld [vmem:[%s6 + $0xa8] sm:$0xf]
  %v785 = vld [vmem:[%s6 + $0xac] sm:$0xf]
  %v786 = vld [vmem:[%s6 + $0xb0] sm:$0xf]
  %v787 = vld [vmem:[%s6 + $0xb4] sm:$0xf]
  %v788 = vld [vmem:[%s6 + $0xb8] sm:$0xf]
  %v789 = vld [vmem:[%s6 + $0xbc] sm:$0xf]
  %v790 = vld [vmem:[%s6 + $0xc0] sm:$0xf]
  %v791 = vld [vmem:[%s6 + $0xc4] sm:$0xf]
  %v792 = vld [vmem:[%s6 + $0xc8] sm:$0xf]
  %v793 = vld [vmem:[%s6 + $0xcc] sm:$0xf]
  %v794 = vld [vmem:[%s6 + $0xd0] sm:$0xf]
  %v795 = vld [vmem:[%s6 + $0xd4] sm:$0xf]
  %v796 = vld [vmem:[%s6 + $0xd8] sm:$0xf]
  %v797 = vld [vmem:[%s6 + $0xdc] sm:$0xf]
  %v798 = vld [vmem:[%s6 + $0xe0] sm:$0xf]
  %v799 = vld [vmem:[%s6 + $0xe4] sm:$0xf]
  %v800 = vld [vmem:[%s6 + $0xe8] sm:$0xf]
  %v801 = vld [vmem:[%s6 + $0xec] sm:$0xf]
  %v802 = vld [vmem:[%s6 + $0xf0] sm:$0xf]
  %v803 = vld [vmem:[%s6 + $0xf4] sm:$0xf]
  %v804 = vld [vmem:[%s6 + $0xf8] sm:$0xf]
  %v805 = vld [vmem:[%s6 + $0xfc] sm:$0xf]
  %v806 = vld [vmem:[%s6 + $0x100] sm:$0xf]
  %v807 = vld [vmem:[%s6 + $0x104] sm:$0xf]
  %v808 = vld [vmem:[%s6 + $0x108] sm:$0xf]
  %v809 = vld [vmem:[%s6 + $0x10c] sm:$0xf]
  %v810 = vld [vmem:[%s6 + $0x110] sm:$0xf]
  %v811 = vld [vmem:[%s6 + $0x114] sm:$0xf]
  %v812 = vld [vmem:[%s6 + $0x118] sm:$0xf]
  %v813 = vld [vmem:[%s6 + $0x11c] sm:$0xf]
  %v814 = vpack.c.bf16 %v737, %v737
  %v815 = vpack.c.bf16 %v738, %v738
  %v816 = vpack.c.bf16 %v739, %v739
  %v817 = vpack.c.bf16 %v740, %v740
  %v818 = vpack.c.bf16 %v741, %v741
  %v819 = vld [vmem:[%s7] sm:$0x1]
  %v821 = vperm.slane %v819, 0
  %v895 = vunpack.c.l.b16 %v742
  %v896 = vunpack.c.l.b16 %v743
  %v897 = vunpack.c.l.b16 %v744
  %v898 = vunpack.c.l.b16 %v745
  %v899 = vunpack.c.l.b16 %v746
  %v900 = vunpack.c.l.b16 %v747
  %v901 = vunpack.c.l.b16 %v748
  %v902 = vunpack.c.l.b16 %v749
  %v903 = vunpack.c.l.b16 %v750
  %v904 = vunpack.c.l.b16 %v751
  %v905 = vunpack.c.l.b16 %v752
  %v906 = vunpack.c.l.b16 %v753
  %v907 = vunpack.c.l.b16 %v754
  %v908 = vunpack.c.l.b16 %v755
  %v909 = vunpack.c.l.b16 %v756
  %v910 = vunpack.c.l.b16 %v757
  %v911 = vunpack.c.l.b16 %v758
  %v912 = vunpack.c.l.b16 %v759
  %v913 = vunpack.c.l.b16 %v760
  %v914 = vunpack.c.l.b16 %v761
  %v915 = vunpack.c.l.b16 %v762
  %v916 = vunpack.c.l.b16 %v763
  %v917 = vunpack.c.l.b16 %v764
  %v918 = vunpack.c.l.b16 %v765
  %v919 = vunpack.c.l.b16 %v766
  %v920 = vunpack.c.l.b16 %v767
  %v921 = vunpack.c.l.b16 %v768
  %v922 = vunpack.c.l.b16 %v769
  %v923 = vunpack.c.l.b16 %v770
  %v924 = vunpack.c.l.b16 %v771
  %v925 = vunpack.c.l.b16 %v772
  %v926 = vunpack.c.l.b16 %v773
  %v927 = vunpack.c.l.b16 %v774
  %v928 = vunpack.c.l.b16 %v775
  %v929 = vunpack.c.l.b16 %v776
  %v930 = vunpack.c.l.b16 %v777
  %v931 = vunpack.c.l.b16 %v778
  %v932 = vunpack.c.l.b16 %v779
  %v933 = vunpack.c.l.b16 %v780
  %v934 = vunpack.c.l.b16 %v781
  %v935 = vunpack.c.l.b16 %v782
  %v936 = vunpack.c.l.b16 %v783
  %v937 = vunpack.c.l.b16 %v784
  %v938 = vunpack.c.l.b16 %v785
  %v939 = vunpack.c.l.b16 %v786
  %v940 = vunpack.c.l.b16 %v787
  %v941 = vunpack.c.l.b16 %v788
  %v942 = vunpack.c.l.b16 %v789
  %v943 = vunpack.c.l.b16 %v790
  %v944 = vunpack.c.l.b16 %v791
  %v945 = vunpack.c.l.b16 %v792
  %v946 = vunpack.c.l.b16 %v793
  %v947 = vunpack.c.l.b16 %v794
  %v948 = vunpack.c.l.b16 %v795
  %v949 = vunpack.c.l.b16 %v796
  %v950 = vunpack.c.l.b16 %v797
  %v951 = vunpack.c.l.b16 %v798
  %v952 = vunpack.c.l.b16 %v799
  %v953 = vunpack.c.l.b16 %v800
  %v954 = vunpack.c.l.b16 %v801
  %v955 = vunpack.c.l.b16 %v802
  %v956 = vunpack.c.l.b16 %v803
  %v957 = vunpack.c.l.b16 %v804
  %v958 = vunpack.c.l.b16 %v805
  %v959 = vunpack.c.l.b16 %v806
  %v960 = vunpack.c.l.b16 %v807
  %v961 = vunpack.c.l.b16 %v808
  %v962 = vunpack.c.l.b16 %v809
  %v963 = vunpack.c.l.b16 %v810
  %v964 = vunpack.c.l.b16 %v811
  %v965 = vunpack.c.l.b16 %v812
  %v966 = vunpack.c.l.b16 %v813
  %v967 = vpack.c.b16 %v896, %v895
  %v968 = vpack.c.b16 %v898, %v897
  %v969 = vpack.c.b16 %v900, %v899
  %v970 = vpack.c.b16 %v902, %v901
  %v971 = vpack.c.b16 %v904, %v903
  %v972 = vpack.c.b16 %v906, %v905
  %v973 = vpack.c.b16 %v908, %v907
  %v974 = vpack.c.b16 %v910, %v909
  %v975 = vpack.c.b16 %v912, %v911
  %v976 = vpack.c.b16 %v914, %v913
  %v977 = vpack.c.b16 %v916, %v915
  %v978 = vpack.c.b16 %v918, %v917
  %v979 = vpack.c.b16 %v920, %v919
  %v980 = vpack.c.b16 %v922, %v921
  %v981 = vpack.c.b16 %v924, %v923
  %v982 = vpack.c.b16 %v926, %v925
  %v983 = vpack.c.b16 %v928, %v927
  %v984 = vpack.c.b16 %v930, %v929
  %v985 = vpack.c.b16 %v932, %v931
  %v986 = vpack.c.b16 %v934, %v933
  %v987 = vpack.c.b16 %v936, %v935
  %v988 = vpack.c.b16 %v938, %v937
  %v989 = vpack.c.b16 %v940, %v939
  %v990 = vpack.c.b16 %v942, %v941
  %v991 = vpack.c.b16 %v944, %v943
  %v992 = vpack.c.b16 %v946, %v945
  %v993 = vpack.c.b16 %v948, %v947
  %v994 = vpack.c.b16 %v950, %v949
  %v995 = vpack.c.b16 %v952, %v951
  %v996 = vpack.c.b16 %v954, %v953
  %v997 = vpack.c.b16 %v956, %v955
  %v998 = vpack.c.b16 %v958, %v957
  %v999 = vpack.c.b16 %v960, %v959
  %v1000 = vpack.c.b16 %v962, %v961
  %v1001 = vpack.c.b16 %v964, %v963
  %v1002 = vpack.c.b16 %v966, %v965
  %vm1039 = vcmask 523264
  %v1041 = vsel %vm1039, %v818, 0
  %1043 = vmatpush.bf16.msra.mxu0 %v974
  %1044 = vmatpush.bf16.msra.mxu0 %v973
  %1045 = vmatpush.bf16.msra.mxu0 %v972
  %1046 = vmatpush.bf16.msra.mxu0 %v971
  %1047 = vmatpush.bf16.msra.mxu0 %v970
  %1048 = vmatpush.bf16.msra.mxu0 %v969
  %1049 = vmatpush.bf16.msra.mxu0 %v968
  %1050 = vmatpush.bf16.msra.mxu0 %v967
  %1051 = vmatmul.bf16.gmra.mxu0 %v814
  %v1052 = vpop.f32.mrf.mxu0
  %v1053 = vadd.f32 %v821, %v1052
  %v1054 = vpop.f32.mrf.mxu0
  %1055 = vdwg.mxu0
  %1056 = vmatpush.bf16.msra.mxu0 %v982
  %1057 = vmatpush.bf16.msra.mxu0 %v981
  %1058 = vmatpush.bf16.msra.mxu0 %v980
  %1059 = vmatpush.bf16.msra.mxu0 %v979
  %1060 = vmatpush.bf16.msra.mxu0 %v978
  %1061 = vmatpush.bf16.msra.mxu0 %v977
  %1062 = vmatpush.bf16.msra.mxu0 %v976
  %1063 = vmatpush.bf16.msra.mxu0 %v975
  %1064 = vmatmul.bf16.gmra.mxu0 %v815
  %v1065 = vpop.f32.mrf.mxu0
  %v1066 = vadd.f32 %v1053, %v1065
  %v1067 = vpop.f32.mrf.mxu0
  %1068 = vdwg.mxu0
  %1069 = vmatpush.bf16.msra.mxu0 %v990
  %1070 = vmatpush.bf16.msra.mxu0 %v989
  %1071 = vmatpush.bf16.msra.mxu0 %v988
  %1072 = vmatpush.bf16.msra.mxu0 %v987
  %1073 = vmatpush.bf16.msra.mxu0 %v986
  %1074 = vmatpush.bf16.msra.mxu0 %v985
  %1075 = vmatpush.bf16.msra.mxu0 %v984
  %1076 = vmatpush.bf16.msra.mxu0 %v983
  %1077 = vmatmul.bf16.gmra.mxu0 %v816
  %v1078 = vpop.f32.mrf.mxu0
  %v1079 = vadd.f32 %v1066, %v1078
  %v1080 = vpop.f32.mrf.mxu0
  %1081 = vdwg.mxu0
  %1082 = vmatpush.bf16.msra.mxu0 %v998
  %1083 = vmatpush.bf16.msra.mxu0 %v997
  %1084 = vmatpush.bf16.msra.mxu0 %v996
  %1085 = vmatpush.bf16.msra.mxu0 %v995
  %1086 = vmatpush.bf16.msra.mxu0 %v994
  %1087 = vmatpush.bf16.msra.mxu0 %v993
  %1088 = vmatpush.bf16.msra.mxu0 %v992
  %1089 = vmatpush.bf16.msra.mxu0 %v991
  %1090 = vmatmul.bf16.gmra.mxu0 %v817
  %v1091 = vpop.f32.mrf.mxu0
  %v1092 = vadd.f32 %v1079, %v1091
  %v1093 = vpop.f32.mrf.mxu0
  %1094 = vdwg.mxu0
  %1095 = vmatpush.bf16.msra.mxu0 0
  %1096 = vmatpush.bf16.msra.mxu0 0
  %1097 = vmatpush.bf16.msra.mxu0 0
  %1098 = vmatpush.bf16.msra.mxu0 0
  %1099 = vmatpush.bf16.msra.mxu0 %v1002
  %1100 = vmatpush.bf16.msra.mxu0 %v1001
  %1101 = vmatpush.bf16.msra.mxu0 %v1000
  %1102 = vmatpush.bf16.msra.mxu0 %v999
  %1103 = vmatmul.bf16.gmra.mxu0 %v1041
  %v1104 = vpop.f32.mrf.mxu0
  %v1105 = vadd.f32 %v1092, %v1104
  %v1106 = vpop.f32.mrf.mxu0
  %1107 = vdwg.mxu0
  %v1108 = vmax.f32 %v1105, 0.0
  %v1109 = vld [vmem:[%s8] sm:$0xff]
  %v1110 = vld [vmem:[%s8 + $0x8] sm:$0xff]
  %v1111 = vld [vmem:[%s8 + $0x10] sm:$0xff]
  %v1112 = vld [vmem:[%s8 + $0x18] sm:$0xff]
  %v1113 = vld [vmem:[%s8 + $0x20] sm:$0xff]
  %v1114 = vld [vmem:[%s8 + $0x28] sm:$0xff]
  %v1115 = vld [vmem:[%s8 + $0x30] sm:$0xff]
  %v1116 = vld [vmem:[%s8 + $0x38] sm:$0xff]
  %v1117 = vld [vmem:[%s8 + $0x40] sm:$0xff]
  %v1118 = vld [vmem:[%s8 + $0x48] sm:$0xff]
  %v1119 = vld [vmem:[%s8 + $0x50] sm:$0xff]
  %v1120 = vld [vmem:[%s8 + $0x58] sm:$0xff]
  %v1121 = vld [vmem:[%s8 + $0x60] sm:$0xff]
  %v1122 = vld [vmem:[%s8 + $0x68] sm:$0xff]
  %v1123 = vld [vmem:[%s8 + $0x70] sm:$0xff]
  %v1124 = vld [vmem:[%s8 + $0x78] sm:$0xff]
  %v1125 = vld [vmem:[%s9] sm:$0x1]
  %v1127 = vperm.slane %v1125, 0
  %1129 = vmatpush.msra.mxu0 %v1124
  %1130 = vmatpush.msra.mxu0 %v1123
  %1131 = vmatpush.msra.mxu0 %v1122
  %1132 = vmatpush.msra.mxu0 %v1121
  %1133 = vmatpush.msra.mxu0 %v1120
  %1134 = vmatpush.msra.mxu0 %v1119
  %1135 = vmatpush.msra.mxu0 %v1118
  %1136 = vmatpush.msra.mxu0 %v1117
  %1137 = vmatpush.msra.mxu0 %v1116
  %1138 = vmatpush.msra.mxu0 %v1115
  %1139 = vmatpush.msra.mxu0 %v1114
  %1140 = vmatpush.msra.mxu0 %v1113
  %1141 = vmatpush.msra.mxu0 %v1112
  %1142 = vmatpush.msra.mxu0 %v1111
  %1143 = vmatpush.msra.mxu0 %v1110
  %1144 = vmatpush.msra.mxu0 %v1109
  %1145 = vmatmul.f32.gmra.mxu0 %v1108
  %v1146 = vpop.f32.mrf.mxu0
  %v1147 = vadd.f32 %v1127, %v1146
  %1148 = vdwg.mxu0
  %v1149 = vmul.f32 %v1147, 0.5
  %v1150 = vmul.f32 %v1149, 1.442695
  %v1151 = vpow.pop %v1150
  %v1152 = vld [vmem:[%s2] sm:$0xf]
  %1154 = vrot.lane.b32.xlu0 %v1151, 125
  %v1155 = vpop.permute.xlu0 %1154
  %v1157 = vmul.f32 %v1152, %v1155
  %v1158 = vadd.f32 %v1147, %v1157
  %v1159 = vld [vmem:[%s10] sm:$0x7]
  %v1160 = vld [vmem:[%s11] sm:$0x1]
  %v1162 = vperm.slane %v1160, 0
  %vm1164 = vcmask 23552
  %v1166 = vsel %vm1164, %v1158, 0
  %vm1168 = vcmask 1042432
  %v1170 = vsel %vm1168, %v1159, 0
  %1172 = vmatpush.msra.mxu0 0.0
  %1173 = vmatpush.msra.mxu0 0.0
  %1174 = vmatpush.msra.mxu0 0.0
  %1175 = vmatpush.msra.mxu0 0.0
  %1176 = vmatpush.msra.mxu0 0.0
  %1177 = vmatpush.msra.mxu0 0.0
  %1178 = vmatpush.msra.mxu0 0.0
  %1179 = vmatpush.msra.mxu0 0.0
  %1180 = vmatpush.msra.mxu0 0.0
  %1181 = vmatpush.msra.mxu0 0.0
  %1182 = vmatpush.msra.mxu0 0.0
  %1183 = vmatpush.msra.mxu0 0.0
  %1184 = vmatpush.msra.mxu0 0.0
  %1185 = vmatpush.msra.mxu0 0.0
  %1186 = vmatpush.msra.mxu0 0.0
  %1187 = vmatpush.msra.mxu0 %v1170
  %1188 = vmatmul.f32.gmra.mxu0 %v1166
  %v1189 = vpop.f32.mrf.mxu0
  %v1190 = vadd.f32 %v1162, %v1189
  %1191 = vdwg.mxu0
  %v1192 = vmax.f32 %v1190, 0.0
  %v1193 = vld [vmem:[%s12] sm:$0xff]
  %v1194 = vld [vmem:[%s12 + $0x8] sm:$0xff]
  %v1195 = vld [vmem:[%s12 + $0x10] sm:$0xff]
  %v1196 = vld [vmem:[%s12 + $0x18] sm:$0xff]
  %v1197 = vld [vmem:[%s13] sm:$0x1]
  %v1199 = vperm.slane %v1197, 0
  %vm1201 = vcmask 261120
  %v1203 = vsel %vm1201, %v1192, 0
  %1205 = vmatpush.msra.mxu0 0.0
  %1206 = vmatpush.msra.mxu0 0.0
  %1207 = vmatpush.msra.mxu0 0.0
  %1208 = vmatpush.msra.mxu0 0.0
  %1209 = vmatpush.msra.mxu0 0.0
  %1210 = vmatpush.msra.mxu0 0.0
  %1211 = vmatpush.msra.mxu0 0.0
  %1212 = vmatpush.msra.mxu0 0.0
  %1213 = vmatpush.msra.mxu0 0.0
  %1214 = vmatpush.msra.mxu0 0.0
  %1215 = vmatpush.msra.mxu0 0.0
  %1216 = vmatpush.msra.mxu0 0.0
  %1217 = vmatpush.msra.mxu0 %v1196
  %1218 = vmatpush.msra.mxu0 %v1195
  %1219 = vmatpush.msra.mxu0 %v1194
  %1220 = vmatpush.msra.mxu0 %v1193
  %1221 = vmatmul.f32.gmra.mxu0 %v1203
  %v1222 = vpop.f32.mrf.mxu0
  %v1223 = vadd.f32 %v1199, %v1222
  %1224 = vdwg.mxu0
  %v1225 = vmax.f32 %v1223, 0.0
  %v1226 = vld [vmem:[%s14] sm:$0xff]
  %v1227 = vld [vmem:[%s14 + $0x8] sm:$0xff]
  %v1228 = vld [vmem:[%s14 + $0x10] sm:$0xff]
  %v1229 = vld [vmem:[%s14 + $0x18] sm:$0xff]
  %v1230 = vld [vmem:[%s14 + $0x20] sm:$0xff]
  %v1231 = vld [vmem:[%s14 + $0x28] sm:$0xff]
  %v1232 = vld [vmem:[%s14 + $0x30] sm:$0xff]
  %v1233 = vld [vmem:[%s14 + $0x38] sm:$0xff]
  %v1234 = vld [vmem:[%s15] sm:$0x1]
  %v1236 = vperm.slane %v1234, 0
  %v1239 = vsel %vm1039, %v1225, 0
  %1241 = vmatpush.msra.mxu0 0.0
  %1242 = vmatpush.msra.mxu0 0.0
  %1243 = vmatpush.msra.mxu0 0.0
  %1244 = vmatpush.msra.mxu0 0.0
  %1245 = vmatpush.msra.mxu0 0.0
  %1246 = vmatpush.msra.mxu0 0.0
  %1247 = vmatpush.msra.mxu0 0.0
  %1248 = vmatpush.msra.mxu0 0.0
  %1249 = vmatpush.msra.mxu0 %v1233
  %1250 = vmatpush.msra.mxu0 %v1232
  %1251 = vmatpush.msra.mxu0 %v1231
  %1252 = vmatpush.msra.mxu0 %v1230
  %1253 = vmatpush.msra.mxu0 %v1229
  %1254 = vmatpush.msra.mxu0 %v1228
  %1255 = vmatpush.msra.mxu0 %v1227
  %1256 = vmatpush.msra.mxu0 %v1226
  %1257 = vmatmul.f32.gmra.mxu0 %v1239
  %v1258 = vpop.f32.mrf.mxu0
  %v1259 = vadd.f32 %v1236, %v1258
  %1260 = vdwg.mxu0
  %v1261 = vmul.f32 %v1259, %v1155
  %v1262 = vmul.f32 %v1261, %v1259
  %vm1263 = vcmask 19456
  %v1264 = vsel %vm1263, %v1262, 0.0
  %1265 = vadd.xlane.f32.xlu0 %v1264
  %v1266 = vpop.xlane.xlu0 %1265
  %1268 = vrot.lane.b32.xlu0 %v1259, 125
  %v1269 = vpop.permute.xlu0 %1268
  %v1271 = vmul.f32 %v1261, %v1269
  %v1272 = vsel %vm1263, %v1271, 0.0
  %1273 = vadd.xlane.f32.xlu0 %v1272
  %v1274 = vpop.xlane.xlu0 %1273
  %1275 = vrot.lane.b32.xlu0 %v1259, 122
  %v1276 = vpop.permute.xlu0 %1275
  %v1278 = vmul.f32 %v1261, %v1276
  %v1279 = vsel %vm1263, %v1278, 0.0
  %1280 = vadd.xlane.f32.xlu0 %v1279
  %v1281 = vpop.xlane.xlu0 %1280
  %v1282 = vmul.f32 %v1259, %v1151
  %v1283 = vmul.f32 %v1282, %v1259
  %1285 = vrot.lane.b32.xlu0 %v1283, 125
  %v1286 = vpop.permute.xlu0 %1285
  %v1288 = vsel %vm1263, %v1286, 0.0
  %1289 = vadd.xlane.f32.xlu0 %v1288
  %v1290 = vpop.xlane.xlu0 %1289
  %v1291 = vmul.f32 %v1282, %v1269
  %1293 = vrot.lane.b32.xlu0 %v1291, 125
  %v1294 = vpop.permute.xlu0 %1293
  %v1296 = vsel %vm1263, %v1294, 0.0
  %1297 = vadd.xlane.f32.xlu0 %v1296
  %v1298 = vpop.xlane.xlu0 %1297
  %1299 = vrot.lane.b32.xlu0 %v1151, 3
  %v1300 = vpop.permute.xlu0 %1299
  %v1302 = vmul.f32 %v1259, %v1300
  %v1303 = vmul.f32 %v1302, %v1259
  %1305 = vrot.lane.b32.xlu0 %v1303, 122
  %v1306 = vpop.permute.xlu0 %1305
  %v1308 = vsel %vm1263, %v1306, 0.0
  %1309 = vadd.xlane.f32.xlu0 %v1308
  %v1310 = vpop.xlane.xlu0 %1309
  %v1311 = vld [vmem:[%s1] sm:$0xf]
  %v1312 = vmul.f32 %v1259, %v1147
  %v1313 = vsel %vm1263, %v1312, 0.0
  %1314 = vadd.xlane.f32.xlu0 %v1313
  %v1315 = vpop.xlane.xlu0 %1314
  %1317 = vrot.lane.b32.xlu0 %v1311, 9
  %v1318 = vpop.permute.xlu0 %1317
  %v1320 = vmul.f32 %v1259, %v1318
  %1322 = vrot.lane.b32.xlu0 %v1320, 119
  %v1323 = vpop.permute.xlu0 %1322
  %vm1325 = vcmask 52224
  %v1326 = vsel %vm1325, %v1323, 0.0
  %1327 = vadd.xlane.f32.xlu0 %v1326
  %v1328 = vpop.xlane.xlu0 %1327
  %v1329 = vadd.f32 %v1315, %v1328
  %v1330 = vadd.f32 %v1329, %v1259
  %1332 = vrot.lane.b32.xlu0 %v1147, 3
  %v1333 = vpop.permute.xlu0 %1332
  %v1335 = vmul.f32 %v1259, %v1333
  %1337 = vrot.lane.b32.xlu0 %v1335, 125
  %v1338 = vpop.permute.xlu0 %1337
  %v1340 = vsel %vm1263, %v1338, 0.0
  %1341 = vadd.xlane.f32.xlu0 %v1340
  %v1342 = vpop.xlane.xlu0 %1341
  %1343 = vrot.lane.b32.xlu0 %v1311, 16
  %v1344 = vpop.permute.xlu0 %1343
  %v1346 = vmul.f32 %v1259, %v1344
  %1348 = vrot.lane.b32.xlu0 %v1346, 112
  %v1349 = vpop.permute.xlu0 %1348
  %v1351 = vsel %vm1325, %v1349, 0.0
  %1352 = vadd.xlane.f32.xlu0 %v1351
  %v1353 = vpop.xlane.xlu0 %1352
  %v1354 = vadd.f32 %v1342, %v1353
  %v1355 = vadd.f32 %v1354, %v1259
  %1356 = vrot.lane.b32.xlu0 %v1147, 6
  %v1357 = vpop.permute.xlu0 %1356
  %v1359 = vmul.f32 %v1259, %v1357
  %1361 = vrot.lane.b32.xlu0 %v1359, 122
  %v1362 = vpop.permute.xlu0 %1361
  %v1364 = vsel %vm1263, %v1362, 0.0
  %1365 = vadd.xlane.f32.xlu0 %v1364
  %v1366 = vpop.xlane.xlu0 %1365
  %1367 = vrot.lane.b32.xlu0 %v1311, 23
  %v1368 = vpop.permute.xlu0 %1367
  %v1370 = vmul.f32 %v1259, %v1368
  %1372 = vrot.lane.b32.xlu0 %v1370, 105
  %v1373 = vpop.permute.xlu0 %1372
  %v1375 = vsel %vm1325, %v1373, 0.0
  %1376 = vadd.xlane.f32.xlu0 %v1375
  %v1377 = vpop.xlane.xlu0 %1376
  %v1378 = vadd.f32 %v1366, %v1377
  %v1379 = vadd.f32 %v1378, %v1259
  %v1380 = vmax.f32 %v1266, 1e-12
  %v1381 = vrsqrt.pop %v1380
  %v1382 = vmul.f32 %v1381, %v1380
  %v1383 = vmul.f32 %v1382, %v1381
  %v1384 = vmul.f32 0.5, %v1383
  %v1385 = vsub.f32 1.5, %v1384
  %v1386 = vmul.f32 %v1381, %v1385
  %v1387 = vmul.f32 %v1380, %v1386
  %vm1388 = vcmp.eq.f32.partialorder %v1380, inf
  %v1389 = vsel %vm1388, %v1380, %v1387
  %vm1390 = vcmp.eq.f32.partialorder %v1380, 0.0
  %v1391 = vand.u32 %v1380, 2147483648
  %v1392 = vsel %vm1390, %v1391, %v1389
  %v1393 = vrcp.pop %v1392
  %v1394 = vmul.f32 %v1392, %v1393
  %v1395 = vsub.f32 1.0, %v1394
  %v1396 = vmul.f32 %v1393, %v1395
  %v1397 = vadd.f32 %v1393, %v1396
  %vm1398 = vweird.f32 %v1392
  %vm1399 = vweird.f32 %v1393
  %vm1400 = vmor %vm1398, %vm1399
  %v1401 = vsel %vm1400, %v1393, %v1397
  %v1402 = vand.u32 2147483647, %v1392
  %vm1403 = vcmp.eq.f32.partialorder %v1402, 8.507059e+37
  %v1404 = vand.u32 %v1392, 2147483648
  %v1405 = vor.u32 1.1754944e-38, %v1404
  %v1406 = vsel %vm1403, %v1405, %v1401
  %v1407 = vmul.f32 %v1274, %v1406
  %v1408 = vmul.f32 %v1281, %v1406
  %v1409 = vmul.f32 %v1407, %v1407
  %v1410 = vsub.f32 %v1290, %v1409
  %v1411 = vmax.f32 %v1410, 1e-12
  %v1412 = vrsqrt.pop %v1411
  %v1413 = vmul.f32 %v1412, %v1411
  %v1414 = vmul.f32 %v1413, %v1412
  %v1415 = vmul.f32 0.5, %v1414
  %v1416 = vsub.f32 1.5, %v1415
  %v1417 = vmul.f32 %v1412, %v1416
  %v1418 = vmul.f32 %v1411, %v1417
  %vm1419 = vcmp.eq.f32.partialorder %v1411, inf
  %v1420 = vsel %vm1419, %v1411, %v1418
  %vm1421 = vcmp.eq.f32.partialorder %v1411, 0.0
  %v1422 = vand.u32 %v1411, 2147483648
  %v1423 = vsel %vm1421, %v1422, %v1420
  %v1424 = vmul.f32 %v1408, %v1407
  %v1425 = vsub.f32 %v1298, %v1424
  %v1426 = vrcp.pop %v1423
  %v1427 = vmul.f32 %v1423, %v1426
  %v1428 = vsub.f32 1.0, %v1427
  %v1429 = vmul.f32 %v1426, %v1428
  %v1430 = vadd.f32 %v1426, %v1429
  %vm1431 = vweird.f32 %v1423
  %vm1432 = vweird.f32 %v1426
  %vm1433 = vmor %vm1431, %vm1432
  %v1434 = vsel %vm1433, %v1426, %v1430
  %v1435 = vand.u32 2147483647, %v1423
  %vm1436 = vcmp.eq.f32.partialorder %v1435, 8.507059e+37
  %v1437 = vand.u32 %v1423, 2147483648
  %v1438 = vor.u32 1.1754944e-38, %v1437
  %v1439 = vsel %vm1436, %v1438, %v1434
  %v1440 = vmul.f32 %v1425, %v1439
  %v1441 = vmul.f32 %v1408, %v1408
  %v1442 = vsub.f32 %v1310, %v1441
  %v1443 = vmul.f32 %v1440, %v1440
  %v1444 = vsub.f32 %v1442, %v1443
  %v1445 = vmax.f32 %v1444, 1e-12
  %v1446 = vrsqrt.pop %v1445
  %v1447 = vmul.f32 %v1446, %v1445
  %v1448 = vmul.f32 %v1447, %v1446
  %v1449 = vmul.f32 0.5, %v1448
  %v1450 = vsub.f32 1.5, %v1449
  %v1451 = vmul.f32 %v1446, %v1450
  %v1452 = vmul.f32 %v1445, %v1451
  %vm1453 = vcmp.eq.f32.partialorder %v1445, inf
  %v1454 = vsel %vm1453, %v1445, %v1452
  %vm1455 = vcmp.eq.f32.partialorder %v1445, 0.0
  %v1456 = vand.u32 %v1445, 2147483648
  %v1457 = vsel %vm1455, %v1456, %v1454
  %v1458 = vld [vmem:[%s3] sm:$0xf]
  %v1459 = vmul.f32 %v1392, %v1458
  %1461 = vrot.lane.b32.xlu0 %v1459, 30
  %v1462 = vpop.permute.xlu0 %1461
  %v1464 = vadd.f32 %v1330, %v1462
  %v1465 = vmul.f32 %v1407, %v1458
  %1467 = vrot.lane.b32.xlu0 %v1465, 31
  %v1468 = vpop.permute.xlu0 %1467
  %v1470 = vadd.f32 %v1355, %v1468
  %v1471 = vmul.f32 %v1423, %v1458
  %1473 = vrot.lane.b32.xlu0 %v1471, 30
  %v1474 = vpop.permute.xlu0 %1473
  %v1476 = vadd.f32 %v1470, %v1474
  %v1477 = vmul.f32 %v1408, %v1458
  %1479 = vrot.lane.b32.xlu0 %v1477, 32
  %v1480 = vpop.permute.xlu0 %1479
  %v1482 = vadd.f32 %v1379, %v1480
  %v1483 = vmul.f32 %v1440, %v1458
  %1485 = vrot.lane.b32.xlu0 %v1483, 31
  %v1486 = vpop.permute.xlu0 %1485
  %v1488 = vadd.f32 %v1482, %v1486
  %v1489 = vmul.f32 %v1457, %v1458
  %1491 = vrot.lane.b32.xlu0 %v1489, 30
  %v1492 = vpop.permute.xlu0 %1491
  %v1494 = vadd.f32 %v1488, %v1492
  %v1495 = vlaneseq
  %v1496 = vand.u32 %v1495, 127
  %vm1497 = vcmp.eq.s32.totalorder %v1496, 0
  %1499 = vset.pattern.permute.xlu0 30
  %1500 = vperm.xlu0 %1499, %v1464
  %v1501 = vpop.permute.xlu0 %1500
  %v1503 = vsel %vm1497, %v1501, 0.0
  %vm1504 = vcmp.eq.s32.totalorder %v1496, 1
  %1506 = vset.pattern.permute.xlu0 31
  %1507 = vperm.xlu0 %1506, %v1476
  %v1508 = vpop.permute.xlu0 %1507
  %v1510 = vsel %vm1504, %v1508, 0.0
  %v1511 = vadd.f32 %v1503, %v1510
  %vm1512 = vcmp.eq.s32.totalorder %v1496, 2
  %1514 = vset.pattern.permute.xlu0 32
  %1515 = vperm.xlu0 %1514, %v1494
  %v1516 = vpop.permute.xlu0 %1515
  %v1518 = vsel %vm1512, %v1516, 0.0
  %v1519 = vadd.f32 %v1511, %v1518
  %1520 = vset.pattern.permute.xlu0 0
  %1521 = vperm.xlu0 %1520, %v1147
  %v1522 = vpop.permute.xlu0 %1521
  %v1524 = vsel %vm1497, %v1522, 0.0
  %v1525 = vadd.f32 %v1524, 0.0
  %1526 = vset.pattern.permute.xlu0 1
  %1527 = vperm.xlu0 %1526, %v1147
  %v1528 = vpop.permute.xlu0 %1527
  %v1530 = vsel %vm1504, %v1528, 0.0
  %v1531 = vadd.f32 %v1525, %v1530
  %1532 = vset.pattern.permute.xlu0 2
  %1533 = vperm.xlu0 %1532, %v1147
  %v1534 = vpop.permute.xlu0 %1533
  %v1536 = vsel %vm1512, %v1534, 0.0
  %v1537 = vadd.f32 %v1531, %v1536
  %vm1538 = vcmp.eq.s32.totalorder %v1496, 3
  %1539 = vset.pattern.permute.xlu0 3
  %1540 = vperm.xlu0 %1539, %v1147
  %v1541 = vpop.permute.xlu0 %1540
  %v1543 = vsel %vm1538, %v1541, 0.0
  %v1544 = vadd.f32 %v1537, %v1543
  %vm1545 = vcmp.eq.s32.totalorder %v1496, 4
  %1546 = vset.pattern.permute.xlu0 4
  %1547 = vperm.xlu0 %1546, %v1147
  %v1548 = vpop.permute.xlu0 %1547
  %v1550 = vsel %vm1545, %v1548, 0.0
  %v1551 = vadd.f32 %v1544, %v1550
  %vm1552 = vcmp.eq.s32.totalorder %v1496, 5
  %1553 = vset.pattern.permute.xlu0 5
  %1554 = vperm.xlu0 %1553, %v1147
  %v1555 = vpop.permute.xlu0 %1554
  %v1557 = vsel %vm1552, %v1555, 0.0
  %v1558 = vadd.f32 %v1551, %v1557
  %vm1559 = vcmp.eq.s32.totalorder %v1496, 6
  %1561 = vset.pattern.permute.xlu0 30
  %1562 = vperm.xlu0 %1561, %v1330
  %v1563 = vpop.permute.xlu0 %1562
  %v1565 = vsel %vm1559, %v1563, 0.0
  %v1566 = vadd.f32 %v1558, %v1565
  %vm1567 = vcmp.eq.s32.totalorder %v1496, 7
  %1569 = vset.pattern.permute.xlu0 31
  %1570 = vperm.xlu0 %1569, %v1355
  %v1571 = vpop.permute.xlu0 %1570
  %v1573 = vsel %vm1567, %v1571, 0.0
  %v1574 = vadd.f32 %v1566, %v1573
  %vm1575 = vcmp.eq.s32.totalorder %v1496, 8
  %1577 = vset.pattern.permute.xlu0 32
  %1578 = vperm.xlu0 %1577, %v1379
  %v1579 = vpop.permute.xlu0 %1578
  %v1581 = vsel %vm1575, %v1579, 0.0
  %v1582 = vadd.f32 %v1574, %v1581
  %vm1583 = vcmp.eq.s32.totalorder %v1496, 9
  %v1584 = vsel %vm1583, %v1266, 0.0
  %v1585 = vadd.f32 %v1582, %v1584
  %vm1586 = vcmp.eq.s32.totalorder %v1496, 10
  %v1587 = vsel %vm1586, %v1274, 0.0
  %v1588 = vadd.f32 %v1585, %v1587
  %vm1589 = vcmp.eq.s32.totalorder %v1496, 11
  %v1590 = vsel %vm1589, %v1281, 0.0
  %v1591 = vadd.f32 %v1588, %v1590
  %vm1592 = vcmp.eq.s32.totalorder %v1496, 12
  %v1593 = vsel %vm1592, %v1274, 0.0
  %v1594 = vadd.f32 %v1591, %v1593
  %vm1595 = vcmp.eq.s32.totalorder %v1496, 13
  %v1596 = vsel %vm1595, %v1290, 0.0
  %v1597 = vadd.f32 %v1594, %v1596
  %vm1598 = vcmp.eq.s32.totalorder %v1496, 14
  %v1599 = vsel %vm1598, %v1298, 0.0
  %v1600 = vadd.f32 %v1597, %v1599
  %vm1601 = vcmp.eq.s32.totalorder %v1496, 15
  %v1602 = vsel %vm1601, %v1281, 0.0
  %v1603 = vadd.f32 %v1600, %v1602
  %vm1604 = vcmp.eq.s32.totalorder %v1496, 16
  %v1605 = vsel %vm1604, %v1298, 0.0
  %v1606 = vadd.f32 %v1603, %v1605
  %vm1607 = vcmp.eq.s32.totalorder %v1496, 17
  %v1608 = vsel %vm1607, %v1310, 0.0
  %v1609 = vadd.f32 %v1606, %v1608
  %1610 = vst [vmem:[%s23] sm:$0xf] %v1609
  %v1611 = vlaneseq
  %v1612 = vshrl.u32 %v1611, 7
  %vm1613 = vcmp.eq.s32.totalorder %v1612, %v1496
  %vm1614 = vcmp.lt.s32.totalorder %v1612, 2
  %vm1615 = vmand %vm1613, %vm1614
  %v1616 = vsel %vm1615, 1.0, 0.0
  %v1617 = vadd.s32 %v1496, 2
  %vm1618 = vcmp.eq.s32.totalorder %v1612, %v1617
  %v1619 = vsel %vm1618, 1.0, 0.0
  %vm1620 = vcmask 31744
  %v1622 = vsel %vm1620, %v1619, 0
  %vm1624 = vcmask 1043456
  %v1626 = vsel %vm1624, %v1519, 0
  %1628 = vmatpush.msra.mxu0 0.0
  %1629 = vmatpush.msra.mxu0 0.0
  %1630 = vmatpush.msra.mxu0 0.0
  %1631 = vmatpush.msra.mxu0 0.0
  %1632 = vmatpush.msra.mxu0 0.0
  %1633 = vmatpush.msra.mxu0 0.0
  %1634 = vmatpush.msra.mxu0 0.0
  %1635 = vmatpush.msra.mxu0 0.0
  %1636 = vmatpush.msra.mxu0 0.0
  %1637 = vmatpush.msra.mxu0 0.0
  %1638 = vmatpush.msra.mxu0 0.0
  %1639 = vmatpush.msra.mxu0 0.0
  %1640 = vmatpush.msra.mxu0 0.0
  %1641 = vmatpush.msra.mxu0 0.0
  %1642 = vmatpush.msra.mxu0 0.0
  %1643 = vmatpush.msra.mxu0 %v1626
  %1644 = vmatmul.f32.gmra.mxu0 %v1622
  %v1645 = vpop.f32.mrf.mxu0
  %v1646 = vadd.f32 0.0, %v1645
  %1647 = vdwg.mxu0
  %v1649 = vsel %vm1620, %v1616, 0
  %v1651 = vsel %vm1624, %v1158, 0
  %1653 = vmatpush.msra.mxu0 0.0
  %1654 = vmatpush.msra.mxu0 0.0
  %1655 = vmatpush.msra.mxu0 0.0
  %1656 = vmatpush.msra.mxu0 0.0
  %1657 = vmatpush.msra.mxu0 0.0
  %1658 = vmatpush.msra.mxu0 0.0
  %1659 = vmatpush.msra.mxu0 0.0
  %1660 = vmatpush.msra.mxu0 0.0
  %1661 = vmatpush.msra.mxu0 0.0
  %1662 = vmatpush.msra.mxu0 0.0
  %1663 = vmatpush.msra.mxu0 0.0
  %1664 = vmatpush.msra.mxu0 0.0
  %1665 = vmatpush.msra.mxu0 0.0
  %1666 = vmatpush.msra.mxu0 0.0
  %1667 = vmatpush.msra.mxu0 0.0
  %1668 = vmatpush.msra.mxu0 %v1651
  %1669 = vmatmul.f32.gmra.mxu0 %v1649
  %v1670 = vpop.f32.mrf.mxu0
  %v1671 = vadd.f32 %v1646, %v1670
  %1672 = vdwg.mxu0
  %v1673 = vld [vmem:[%s16] sm:$0x7]
  %v1674 = vld [vmem:[%s17] sm:$0x1]
  %v1676 = vperm.slane %v1674, 0
  %v1679 = vsel %vm1164, %v1671, 0
  %v1682 = vsel %vm1168, %v1673, 0
  %1684 = vmatpush.msra.mxu0 0.0
  %1685 = vmatpush.msra.mxu0 0.0
  %1686 = vmatpush.msra.mxu0 0.0
  %1687 = vmatpush.msra.mxu0 0.0
  %1688 = vmatpush.msra.mxu0 0.0
  %1689 = vmatpush.msra.mxu0 0.0
  %1690 = vmatpush.msra.mxu0 0.0
  %1691 = vmatpush.msra.mxu0 0.0
  %1692 = vmatpush.msra.mxu0 0.0
  %1693 = vmatpush.msra.mxu0 0.0
  %1694 = vmatpush.msra.mxu0 0.0
  %1695 = vmatpush.msra.mxu0 0.0
  %1696 = vmatpush.msra.mxu0 0.0
  %1697 = vmatpush.msra.mxu0 0.0
  %1698 = vmatpush.msra.mxu0 0.0
  %1699 = vmatpush.msra.mxu0 %v1682
  %1700 = vmatmul.f32.gmra.mxu0 %v1679
  %v1701 = vpop.f32.mrf.mxu0
  %v1702 = vadd.f32 %v1676, %v1701
  %1703 = vdwg.mxu0
  %v1704 = vmax.f32 %v1702, 0.0
  %v1705 = vld [vmem:[%s18] sm:$0xff]
  %v1706 = vld [vmem:[%s18 + $0x8] sm:$0xff]
  %v1707 = vld [vmem:[%s18 + $0x10] sm:$0xff]
  %v1708 = vld [vmem:[%s18 + $0x18] sm:$0xf]
  %v1709 = vld [vmem:[%s18 + $0x1c] sm:$0xff]
  %v1710 = vld [vmem:[%s18 + $0x24] sm:$0xff]
  %v1711 = vld [vmem:[%s18 + $0x2c] sm:$0xff]
  %v1712 = vld [vmem:[%s18 + $0x34] sm:$0xf]
  %v1713 = vld [vmem:[%s18 + $0x38] sm:$0xff]
  %v1714 = vld [vmem:[%s18 + $0x40] sm:$0xff]
  %v1715 = vld [vmem:[%s18 + $0x48] sm:$0xff]
  %v1716 = vld [vmem:[%s18 + $0x50] sm:$0xf]
  %v1717 = vld [vmem:[%s18 + $0x54] sm:$0xff]
  %v1718 = vld [vmem:[%s18 + $0x5c] sm:$0xff]
  %v1719 = vld [vmem:[%s18 + $0x64] sm:$0xff]
  %v1720 = vld [vmem:[%s18 + $0x6c] sm:$0xf]
  %v1721 = vld [vmem:[%s18 + $0x70] sm:$0xff]
  %v1722 = vld [vmem:[%s18 + $0x78] sm:$0xff]
  %v1723 = vld [vmem:[%s18 + $0x80] sm:$0xff]
  %v1724 = vld [vmem:[%s18 + $0x88] sm:$0xf]
  %v1725 = vld [vmem:[%s18 + $0x8c] sm:$0xff]
  %v1726 = vld [vmem:[%s18 + $0x94] sm:$0xff]
  %v1727 = vld [vmem:[%s18 + $0x9c] sm:$0xff]
  %v1728 = vld [vmem:[%s18 + $0xa4] sm:$0xf]
  %v1729 = vld [vmem:[%s18 + $0xa8] sm:$0xff]
  %v1730 = vld [vmem:[%s18 + $0xb0] sm:$0xff]
  %v1731 = vld [vmem:[%s18 + $0xb8] sm:$0xff]
  %v1732 = vld [vmem:[%s18 + $0xc0] sm:$0xf]
  %v1733 = vld [vmem:[%s18 + $0xc4] sm:$0xff]
  %v1734 = vld [vmem:[%s18 + $0xcc] sm:$0xff]
  %v1735 = vld [vmem:[%s18 + $0xd4] sm:$0xff]
  %v1736 = vld [vmem:[%s18 + $0xdc] sm:$0xf]
  %v1737 = vld [vmem:[%s18 + $0xe0] sm:$0xff]
  %v1738 = vld [vmem:[%s18 + $0xe8] sm:$0xff]
  %v1739 = vld [vmem:[%s18 + $0xf0] sm:$0xff]
  %v1740 = vld [vmem:[%s18 + $0xf8] sm:$0xf]
  %v1741 = vld [vmem:[%s18 + $0xfc] sm:$0xff]
  %v1742 = vld [vmem:[%s18 + $0x104] sm:$0xff]
  %v1743 = vld [vmem:[%s18 + $0x10c] sm:$0xff]
  %v1744 = vld [vmem:[%s18 + $0x114] sm:$0xf]
  %v1745 = vld [vmem:[%s18 + $0x118] sm:$0xff]
  %v1746 = vld [vmem:[%s18 + $0x120] sm:$0xff]
  %v1747 = vld [vmem:[%s18 + $0x128] sm:$0xff]
  %v1748 = vld [vmem:[%s18 + $0x130] sm:$0xf]
  %v1749 = vld [vmem:[%s18 + $0x134] sm:$0xff]
  %v1750 = vld [vmem:[%s18 + $0x13c] sm:$0xff]
  %v1751 = vld [vmem:[%s18 + $0x144] sm:$0xff]
  %v1752 = vld [vmem:[%s18 + $0x14c] sm:$0xf]
  %v1753 = vld [vmem:[%s18 + $0x150] sm:$0xff]
  %v1754 = vld [vmem:[%s18 + $0x158] sm:$0xff]
  %v1755 = vld [vmem:[%s18 + $0x160] sm:$0xff]
  %v1756 = vld [vmem:[%s18 + $0x168] sm:$0xf]
  %v1757 = vld [vmem:[%s18 + $0x16c] sm:$0xff]
  %v1758 = vld [vmem:[%s18 + $0x174] sm:$0xff]
  %v1759 = vld [vmem:[%s18 + $0x17c] sm:$0xff]
  %v1760 = vld [vmem:[%s18 + $0x184] sm:$0xf]
  %v1761 = vld [vmem:[%s18 + $0x188] sm:$0xff]
  %v1762 = vld [vmem:[%s18 + $0x190] sm:$0xff]
  %v1763 = vld [vmem:[%s18 + $0x198] sm:$0xff]
  %v1764 = vld [vmem:[%s18 + $0x1a0] sm:$0xf]
  %v1765 = vld [vmem:[%s18 + $0x1a4] sm:$0xff]
  %v1766 = vld [vmem:[%s18 + $0x1ac] sm:$0xff]
  %v1767 = vld [vmem:[%s18 + $0x1b4] sm:$0xff]
  %v1768 = vld [vmem:[%s18 + $0x1bc] sm:$0xf]
  %v1769 = vpack.c.bf16 %v1704, %v1704
  %v1770 = vld [vmem:[%s19] sm:$0x7f]
  %v1772 = vperm.slane %v1770, 0
  %v1773 = vperm.slane %v1770, 1
  %v1774 = vperm.slane %v1770, 2
  %v1775 = vperm.slane %v1770, 3
  %v1776 = vperm.slane %v1770, 4
  %v1777 = vperm.slane %v1770, 5
  %v1778 = vperm.slane %v1770, 6
  %v1850 = vunpack.c.l.b16 %v1705
  %v1851 = vunpack.c.h.b16 %v1705
  %v1852 = vunpack.c.l.b16 %v1706
  %v1853 = vunpack.c.h.b16 %v1706
  %v1854 = vunpack.c.l.b16 %v1707
  %v1855 = vunpack.c.h.b16 %v1707
  %v1856 = vunpack.c.l.b16 %v1708
  %v1857 = vunpack.c.l.b16 %v1709
  %v1858 = vunpack.c.h.b16 %v1709
  %v1859 = vunpack.c.l.b16 %v1710
  %v1860 = vunpack.c.h.b16 %v1710
  %v1861 = vunpack.c.l.b16 %v1711
  %v1862 = vunpack.c.h.b16 %v1711
  %v1863 = vunpack.c.l.b16 %v1712
  %v1864 = vunpack.c.l.b16 %v1713
  %v1865 = vunpack.c.h.b16 %v1713
  %v1866 = vunpack.c.l.b16 %v1714
  %v1867 = vunpack.c.h.b16 %v1714
  %v1868 = vunpack.c.l.b16 %v1715
  %v1869 = vunpack.c.h.b16 %v1715
  %v1870 = vunpack.c.l.b16 %v1716
  %v1871 = vunpack.c.l.b16 %v1717
  %v1872 = vunpack.c.h.b16 %v1717
  %v1873 = vunpack.c.l.b16 %v1718
  %v1874 = vunpack.c.h.b16 %v1718
  %v1875 = vunpack.c.l.b16 %v1719
  %v1876 = vunpack.c.h.b16 %v1719
  %v1877 = vunpack.c.l.b16 %v1720
  %v1878 = vunpack.c.l.b16 %v1721
  %v1879 = vunpack.c.h.b16 %v1721
  %v1880 = vunpack.c.l.b16 %v1722
  %v1881 = vunpack.c.h.b16 %v1722
  %v1882 = vunpack.c.l.b16 %v1723
  %v1883 = vunpack.c.h.b16 %v1723
  %v1884 = vunpack.c.l.b16 %v1724
  %v1885 = vunpack.c.l.b16 %v1725
  %v1886 = vunpack.c.h.b16 %v1725
  %v1887 = vunpack.c.l.b16 %v1726
  %v1888 = vunpack.c.h.b16 %v1726
  %v1889 = vunpack.c.l.b16 %v1727
  %v1890 = vunpack.c.h.b16 %v1727
  %v1891 = vunpack.c.l.b16 %v1728
  %v1892 = vunpack.c.l.b16 %v1729
  %v1893 = vunpack.c.h.b16 %v1729
  %v1894 = vunpack.c.l.b16 %v1730
  %v1895 = vunpack.c.h.b16 %v1730
  %v1896 = vunpack.c.l.b16 %v1731
  %v1897 = vunpack.c.h.b16 %v1731
  %v1898 = vunpack.c.l.b16 %v1732
  %v1899 = vunpack.c.l.b16 %v1733
  %v1900 = vunpack.c.h.b16 %v1733
  %v1901 = vunpack.c.l.b16 %v1734
  %v1902 = vunpack.c.h.b16 %v1734
  %v1903 = vunpack.c.l.b16 %v1735
  %v1904 = vunpack.c.h.b16 %v1735
  %v1905 = vunpack.c.l.b16 %v1736
  %v1906 = vunpack.c.l.b16 %v1737
  %v1907 = vunpack.c.h.b16 %v1737
  %v1908 = vunpack.c.l.b16 %v1738
  %v1909 = vunpack.c.h.b16 %v1738
  %v1910 = vunpack.c.l.b16 %v1739
  %v1911 = vunpack.c.h.b16 %v1739
  %v1912 = vunpack.c.l.b16 %v1740
  %v1913 = vunpack.c.l.b16 %v1741
  %v1914 = vunpack.c.h.b16 %v1741
  %v1915 = vunpack.c.l.b16 %v1742
  %v1916 = vunpack.c.h.b16 %v1742
  %v1917 = vunpack.c.l.b16 %v1743
  %v1918 = vunpack.c.h.b16 %v1743
  %v1919 = vunpack.c.l.b16 %v1744
  %v1920 = vunpack.c.l.b16 %v1745
  %v1921 = vunpack.c.h.b16 %v1745
  %v1922 = vunpack.c.l.b16 %v1746
  %v1923 = vunpack.c.h.b16 %v1746
  %v1924 = vunpack.c.l.b16 %v1747
  %v1925 = vunpack.c.h.b16 %v1747
  %v1926 = vunpack.c.l.b16 %v1748
  %v1927 = vunpack.c.l.b16 %v1749
  %v1928 = vunpack.c.h.b16 %v1749
  %v1929 = vunpack.c.l.b16 %v1750
  %v1930 = vunpack.c.h.b16 %v1750
  %v1931 = vunpack.c.l.b16 %v1751
  %v1932 = vunpack.c.h.b16 %v1751
  %v1933 = vunpack.c.l.b16 %v1752
  %v1934 = vunpack.c.l.b16 %v1753
  %v1935 = vunpack.c.h.b16 %v1753
  %v1936 = vunpack.c.l.b16 %v1754
  %v1937 = vunpack.c.h.b16 %v1754
  %v1938 = vunpack.c.l.b16 %v1755
  %v1939 = vunpack.c.h.b16 %v1755
  %v1940 = vunpack.c.l.b16 %v1756
  %v1941 = vunpack.c.l.b16 %v1757
  %v1942 = vunpack.c.h.b16 %v1757
  %v1943 = vunpack.c.l.b16 %v1758
  %v1944 = vunpack.c.h.b16 %v1758
  %v1945 = vunpack.c.l.b16 %v1759
  %v1946 = vunpack.c.h.b16 %v1759
  %v1947 = vunpack.c.l.b16 %v1760
  %v1948 = vunpack.c.l.b16 %v1761
  %v1949 = vunpack.c.h.b16 %v1761
  %v1950 = vunpack.c.l.b16 %v1762
  %v1951 = vunpack.c.h.b16 %v1762
  %v1952 = vunpack.c.l.b16 %v1763
  %v1953 = vunpack.c.h.b16 %v1763
  %v1954 = vunpack.c.l.b16 %v1764
  %v1955 = vunpack.c.l.b16 %v1765
  %v1956 = vunpack.c.h.b16 %v1765
  %v1957 = vunpack.c.l.b16 %v1766
  %v1958 = vunpack.c.h.b16 %v1766
  %v1959 = vunpack.c.l.b16 %v1767
  %v1960 = vunpack.c.h.b16 %v1767
  %v1961 = vunpack.c.l.b16 %v1768
  %v1962 = vpack.c.b16 %v1857, %v1850
  %v1963 = vpack.c.b16 %v1858, %v1851
  %v1964 = vpack.c.b16 %v1859, %v1852
  %v1965 = vpack.c.b16 %v1860, %v1853
  %v1966 = vpack.c.b16 %v1861, %v1854
  %v1967 = vpack.c.b16 %v1862, %v1855
  %v1968 = vpack.c.b16 %v1863, %v1856
  %v1969 = vpack.c.b16 %v1871, %v1864
  %v1970 = vpack.c.b16 %v1872, %v1865
  %v1971 = vpack.c.b16 %v1873, %v1866
  %v1972 = vpack.c.b16 %v1874, %v1867
  %v1973 = vpack.c.b16 %v1875, %v1868
  %v1974 = vpack.c.b16 %v1876, %v1869
  %v1975 = vpack.c.b16 %v1877, %v1870
  %v1976 = vpack.c.b16 %v1885, %v1878
  %v1977 = vpack.c.b16 %v1886, %v1879
  %v1978 = vpack.c.b16 %v1887, %v1880
  %v1979 = vpack.c.b16 %v1888, %v1881
  %v1980 = vpack.c.b16 %v1889, %v1882
  %v1981 = vpack.c.b16 %v1890, %v1883
  %v1982 = vpack.c.b16 %v1891, %v1884
  %v1983 = vpack.c.b16 %v1899, %v1892
  %v1984 = vpack.c.b16 %v1900, %v1893
  %v1985 = vpack.c.b16 %v1901, %v1894
  %v1986 = vpack.c.b16 %v1902, %v1895
  %v1987 = vpack.c.b16 %v1903, %v1896
  %v1988 = vpack.c.b16 %v1904, %v1897
  %v1989 = vpack.c.b16 %v1905, %v1898
  %v1990 = vpack.c.b16 %v1913, %v1906
  %v1991 = vpack.c.b16 %v1914, %v1907
  %v1992 = vpack.c.b16 %v1915, %v1908
  %v1993 = vpack.c.b16 %v1916, %v1909
  %v1994 = vpack.c.b16 %v1917, %v1910
  %v1995 = vpack.c.b16 %v1918, %v1911
  %v1996 = vpack.c.b16 %v1919, %v1912
  %v1997 = vpack.c.b16 %v1927, %v1920
  %v1998 = vpack.c.b16 %v1928, %v1921
  %v1999 = vpack.c.b16 %v1929, %v1922
  %v2000 = vpack.c.b16 %v1930, %v1923
  %v2001 = vpack.c.b16 %v1931, %v1924
  %v2002 = vpack.c.b16 %v1932, %v1925
  %v2003 = vpack.c.b16 %v1933, %v1926
  %v2004 = vpack.c.b16 %v1941, %v1934
  %v2005 = vpack.c.b16 %v1942, %v1935
  %v2006 = vpack.c.b16 %v1943, %v1936
  %v2007 = vpack.c.b16 %v1944, %v1937
  %v2008 = vpack.c.b16 %v1945, %v1938
  %v2009 = vpack.c.b16 %v1946, %v1939
  %v2010 = vpack.c.b16 %v1947, %v1940
  %v2011 = vpack.c.b16 %v1955, %v1948
  %v2012 = vpack.c.b16 %v1956, %v1949
  %v2013 = vpack.c.b16 %v1957, %v1950
  %v2014 = vpack.c.b16 %v1958, %v1951
  %v2015 = vpack.c.b16 %v1959, %v1952
  %v2016 = vpack.c.b16 %v1960, %v1953
  %v2017 = vpack.c.b16 %v1961, %v1954
  %2074 = vmatpush.bf16.msra.mxu0 %v2011
  %2075 = vmatpush.bf16.msra.mxu0 %v2004
  %2076 = vmatpush.bf16.msra.mxu0 %v1997
  %2077 = vmatpush.bf16.msra.mxu0 %v1990
  %2078 = vmatpush.bf16.msra.mxu0 %v1983
  %2079 = vmatpush.bf16.msra.mxu0 %v1976
  %2080 = vmatpush.bf16.msra.mxu0 %v1969
  %2081 = vmatpush.bf16.msra.mxu0 %v1962
  %2082 = vmatmul.bf16.gmra.mxu0 %v1769
  %v2083 = vpop.f32.mrf.mxu0
  %v2084 = vadd.f32 %v1772, %v2083
  %v2085 = vpop.f32.mrf.mxu0
  %2086 = vdwg.mxu0
  %2087 = vmatpush.bf16.msra.mxu0 %v2012
  %2088 = vmatpush.bf16.msra.mxu0 %v2005
  %2089 = vmatpush.bf16.msra.mxu0 %v1998
  %2090 = vmatpush.bf16.msra.mxu0 %v1991
  %2091 = vmatpush.bf16.msra.mxu0 %v1984
  %2092 = vmatpush.bf16.msra.mxu0 %v1977
  %2093 = vmatpush.bf16.msra.mxu0 %v1970
  %2094 = vmatpush.bf16.msra.mxu0 %v1963
  %2095 = vmatmul.bf16.gmra.mxu0 %v1769
  %v2096 = vpop.f32.mrf.mxu0
  %v2097 = vadd.f32 %v1773, %v2096
  %v2098 = vpop.f32.mrf.mxu0
  %2099 = vdwg.mxu0
  %2100 = vmatpush.bf16.msra.mxu0 %v2013
  %2101 = vmatpush.bf16.msra.mxu0 %v2006
  %2102 = vmatpush.bf16.msra.mxu0 %v1999
  %2103 = vmatpush.bf16.msra.mxu0 %v1992
  %2104 = vmatpush.bf16.msra.mxu0 %v1985
  %2105 = vmatpush.bf16.msra.mxu0 %v1978
  %2106 = vmatpush.bf16.msra.mxu0 %v1971
  %2107 = vmatpush.bf16.msra.mxu0 %v1964
  %2108 = vmatmul.bf16.gmra.mxu0 %v1769
  %v2109 = vpop.f32.mrf.mxu0
  %v2110 = vadd.f32 %v1774, %v2109
  %v2111 = vpop.f32.mrf.mxu0
  %2112 = vdwg.mxu0
  %2113 = vmatpush.bf16.msra.mxu0 %v2014
  %2114 = vmatpush.bf16.msra.mxu0 %v2007
  %2115 = vmatpush.bf16.msra.mxu0 %v2000
  %2116 = vmatpush.bf16.msra.mxu0 %v1993
  %2117 = vmatpush.bf16.msra.mxu0 %v1986
  %2118 = vmatpush.bf16.msra.mxu0 %v1979
  %2119 = vmatpush.bf16.msra.mxu0 %v1972
  %2120 = vmatpush.bf16.msra.mxu0 %v1965
  %2121 = vmatmul.bf16.gmra.mxu0 %v1769
  %v2122 = vpop.f32.mrf.mxu0
  %v2123 = vadd.f32 %v1775, %v2122
  %v2124 = vpop.f32.mrf.mxu0
  %2125 = vdwg.mxu0
  %2126 = vmatpush.bf16.msra.mxu0 %v2015
  %2127 = vmatpush.bf16.msra.mxu0 %v2008
  %2128 = vmatpush.bf16.msra.mxu0 %v2001
  %2129 = vmatpush.bf16.msra.mxu0 %v1994
  %2130 = vmatpush.bf16.msra.mxu0 %v1987
  %2131 = vmatpush.bf16.msra.mxu0 %v1980
  %2132 = vmatpush.bf16.msra.mxu0 %v1973
  %2133 = vmatpush.bf16.msra.mxu0 %v1966
  %2134 = vmatmul.bf16.gmra.mxu0 %v1769
  %v2135 = vpop.f32.mrf.mxu0
  %v2136 = vadd.f32 %v1776, %v2135
  %v2137 = vpop.f32.mrf.mxu0
  %2138 = vdwg.mxu0
  %2139 = vmatpush.bf16.msra.mxu0 %v2016
  %2140 = vmatpush.bf16.msra.mxu0 %v2009
  %2141 = vmatpush.bf16.msra.mxu0 %v2002
  %2142 = vmatpush.bf16.msra.mxu0 %v1995
  %2143 = vmatpush.bf16.msra.mxu0 %v1988
  %2144 = vmatpush.bf16.msra.mxu0 %v1981
  %2145 = vmatpush.bf16.msra.mxu0 %v1974
  %2146 = vmatpush.bf16.msra.mxu0 %v1967
  %2147 = vmatmul.bf16.gmra.mxu0 %v1769
  %v2148 = vpop.f32.mrf.mxu0
  %v2149 = vadd.f32 %v1777, %v2148
  %v2150 = vpop.f32.mrf.mxu0
  %2151 = vdwg.mxu0
  %2152 = vmatpush.bf16.msra.mxu0 %v2017
  %2153 = vmatpush.bf16.msra.mxu0 %v2010
  %2154 = vmatpush.bf16.msra.mxu0 %v2003
  %2155 = vmatpush.bf16.msra.mxu0 %v1996
  %2156 = vmatpush.bf16.msra.mxu0 %v1989
  %2157 = vmatpush.bf16.msra.mxu0 %v1982
  %2158 = vmatpush.bf16.msra.mxu0 %v1975
  %2159 = vmatpush.bf16.msra.mxu0 %v1968
  %2160 = vmatmul.bf16.gmra.mxu0 %v1769
  %v2161 = vpop.f32.mrf.mxu0
  %v2162 = vadd.f32 %v1778, %v2161
  %v2163 = vpop.f32.mrf.mxu0
  %2164 = vdwg.mxu0
  %v2165 = vmax.f32 %v2084, 0.0
  %v2166 = vmax.f32 %v2097, 0.0
  %v2167 = vmax.f32 %v2110, 0.0
  %v2168 = vmax.f32 %v2123, 0.0
  %v2169 = vmax.f32 %v2136, 0.0
  %v2170 = vmax.f32 %v2149, 0.0
  %v2171 = vmax.f32 %v2162, 0.0
  %v2172 = vld [vmem:[%s20] sm:$0xff]
  %v2173 = vld [vmem:[%s20 + $0x8] sm:$0xff]
  %v2174 = vld [vmem:[%s20 + $0x10] sm:$0xff]
  %v2175 = vld [vmem:[%s20 + $0x18] sm:$0xff]
  %v2176 = vld [vmem:[%s20 + $0x20] sm:$0xff]
  %v2177 = vld [vmem:[%s20 + $0x28] sm:$0xff]
  %v2178 = vld [vmem:[%s20 + $0x30] sm:$0xff]
  %v2179 = vld [vmem:[%s20 + $0x38] sm:$0xff]
  %v2180 = vld [vmem:[%s20 + $0x40] sm:$0xff]
  %v2181 = vld [vmem:[%s20 + $0x48] sm:$0xff]
  %v2182 = vld [vmem:[%s20 + $0x50] sm:$0xff]
  %v2183 = vld [vmem:[%s20 + $0x58] sm:$0xff]
  %v2184 = vld [vmem:[%s20 + $0x60] sm:$0xff]
  %v2185 = vld [vmem:[%s20 + $0x68] sm:$0xff]
  %v2186 = vld [vmem:[%s20 + $0x70] sm:$0xff]
  %v2187 = vld [vmem:[%s20 + $0x78] sm:$0xff]
  %v2188 = vld [vmem:[%s20 + $0x80] sm:$0xff]
  %v2189 = vld [vmem:[%s20 + $0x88] sm:$0xff]
  %v2190 = vld [vmem:[%s20 + $0x90] sm:$0xff]
  %v2191 = vld [vmem:[%s20 + $0x98] sm:$0xff]
  %v2192 = vld [vmem:[%s20 + $0xa0] sm:$0xff]
  %v2193 = vld [vmem:[%s20 + $0xa8] sm:$0xff]
  %v2194 = vld [vmem:[%s20 + $0xb0] sm:$0xff]
  %v2195 = vld [vmem:[%s20 + $0xb8] sm:$0xff]
  %v2196 = vld [vmem:[%s20 + $0xc0] sm:$0xff]
  %v2197 = vld [vmem:[%s20 + $0xc8] sm:$0xff]
  %v2198 = vld [vmem:[%s20 + $0xd0] sm:$0xff]
  %v2199 = vld [vmem:[%s20 + $0xd8] sm:$0xff]
  %v2200 = vld [vmem:[%s20 + $0xe0] sm:$0xff]
  %v2201 = vld [vmem:[%s20 + $0xe8] sm:$0xff]
  %v2202 = vld [vmem:[%s20 + $0xf0] sm:$0xff]
  %v2203 = vld [vmem:[%s20 + $0xf8] sm:$0xff]
  %v2204 = vld [vmem:[%s20 + $0x100] sm:$0xff]
  %v2205 = vld [vmem:[%s20 + $0x108] sm:$0xff]
  %v2206 = vld [vmem:[%s20 + $0x110] sm:$0xff]
  %v2207 = vld [vmem:[%s20 + $0x118] sm:$0xff]
  %v2208 = vld [vmem:[%s20 + $0x120] sm:$0xff]
  %v2209 = vld [vmem:[%s20 + $0x128] sm:$0xff]
  %v2210 = vld [vmem:[%s20 + $0x130] sm:$0xff]
  %v2211 = vld [vmem:[%s20 + $0x138] sm:$0xff]
  %v2212 = vld [vmem:[%s20 + $0x140] sm:$0xff]
  %v2213 = vld [vmem:[%s20 + $0x148] sm:$0xff]
  %v2214 = vld [vmem:[%s20 + $0x150] sm:$0xff]
  %v2215 = vld [vmem:[%s20 + $0x158] sm:$0xff]
  %v2216 = vld [vmem:[%s20 + $0x160] sm:$0xff]
  %v2217 = vld [vmem:[%s20 + $0x168] sm:$0xff]
  %v2218 = vld [vmem:[%s20 + $0x170] sm:$0xff]
  %v2219 = vld [vmem:[%s20 + $0x178] sm:$0xff]
  %v2220 = vld [vmem:[%s20 + $0x180] sm:$0xff]
  %v2221 = vld [vmem:[%s20 + $0x188] sm:$0xff]
  %v2222 = vld [vmem:[%s20 + $0x190] sm:$0xff]
  %v2223 = vld [vmem:[%s20 + $0x198] sm:$0xff]
  %v2224 = vld [vmem:[%s20 + $0x1a0] sm:$0xff]
  %v2225 = vld [vmem:[%s20 + $0x1a8] sm:$0xff]
  %v2226 = vld [vmem:[%s20 + $0x1b0] sm:$0xff]
  %v2227 = vld [vmem:[%s20 + $0x1b8] sm:$0xff]
  %v2228 = vld [vmem:[%s20 + $0x1c0] sm:$0xff]
  %v2229 = vld [vmem:[%s20 + $0x1c8] sm:$0xff]
  %v2230 = vld [vmem:[%s20 + $0x1d0] sm:$0xff]
  %v2231 = vld [vmem:[%s20 + $0x1d8] sm:$0xff]
  %v2232 = vld [vmem:[%s20 + $0x1e0] sm:$0xff]
  %v2233 = vld [vmem:[%s20 + $0x1e8] sm:$0xff]
  %v2234 = vld [vmem:[%s20 + $0x1f0] sm:$0xff]
  %v2235 = vld [vmem:[%s20 + $0x1f8] sm:$0xff]
  %v2236 = vld [vmem:[%s20 + $0x200] sm:$0xff]
  %v2237 = vld [vmem:[%s20 + $0x208] sm:$0xff]
  %v2238 = vld [vmem:[%s20 + $0x210] sm:$0xff]
  %v2239 = vld [vmem:[%s20 + $0x218] sm:$0xff]
  %v2240 = vld [vmem:[%s20 + $0x220] sm:$0xff]
  %v2241 = vld [vmem:[%s20 + $0x228] sm:$0xff]
  %v2242 = vld [vmem:[%s20 + $0x230] sm:$0xff]
  %v2243 = vld [vmem:[%s20 + $0x238] sm:$0xff]
  %v2244 = vld [vmem:[%s20 + $0x240] sm:$0xff]
  %v2245 = vld [vmem:[%s20 + $0x248] sm:$0xff]
  %v2246 = vld [vmem:[%s20 + $0x250] sm:$0xff]
  %v2247 = vld [vmem:[%s20 + $0x258] sm:$0xff]
  %v2248 = vld [vmem:[%s20 + $0x260] sm:$0xff]
  %v2249 = vld [vmem:[%s20 + $0x268] sm:$0xff]
  %v2250 = vld [vmem:[%s20 + $0x270] sm:$0xff]
  %v2251 = vld [vmem:[%s20 + $0x278] sm:$0xff]
  %v2252 = vld [vmem:[%s20 + $0x280] sm:$0xff]
  %v2253 = vld [vmem:[%s20 + $0x288] sm:$0xff]
  %v2254 = vld [vmem:[%s20 + $0x290] sm:$0xff]
  %v2255 = vld [vmem:[%s20 + $0x298] sm:$0xff]
  %v2256 = vld [vmem:[%s20 + $0x2a0] sm:$0xff]
  %v2257 = vld [vmem:[%s20 + $0x2a8] sm:$0xff]
  %v2258 = vld [vmem:[%s20 + $0x2b0] sm:$0xff]
  %v2259 = vld [vmem:[%s20 + $0x2b8] sm:$0xff]
  %v2260 = vld [vmem:[%s20 + $0x2c0] sm:$0xff]
  %v2261 = vld [vmem:[%s20 + $0x2c8] sm:$0xff]
  %v2262 = vld [vmem:[%s20 + $0x2d0] sm:$0xff]
  %v2263 = vld [vmem:[%s20 + $0x2d8] sm:$0xff]
  %v2264 = vld [vmem:[%s20 + $0x2e0] sm:$0xff]
  %v2265 = vld [vmem:[%s20 + $0x2e8] sm:$0xff]
  %v2266 = vld [vmem:[%s20 + $0x2f0] sm:$0xff]
  %v2267 = vld [vmem:[%s20 + $0x2f8] sm:$0xff]
  %v2268 = vld [vmem:[%s20 + $0x300] sm:$0xff]
  %v2269 = vld [vmem:[%s20 + $0x308] sm:$0xff]
  %v2270 = vpack.c.bf16 %v2165, %v2165
  %v2271 = vpack.c.bf16 %v2166, %v2166
  %v2272 = vpack.c.bf16 %v2167, %v2167
  %v2273 = vpack.c.bf16 %v2168, %v2168
  %v2274 = vpack.c.bf16 %v2169, %v2169
  %v2275 = vpack.c.bf16 %v2170, %v2170
  %v2276 = vpack.c.bf16 %v2171, %v2171
  %v2277 = vld [vmem:[%s21] sm:$0x3]
  %v2279 = vperm.slane %v2277, 0
  %v2280 = vperm.slane %v2277, 1
  %v2381 = vunpack.c.l.b16 %v2172
  %v2382 = vunpack.c.h.b16 %v2172
  %v2383 = vunpack.c.l.b16 %v2173
  %v2384 = vunpack.c.h.b16 %v2173
  %v2385 = vunpack.c.l.b16 %v2174
  %v2386 = vunpack.c.h.b16 %v2174
  %v2387 = vunpack.c.l.b16 %v2175
  %v2388 = vunpack.c.h.b16 %v2175
  %v2389 = vunpack.c.l.b16 %v2176
  %v2390 = vunpack.c.h.b16 %v2176
  %v2391 = vunpack.c.l.b16 %v2177
  %v2392 = vunpack.c.h.b16 %v2177
  %v2393 = vunpack.c.l.b16 %v2178
  %v2394 = vunpack.c.h.b16 %v2178
  %v2395 = vunpack.c.l.b16 %v2179
  %v2396 = vunpack.c.h.b16 %v2179
  %v2397 = vunpack.c.l.b16 %v2180
  %v2398 = vunpack.c.h.b16 %v2180
  %v2399 = vunpack.c.l.b16 %v2181
  %v2400 = vunpack.c.h.b16 %v2181
  %v2401 = vunpack.c.l.b16 %v2182
  %v2402 = vunpack.c.h.b16 %v2182
  %v2403 = vunpack.c.l.b16 %v2183
  %v2404 = vunpack.c.h.b16 %v2183
  %v2405 = vunpack.c.l.b16 %v2184
  %v2406 = vunpack.c.h.b16 %v2184
  %v2407 = vunpack.c.l.b16 %v2185
  %v2408 = vunpack.c.h.b16 %v2185
  %v2409 = vunpack.c.l.b16 %v2186
  %v2410 = vunpack.c.h.b16 %v2186
  %v2411 = vunpack.c.l.b16 %v2187
  %v2412 = vunpack.c.h.b16 %v2187
  %v2413 = vunpack.c.l.b16 %v2188
  %v2414 = vunpack.c.h.b16 %v2188
  %v2415 = vunpack.c.l.b16 %v2189
  %v2416 = vunpack.c.h.b16 %v2189
  %v2417 = vunpack.c.l.b16 %v2190
  %v2418 = vunpack.c.h.b16 %v2190
  %v2419 = vunpack.c.l.b16 %v2191
  %v2420 = vunpack.c.h.b16 %v2191
  %v2421 = vunpack.c.l.b16 %v2192
  %v2422 = vunpack.c.h.b16 %v2192
  %v2423 = vunpack.c.l.b16 %v2193
  %v2424 = vunpack.c.h.b16 %v2193
  %v2425 = vunpack.c.l.b16 %v2194
  %v2426 = vunpack.c.h.b16 %v2194
  %v2427 = vunpack.c.l.b16 %v2195
  %v2428 = vunpack.c.h.b16 %v2195
  %v2429 = vunpack.c.l.b16 %v2196
  %v2430 = vunpack.c.h.b16 %v2196
  %v2431 = vunpack.c.l.b16 %v2197
  %v2432 = vunpack.c.h.b16 %v2197
  %v2433 = vunpack.c.l.b16 %v2198
  %v2434 = vunpack.c.h.b16 %v2198
  %v2435 = vunpack.c.l.b16 %v2199
  %v2436 = vunpack.c.h.b16 %v2199
  %v2437 = vunpack.c.l.b16 %v2200
  %v2438 = vunpack.c.h.b16 %v2200
  %v2439 = vunpack.c.l.b16 %v2201
  %v2440 = vunpack.c.h.b16 %v2201
  %v2441 = vunpack.c.l.b16 %v2202
  %v2442 = vunpack.c.h.b16 %v2202
  %v2443 = vunpack.c.l.b16 %v2203
  %v2444 = vunpack.c.h.b16 %v2203
  %v2445 = vunpack.c.l.b16 %v2204
  %v2446 = vunpack.c.h.b16 %v2204
  %v2447 = vunpack.c.l.b16 %v2205
  %v2448 = vunpack.c.h.b16 %v2205
  %v2449 = vunpack.c.l.b16 %v2206
  %v2450 = vunpack.c.h.b16 %v2206
  %v2451 = vunpack.c.l.b16 %v2207
  %v2452 = vunpack.c.h.b16 %v2207
  %v2453 = vunpack.c.l.b16 %v2208
  %v2454 = vunpack.c.h.b16 %v2208
  %v2455 = vunpack.c.l.b16 %v2209
  %v2456 = vunpack.c.h.b16 %v2209
  %v2457 = vunpack.c.l.b16 %v2210
  %v2458 = vunpack.c.h.b16 %v2210
  %v2459 = vunpack.c.l.b16 %v2211
  %v2460 = vunpack.c.h.b16 %v2211
  %v2461 = vunpack.c.l.b16 %v2212
  %v2462 = vunpack.c.h.b16 %v2212
  %v2463 = vunpack.c.l.b16 %v2213
  %v2464 = vunpack.c.h.b16 %v2213
  %v2465 = vunpack.c.l.b16 %v2214
  %v2466 = vunpack.c.h.b16 %v2214
  %v2467 = vunpack.c.l.b16 %v2215
  %v2468 = vunpack.c.h.b16 %v2215
  %v2469 = vunpack.c.l.b16 %v2216
  %v2470 = vunpack.c.h.b16 %v2216
  %v2471 = vunpack.c.l.b16 %v2217
  %v2472 = vunpack.c.h.b16 %v2217
  %v2473 = vunpack.c.l.b16 %v2218
  %v2474 = vunpack.c.h.b16 %v2218
  %v2475 = vunpack.c.l.b16 %v2219
  %v2476 = vunpack.c.h.b16 %v2219
  %v2477 = vunpack.c.l.b16 %v2220
  %v2478 = vunpack.c.h.b16 %v2220
  %v2479 = vunpack.c.l.b16 %v2221
  %v2480 = vunpack.c.h.b16 %v2221
  %v2481 = vunpack.c.l.b16 %v2222
  %v2482 = vunpack.c.h.b16 %v2222
  %v2483 = vunpack.c.l.b16 %v2223
  %v2484 = vunpack.c.h.b16 %v2223
  %v2485 = vunpack.c.l.b16 %v2224
  %v2486 = vunpack.c.h.b16 %v2224
  %v2487 = vunpack.c.l.b16 %v2225
  %v2488 = vunpack.c.h.b16 %v2225
  %v2489 = vunpack.c.l.b16 %v2226
  %v2490 = vunpack.c.h.b16 %v2226
  %v2491 = vunpack.c.l.b16 %v2227
  %v2492 = vunpack.c.h.b16 %v2227
  %v2493 = vunpack.c.l.b16 %v2228
  %v2494 = vunpack.c.h.b16 %v2228
  %v2495 = vunpack.c.l.b16 %v2229
  %v2496 = vunpack.c.h.b16 %v2229
  %v2497 = vunpack.c.l.b16 %v2230
  %v2498 = vunpack.c.h.b16 %v2230
  %v2499 = vunpack.c.l.b16 %v2231
  %v2500 = vunpack.c.h.b16 %v2231
  %v2501 = vunpack.c.l.b16 %v2232
  %v2502 = vunpack.c.h.b16 %v2232
  %v2503 = vunpack.c.l.b16 %v2233
  %v2504 = vunpack.c.h.b16 %v2233
  %v2505 = vunpack.c.l.b16 %v2234
  %v2506 = vunpack.c.h.b16 %v2234
  %v2507 = vunpack.c.l.b16 %v2235
  %v2508 = vunpack.c.h.b16 %v2235
  %v2509 = vunpack.c.l.b16 %v2236
  %v2510 = vunpack.c.h.b16 %v2236
  %v2511 = vunpack.c.l.b16 %v2237
  %v2512 = vunpack.c.h.b16 %v2237
  %v2513 = vunpack.c.l.b16 %v2238
  %v2514 = vunpack.c.h.b16 %v2238
  %v2515 = vunpack.c.l.b16 %v2239
  %v2516 = vunpack.c.h.b16 %v2239
  %v2517 = vunpack.c.l.b16 %v2240
  %v2518 = vunpack.c.h.b16 %v2240
  %v2519 = vunpack.c.l.b16 %v2241
  %v2520 = vunpack.c.h.b16 %v2241
  %v2521 = vunpack.c.l.b16 %v2242
  %v2522 = vunpack.c.h.b16 %v2242
  %v2523 = vunpack.c.l.b16 %v2243
  %v2524 = vunpack.c.h.b16 %v2243
  %v2525 = vunpack.c.l.b16 %v2244
  %v2526 = vunpack.c.h.b16 %v2244
  %v2527 = vunpack.c.l.b16 %v2245
  %v2528 = vunpack.c.h.b16 %v2245
  %v2529 = vunpack.c.l.b16 %v2246
  %v2530 = vunpack.c.h.b16 %v2246
  %v2531 = vunpack.c.l.b16 %v2247
  %v2532 = vunpack.c.h.b16 %v2247
  %v2533 = vunpack.c.l.b16 %v2248
  %v2534 = vunpack.c.h.b16 %v2248
  %v2535 = vunpack.c.l.b16 %v2249
  %v2536 = vunpack.c.h.b16 %v2249
  %v2537 = vunpack.c.l.b16 %v2250
  %v2538 = vunpack.c.h.b16 %v2250
  %v2539 = vunpack.c.l.b16 %v2251
  %v2540 = vunpack.c.h.b16 %v2251
  %v2541 = vunpack.c.l.b16 %v2252
  %v2542 = vunpack.c.h.b16 %v2252
  %v2543 = vunpack.c.l.b16 %v2253
  %v2544 = vunpack.c.h.b16 %v2253
  %v2545 = vunpack.c.l.b16 %v2254
  %v2546 = vunpack.c.h.b16 %v2254
  %v2547 = vunpack.c.l.b16 %v2255
  %v2548 = vunpack.c.h.b16 %v2255
  %v2549 = vunpack.c.l.b16 %v2256
  %v2550 = vunpack.c.h.b16 %v2256
  %v2551 = vunpack.c.l.b16 %v2257
  %v2552 = vunpack.c.h.b16 %v2257
  %v2553 = vunpack.c.l.b16 %v2258
  %v2554 = vunpack.c.h.b16 %v2258
  %v2555 = vunpack.c.l.b16 %v2259
  %v2556 = vunpack.c.h.b16 %v2259
  %v2557 = vunpack.c.l.b16 %v2260
  %v2558 = vunpack.c.h.b16 %v2260
  %v2559 = vunpack.c.l.b16 %v2261
  %v2560 = vunpack.c.h.b16 %v2261
  %v2561 = vunpack.c.l.b16 %v2262
  %v2562 = vunpack.c.h.b16 %v2262
  %v2563 = vunpack.c.l.b16 %v2263
  %v2564 = vunpack.c.h.b16 %v2263
  %v2565 = vunpack.c.l.b16 %v2264
  %v2566 = vunpack.c.h.b16 %v2264
  %v2567 = vunpack.c.l.b16 %v2265
  %v2568 = vunpack.c.h.b16 %v2265
  %v2569 = vunpack.c.l.b16 %v2266
  %v2570 = vunpack.c.h.b16 %v2266
  %v2571 = vunpack.c.l.b16 %v2267
  %v2572 = vunpack.c.h.b16 %v2267
  %v2573 = vunpack.c.l.b16 %v2268
  %v2574 = vunpack.c.h.b16 %v2268
  %v2575 = vunpack.c.l.b16 %v2269
  %v2576 = vunpack.c.h.b16 %v2269
  %v2577 = vpack.c.b16 %v2383, %v2381
  %v2578 = vpack.c.b16 %v2384, %v2382
  %v2579 = vpack.c.b16 %v2387, %v2385
  %v2580 = vpack.c.b16 %v2388, %v2386
  %v2581 = vpack.c.b16 %v2391, %v2389
  %v2582 = vpack.c.b16 %v2392, %v2390
  %v2583 = vpack.c.b16 %v2395, %v2393
  %v2584 = vpack.c.b16 %v2396, %v2394
  %v2585 = vpack.c.b16 %v2399, %v2397
  %v2586 = vpack.c.b16 %v2400, %v2398
  %v2587 = vpack.c.b16 %v2403, %v2401
  %v2588 = vpack.c.b16 %v2404, %v2402
  %v2589 = vpack.c.b16 %v2407, %v2405
  %v2590 = vpack.c.b16 %v2408, %v2406
  %v2591 = vpack.c.b16 %v2411, %v2409
  %v2592 = vpack.c.b16 %v2412, %v2410
  %v2593 = vpack.c.b16 %v2415, %v2413
  %v2594 = vpack.c.b16 %v2416, %v2414
  %v2595 = vpack.c.b16 %v2419, %v2417
  %v2596 = vpack.c.b16 %v2420, %v2418
  %v2597 = vpack.c.b16 %v2423, %v2421
  %v2598 = vpack.c.b16 %v2424, %v2422
  %v2599 = vpack.c.b16 %v2427, %v2425
  %v2600 = vpack.c.b16 %v2428, %v2426
  %v2601 = vpack.c.b16 %v2431, %v2429
  %v2602 = vpack.c.b16 %v2432, %v2430
  %v2603 = vpack.c.b16 %v2435, %v2433
  %v2604 = vpack.c.b16 %v2436, %v2434
  %v2605 = vpack.c.b16 %v2439, %v2437
  %v2606 = vpack.c.b16 %v2440, %v2438
  %v2607 = vpack.c.b16 %v2443, %v2441
  %v2608 = vpack.c.b16 %v2444, %v2442
  %v2609 = vpack.c.b16 %v2447, %v2445
  %v2610 = vpack.c.b16 %v2448, %v2446
  %v2611 = vpack.c.b16 %v2451, %v2449
  %v2612 = vpack.c.b16 %v2452, %v2450
  %v2613 = vpack.c.b16 %v2455, %v2453
  %v2614 = vpack.c.b16 %v2456, %v2454
  %v2615 = vpack.c.b16 %v2459, %v2457
  %v2616 = vpack.c.b16 %v2460, %v2458
  %v2617 = vpack.c.b16 %v2463, %v2461
  %v2618 = vpack.c.b16 %v2464, %v2462
  %v2619 = vpack.c.b16 %v2467, %v2465
  %v2620 = vpack.c.b16 %v2468, %v2466
  %v2621 = vpack.c.b16 %v2471, %v2469
  %v2622 = vpack.c.b16 %v2472, %v2470
  %v2623 = vpack.c.b16 %v2475, %v2473
  %v2624 = vpack.c.b16 %v2476, %v2474
  %v2625 = vpack.c.b16 %v2479, %v2477
  %v2626 = vpack.c.b16 %v2480, %v2478
  %v2627 = vpack.c.b16 %v2483, %v2481
  %v2628 = vpack.c.b16 %v2484, %v2482
  %v2629 = vpack.c.b16 %v2487, %v2485
  %v2630 = vpack.c.b16 %v2488, %v2486
  %v2631 = vpack.c.b16 %v2491, %v2489
  %v2632 = vpack.c.b16 %v2492, %v2490
  %v2633 = vpack.c.b16 %v2495, %v2493
  %v2634 = vpack.c.b16 %v2496, %v2494
  %v2635 = vpack.c.b16 %v2499, %v2497
  %v2636 = vpack.c.b16 %v2500, %v2498
  %v2637 = vpack.c.b16 %v2503, %v2501
  %v2638 = vpack.c.b16 %v2504, %v2502
  %v2639 = vpack.c.b16 %v2507, %v2505
  %v2640 = vpack.c.b16 %v2508, %v2506
  %v2641 = vpack.c.b16 %v2511, %v2509
  %v2642 = vpack.c.b16 %v2512, %v2510
  %v2643 = vpack.c.b16 %v2515, %v2513
  %v2644 = vpack.c.b16 %v2516, %v2514
  %v2645 = vpack.c.b16 %v2519, %v2517
  %v2646 = vpack.c.b16 %v2520, %v2518
  %v2647 = vpack.c.b16 %v2523, %v2521
  %v2648 = vpack.c.b16 %v2524, %v2522
  %v2649 = vpack.c.b16 %v2527, %v2525
  %v2650 = vpack.c.b16 %v2528, %v2526
  %v2651 = vpack.c.b16 %v2531, %v2529
  %v2652 = vpack.c.b16 %v2532, %v2530
  %v2653 = vpack.c.b16 %v2535, %v2533
  %v2654 = vpack.c.b16 %v2536, %v2534
  %v2655 = vpack.c.b16 %v2539, %v2537
  %v2656 = vpack.c.b16 %v2540, %v2538
  %v2657 = vpack.c.b16 %v2543, %v2541
  %v2658 = vpack.c.b16 %v2544, %v2542
  %v2659 = vpack.c.b16 %v2547, %v2545
  %v2660 = vpack.c.b16 %v2548, %v2546
  %v2661 = vpack.c.b16 %v2551, %v2549
  %v2662 = vpack.c.b16 %v2552, %v2550
  %v2663 = vpack.c.b16 %v2555, %v2553
  %v2664 = vpack.c.b16 %v2556, %v2554
  %v2665 = vpack.c.b16 %v2559, %v2557
  %v2666 = vpack.c.b16 %v2560, %v2558
  %v2667 = vpack.c.b16 %v2563, %v2561
  %v2668 = vpack.c.b16 %v2564, %v2562
  %v2669 = vpack.c.b16 %v2567, %v2565
  %v2670 = vpack.c.b16 %v2568, %v2566
  %v2671 = vpack.c.b16 %v2571, %v2569
  %v2672 = vpack.c.b16 %v2572, %v2570
  %v2673 = vpack.c.b16 %v2575, %v2573
  %v2674 = vpack.c.b16 %v2576, %v2574
  %vm2773 = vcmask 130048
  %v2775 = vsel %vm2773, %v2276, 0
  %2777 = vmatpush.bf16.msra.mxu0 %v2591
  %2778 = vmatpush.bf16.msra.mxu0 %v2589
  %2779 = vmatpush.bf16.msra.mxu0 %v2587
  %2780 = vmatpush.bf16.msra.mxu0 %v2585
  %2781 = vmatpush.bf16.msra.mxu0 %v2583
  %2782 = vmatpush.bf16.msra.mxu0 %v2581
  %2783 = vmatpush.bf16.msra.mxu0 %v2579
  %2784 = vmatpush.bf16.msra.mxu0 %v2577
  %2785 = vmatmul.bf16.gmra.mxu0 %v2270
  %v2786 = vpop.f32.mrf.mxu0
  %v2787 = vadd.f32 %v2279, %v2786
  %v2788 = vpop.f32.mrf.mxu0
  %2789 = vdwg.mxu0
  %2790 = vmatpush.bf16.msra.mxu0 %v2607
  %2791 = vmatpush.bf16.msra.mxu0 %v2605
  %2792 = vmatpush.bf16.msra.mxu0 %v2603
  %2793 = vmatpush.bf16.msra.mxu0 %v2601
  %2794 = vmatpush.bf16.msra.mxu0 %v2599
  %2795 = vmatpush.bf16.msra.mxu0 %v2597
  %2796 = vmatpush.bf16.msra.mxu0 %v2595
  %2797 = vmatpush.bf16.msra.mxu0 %v2593
  %2798 = vmatmul.bf16.gmra.mxu0 %v2271
  %v2799 = vpop.f32.mrf.mxu0
  %v2800 = vadd.f32 %v2787, %v2799
  %v2801 = vpop.f32.mrf.mxu0
  %2802 = vdwg.mxu0
  %2803 = vmatpush.bf16.msra.mxu0 %v2623
  %2804 = vmatpush.bf16.msra.mxu0 %v2621
  %2805 = vmatpush.bf16.msra.mxu0 %v2619
  %2806 = vmatpush.bf16.msra.mxu0 %v2617
  %2807 = vmatpush.bf16.msra.mxu0 %v2615
  %2808 = vmatpush.bf16.msra.mxu0 %v2613
  %2809 = vmatpush.bf16.msra.mxu0 %v2611
  %2810 = vmatpush.bf16.msra.mxu0 %v2609
  %2811 = vmatmul.bf16.gmra.mxu0 %v2272
  %v2812 = vpop.f32.mrf.mxu0
  %v2813 = vadd.f32 %v2800, %v2812
  %v2814 = vpop.f32.mrf.mxu0
  %2815 = vdwg.mxu0
  %2816 = vmatpush.bf16.msra.mxu0 %v2639
  %2817 = vmatpush.bf16.msra.mxu0 %v2637
  %2818 = vmatpush.bf16.msra.mxu0 %v2635
  %2819 = vmatpush.bf16.msra.mxu0 %v2633
  %2820 = vmatpush.bf16.msra.mxu0 %v2631
  %2821 = vmatpush.bf16.msra.mxu0 %v2629
  %2822 = vmatpush.bf16.msra.mxu0 %v2627
  %2823 = vmatpush.bf16.msra.mxu0 %v2625
  %2824 = vmatmul.bf16.gmra.mxu0 %v2273
  %v2825 = vpop.f32.mrf.mxu0
  %v2826 = vadd.f32 %v2813, %v2825
  %v2827 = vpop.f32.mrf.mxu0
  %2828 = vdwg.mxu0
  %2829 = vmatpush.bf16.msra.mxu0 %v2655
  %2830 = vmatpush.bf16.msra.mxu0 %v2653
  %2831 = vmatpush.bf16.msra.mxu0 %v2651
  %2832 = vmatpush.bf16.msra.mxu0 %v2649
  %2833 = vmatpush.bf16.msra.mxu0 %v2647
  %2834 = vmatpush.bf16.msra.mxu0 %v2645
  %2835 = vmatpush.bf16.msra.mxu0 %v2643
  %2836 = vmatpush.bf16.msra.mxu0 %v2641
  %2837 = vmatmul.bf16.gmra.mxu0 %v2274
  %v2838 = vpop.f32.mrf.mxu0
  %v2839 = vadd.f32 %v2826, %v2838
  %v2840 = vpop.f32.mrf.mxu0
  %2841 = vdwg.mxu0
  %2842 = vmatpush.bf16.msra.mxu0 %v2671
  %2843 = vmatpush.bf16.msra.mxu0 %v2669
  %2844 = vmatpush.bf16.msra.mxu0 %v2667
  %2845 = vmatpush.bf16.msra.mxu0 %v2665
  %2846 = vmatpush.bf16.msra.mxu0 %v2663
  %2847 = vmatpush.bf16.msra.mxu0 %v2661
  %2848 = vmatpush.bf16.msra.mxu0 %v2659
  %2849 = vmatpush.bf16.msra.mxu0 %v2657
  %2850 = vmatmul.bf16.gmra.mxu0 %v2275
  %v2851 = vpop.f32.mrf.mxu0
  %v2852 = vadd.f32 %v2839, %v2851
  %v2853 = vpop.f32.mrf.mxu0
  %2854 = vdwg.mxu0
  %2855 = vmatpush.bf16.msra.mxu0 0
  %2856 = vmatpush.bf16.msra.mxu0 0
  %2857 = vmatpush.bf16.msra.mxu0 0
  %2858 = vmatpush.bf16.msra.mxu0 0
  %2859 = vmatpush.bf16.msra.mxu0 0
  %2860 = vmatpush.bf16.msra.mxu0 0
  %2861 = vmatpush.bf16.msra.mxu0 0
  %2862 = vmatpush.bf16.msra.mxu0 %v2673
  %2863 = vmatmul.bf16.gmra.mxu0 %v2775
  %v2864 = vpop.f32.mrf.mxu0
  %v2865 = vadd.f32 %v2852, %v2864
  %v2866 = vpop.f32.mrf.mxu0
  %2867 = vdwg.mxu0
  %2868 = vmatpush.bf16.msra.mxu0 %v2592
  %2869 = vmatpush.bf16.msra.mxu0 %v2590
  %2870 = vmatpush.bf16.msra.mxu0 %v2588
  %2871 = vmatpush.bf16.msra.mxu0 %v2586
  %2872 = vmatpush.bf16.msra.mxu0 %v2584
  %2873 = vmatpush.bf16.msra.mxu0 %v2582
  %2874 = vmatpush.bf16.msra.mxu0 %v2580
  %2875 = vmatpush.bf16.msra.mxu0 %v2578
  %2876 = vmatmul.bf16.gmra.mxu0 %v2270
  %v2877 = vpop.f32.mrf.mxu0
  %v2878 = vadd.f32 %v2280, %v2877
  %v2879 = vpop.f32.mrf.mxu0
  %2880 = vdwg.mxu0
  %2881 = vmatpush.bf16.msra.mxu0 %v2608
  %2882 = vmatpush.bf16.msra.mxu0 %v2606
  %2883 = vmatpush.bf16.msra.mxu0 %v2604
  %2884 = vmatpush.bf16.msra.mxu0 %v2602
  %2885 = vmatpush.bf16.msra.mxu0 %v2600
  %2886 = vmatpush.bf16.msra.mxu0 %v2598
  %2887 = vmatpush.bf16.msra.mxu0 %v2596
  %2888 = vmatpush.bf16.msra.mxu0 %v2594
  %2889 = vmatmul.bf16.gmra.mxu0 %v2271
  %v2890 = vpop.f32.mrf.mxu0
  %v2891 = vadd.f32 %v2878, %v2890
  %v2892 = vpop.f32.mrf.mxu0
  %2893 = vdwg.mxu0
  %2894 = vmatpush.bf16.msra.mxu0 %v2624
  %2895 = vmatpush.bf16.msra.mxu0 %v2622
  %2896 = vmatpush.bf16.msra.mxu0 %v2620
  %2897 = vmatpush.bf16.msra.mxu0 %v2618
  %2898 = vmatpush.bf16.msra.mxu0 %v2616
  %2899 = vmatpush.bf16.msra.mxu0 %v2614
  %2900 = vmatpush.bf16.msra.mxu0 %v2612
  %2901 = vmatpush.bf16.msra.mxu0 %v2610
  %2902 = vmatmul.bf16.gmra.mxu0 %v2272
  %v2903 = vpop.f32.mrf.mxu0
  %v2904 = vadd.f32 %v2891, %v2903
  %v2905 = vpop.f32.mrf.mxu0
  %2906 = vdwg.mxu0
  %2907 = vmatpush.bf16.msra.mxu0 %v2640
  %2908 = vmatpush.bf16.msra.mxu0 %v2638
  %2909 = vmatpush.bf16.msra.mxu0 %v2636
  %2910 = vmatpush.bf16.msra.mxu0 %v2634
  %2911 = vmatpush.bf16.msra.mxu0 %v2632
  %2912 = vmatpush.bf16.msra.mxu0 %v2630
  %2913 = vmatpush.bf16.msra.mxu0 %v2628
  %2914 = vmatpush.bf16.msra.mxu0 %v2626
  %2915 = vmatmul.bf16.gmra.mxu0 %v2273
  %v2916 = vpop.f32.mrf.mxu0
  %v2917 = vadd.f32 %v2904, %v2916
  %v2918 = vpop.f32.mrf.mxu0
  %2919 = vdwg.mxu0
  %2920 = vmatpush.bf16.msra.mxu0 %v2656
  %2921 = vmatpush.bf16.msra.mxu0 %v2654
  %2922 = vmatpush.bf16.msra.mxu0 %v2652
  %2923 = vmatpush.bf16.msra.mxu0 %v2650
  %2924 = vmatpush.bf16.msra.mxu0 %v2648
  %2925 = vmatpush.bf16.msra.mxu0 %v2646
  %2926 = vmatpush.bf16.msra.mxu0 %v2644
  %2927 = vmatpush.bf16.msra.mxu0 %v2642
  %2928 = vmatmul.bf16.gmra.mxu0 %v2274
  %v2929 = vpop.f32.mrf.mxu0
  %v2930 = vadd.f32 %v2917, %v2929
  %v2931 = vpop.f32.mrf.mxu0
  %2932 = vdwg.mxu0
  %2933 = vmatpush.bf16.msra.mxu0 %v2672
  %2934 = vmatpush.bf16.msra.mxu0 %v2670
  %2935 = vmatpush.bf16.msra.mxu0 %v2668
  %2936 = vmatpush.bf16.msra.mxu0 %v2666
  %2937 = vmatpush.bf16.msra.mxu0 %v2664
  %2938 = vmatpush.bf16.msra.mxu0 %v2662
  %2939 = vmatpush.bf16.msra.mxu0 %v2660
  %2940 = vmatpush.bf16.msra.mxu0 %v2658
  %2941 = vmatmul.bf16.gmra.mxu0 %v2275
  %v2942 = vpop.f32.mrf.mxu0
  %v2943 = vadd.f32 %v2930, %v2942
  %v2944 = vpop.f32.mrf.mxu0
  %2945 = vdwg.mxu0
  %2946 = vmatpush.bf16.msra.mxu0 0
  %2947 = vmatpush.bf16.msra.mxu0 0
  %2948 = vmatpush.bf16.msra.mxu0 0
  %2949 = vmatpush.bf16.msra.mxu0 0
  %2950 = vmatpush.bf16.msra.mxu0 0
  %2951 = vmatpush.bf16.msra.mxu0 0
  %2952 = vmatpush.bf16.msra.mxu0 0
  %2953 = vmatpush.bf16.msra.mxu0 %v2674
  %2954 = vmatmul.bf16.gmra.mxu0 %v2775
  %v2955 = vpop.f32.mrf.mxu0
  %v2956 = vadd.f32 %v2943, %v2955
  %v2957 = vpop.f32.mrf.mxu0
  %2958 = vdwg.mxu0
  %v2961 = vrot.slane %v2956, 4
  %v2962 = vsel %vm1624, %v2865, %v2961
  %2964 = vst [vmem:[%s22] sm:$0xff] %v2962
  // Predicated region
  $region90: #{e2c_forward.3} parent=0 // pred_check
    _
  $region91: #{e2c_forward.3} parent=0 // pred_check_branch
    %2966 = sbr.rel (0) target = $region93
  $region92: #{e2c_forward.3} parent=0 // pred_region
    _
  $region93: #{e2c_forward.3} parent=0 // pred_fallthru
    _
  // Predicated region
  $region94: #{e2c_forward.3} parent=0 // pred_check
    _
  $region95: #{e2c_forward.3} parent=0 // pred_check_branch
    %2968 = sbr.rel (0) target = $region97
  $region96: #{e2c_forward.3} parent=0 // pred_region
    _
  $region97: #{e2c_forward.3} parent=0 // pred_fallthru
    _
  // Predicated region
  $region98: #{e2c_forward.3} parent=0 // pred_check
    _
  $region99: #{e2c_forward.3} parent=0 // pred_check_branch
    %2970 = sbr.rel (0) target = $region101
  $region100: #{e2c_forward.3} parent=0 // pred_region
    _
  $region101: #{e2c_forward.3} parent=0 // pred_fallthru
    _
  // Predicated region
  $region102: #{e2c_forward.3} parent=0 // pred_check
    _
  $region103: #{e2c_forward.3} parent=0 // pred_check_branch
    %2972 = sbr.rel (0) target = $region105
  $region104: #{e2c_forward.3} parent=0 // pred_region
    _
  $region105: #{e2c_forward.3} parent=0 // pred_fallthru
    _

</llo_original>
